<compile_context>
chip_gen: v7x
topology: tpu7x:2x2x1
jax: 0.10.0
libtpu: 0.0.40
codegen_flags: <defaults>
</compile_context>

<pallas_src>
import numpy as np
import jax
import jax.numpy as jnp
from jax import lax
from jax.experimental import pallas as pl
from jax.experimental.pallas import tpu as pltpu

_CHANS = (1, 16, 32, 64)


def _layer_dims(H, W, chans=_CHANS):
    """Static per-layer packing dims: (Lin, Lout, astart) for the 3 conv layers."""
    dims = []
    Hin, Win, k = H, W, 8
    for li in range(3):
        cin, cout = chans[li], chans[li + 1]
        m = k // 2
        Hout, Wout = Hin // 2, Win // 2
        Lin = k * Win * cin
        Lout = m * Wout * cout
        # G_A only reads the last image sub-row of the previous packed row:
        # lane range [(k-1)*Win*cin, Lin).  Align the slice start down to 128 lanes.
        astart = max(0, ((k - 1) * Win * cin) // 128 * 128)
        dims.append((Lin, Lout, astart))
        Hin, Win, k = Hout, Wout, m
    return dims, (Hin, Win, chans[3])


# ------------------------------ Pallas kernel -------------------------------

def make_fused_kernel(R, a1, a2, a3):
    """R = packed matrix rows per sample (== H // 8); a* = A-side lane-slice starts."""

    def fused_kernel(xp_ref,
                     ga1_ref, gb1_ref, sh1_ref,
                     ga2_ref, gb2_ref, sh2_ref,
                     ga3_ref, gb3_ref, sh3_ref,
                     wl_ref, bl_ref,
                     out_ref,
                     s12, s23):
        # ---- layer 1: conv3x3/s2 + folded BN + ReLU (two MXU matmuls) ----
        x = xp_ref[0].astype(jnp.bfloat16)               # (R+1, 8*W) packed + top zero row
        acc1 = jnp.dot(x[1:R + 1, :], gb1_ref[...],
                       preferred_element_type=jnp.float32)
        acc1 = acc1 + jnp.dot(x[0:R, a1:], ga1_ref[...],   # row-pruned G_A (tail lanes only)
                              preferred_element_type=jnp.float32)
        h1 = jnp.maximum(acc1 + sh1_ref[...], 0.0)        # (R, L1out) f32

        # ---- layer 2 ----
        s12[0:1, :] = jnp.zeros((1, s12.shape[1]), jnp.float32)   # top H-padding row
        s12[1:R + 1, :] = h1[:, a2:]                      # only the tail lanes G_A needs
        acc2 = jnp.dot(h1.astype(jnp.bfloat16), gb2_ref[...],
                       preferred_element_type=jnp.float32)
        acc2 = acc2 + jnp.dot(s12[0:R, :].astype(jnp.bfloat16), ga2_ref[...],
                              preferred_element_type=jnp.float32)
        h2 = jnp.maximum(acc2 + sh2_ref[...], 0.0)        # (R, L2out)

        # ---- layer 3 ----
        s23[0:1, :] = jnp.zeros((1, s23.shape[1]), jnp.float32)
        s23[1:R + 1, :] = h2[:, a3:]
        acc3 = jnp.dot(h2.astype(jnp.bfloat16), gb3_ref[...],
                       preferred_element_type=jnp.float32)
        acc3 = acc3 + jnp.dot(s23[0:R, :].astype(jnp.bfloat16), ga3_ref[...],
                              preferred_element_type=jnp.float32)
        h3 = jnp.maximum(acc3 + sh3_ref[...], 0.0)        # (R, L3out) f32

        # ---- flatten (permutation folded into wl) + linear ----
        acc_l = bl_ref[...]                               # (1, 4)
        for r in range(R):                                # static unroll (R == 8)
            acc_l = acc_l + jnp.dot(h3[r:r + 1, :], wl_ref[r],
                                    preferred_element_type=jnp.float32)
        out_ref[0] = acc_l

    return fused_kernel


# --------------------------------- wrapper ----------------------------------

def simple_conv_net_forward(x_nchw, kparams):
    """x_nchw: (N, 1, H, W) f32 -> (N, 4) f32, one fused pallas_call."""
    (ga1, gb1, sh1, ga2, gb2, sh2, ga3, gb3, sh3, wl, bl) = kparams
    N, C, H, W = x_nchw.shape
    R = H // 8
    dims, _ = _layer_dims(H, W)
    (L1in, L1out, a1), (L2in, L2out, a2), (L3in, L3out, a3) = dims

    # Pack 8 image rows per matrix row (pure reshape) and prepend one zero matrix
    # row -- the only H-padding the first layer ever reads.
    xp = x_nchw.reshape(N, R, L1in)
    xp = jnp.pad(xp, ((0, 0), (1, 0), (0, 0)))

    const2 = lambda n: (0, 0)
    const3 = lambda n: (0, 0, 0)
    out = pl.pallas_call(
        make_fused_kernel(R, a1, a2, a3),
        out_shape=jax.ShapeDtypeStruct((N, 1, 4), jnp.float32),
        grid=(N,),
        in_specs=[
            pl.BlockSpec((1, R + 1, L1in), lambda n: (n, 0, 0)),
            pl.BlockSpec(ga1.shape, const2), pl.BlockSpec(gb1.shape, const2),
            pl.BlockSpec(sh1.shape, const2),
            pl.BlockSpec(ga2.shape, const2), pl.BlockSpec(gb2.shape, const2),
            pl.BlockSpec(sh2.shape, const2),
            pl.BlockSpec(ga3.shape, const2), pl.BlockSpec(gb3.shape, const2),
            pl.BlockSpec(sh3.shape, const2),
            pl.BlockSpec(wl.shape, const3), pl.BlockSpec(bl.shape, const2),
        ],
        out_specs=pl.BlockSpec((1, 1, 4), lambda n: (n, 0, 0)),
        scratch_shapes=[
            pltpu.VMEM((R + 1, L2in - a2), jnp.float32),   # layer1 -> layer2 (tail lanes)
            pltpu.VMEM((R + 1, L3in - a3), jnp.float32),   # layer2 -> layer3 (tail lanes)
        ],
        compiler_params=pltpu.CompilerParams(
            dimension_semantics=("parallel",),
            vmem_limit_bytes=48 * 1024 * 1024,
        ),
    )(xp, ga1, gb1, sh1, ga2, gb2, sh2, ga3, gb3, sh3, wl, bl)
    return out.reshape(N, 4)


# ------------------------- deterministic parameters -------------------------

def init_params(key, H, W):
    """Build (kernel_params, ref_params).

    kernel_params: Toeplitz-expanded bf16 conv weights (row-pruned G_A + full G_B per
    layer; BN scale and conv bias folded), lane-tiled shifts, and permutation-folded
    linear weights.  ref_params: the same folded (bf16-rounded) dense weights for a
    pure-JAX reference.
    """
    chans = _CHANS
    eps = 1e-5
    kparams = []
    ref_layers = []
    Hin, Win = H, W
    k_pack = 8
    for li in range(3):
        cin, cout = chans[li], chans[li + 1]
        key, k1, k2, k3, k4, k5, k6 = jax.random.split(key, 7)
        w = 0.1 * jax.random.normal(k1, (3, 3, cin, cout), jnp.float32)
        cbias = 0.1 * jax.random.normal(k2, (cout,), jnp.float32)
        gamma = 1.0 + 0.1 * jax.random.normal(k3, (cout,), jnp.float32)
        beta = 0.1 * jax.random.normal(k4, (cout,), jnp.float32)
        rmean = 0.1 * jax.random.normal(k5, (cout,), jnp.float32)
        rvar = jax.random.uniform(k6, (cout,), jnp.float32, 0.5, 1.5)
        scale = gamma / jnp.sqrt(rvar + eps)
        shift = beta + scale * (cbias - rmean)
        # Fold BN scale into the conv weights, quantize the folded weights to bf16 once.
        w_fold = np.asarray((w * scale[None, None, None, :])
                            .astype(jnp.bfloat16).astype(jnp.float32))
        shift_np = np.asarray(shift)

        m_pack = k_pack // 2
        Hout, Wout = Hin // 2, Win // 2
        Lin, Lout = k_pack * Win * cin, m_pack * Wout * cout
        astart = max(0, ((k_pack - 1) * Win * cin) // 128 * 128)
        GA = np.zeros((Lin, Lout), np.float32)
        GB = np.zeros((Lin, Lout), np.float32)
        for t in range(m_pack):                 # output sub-row inside a packed row
            for kh in range(3):
                u = 2 * t + kh - 1              # input sub-row inside a packed row
                for ow in range(Wout):
                    col = (t * Wout + ow) * cout
                    for kw in range(3):
                        j = 2 * ow + kw - 1     # input column (j == -1 is the left pad)
                        if j < 0:
                            continue
                        if u >= 0:              # lives in packed row p  -> G_B
                            row = (u * Win + j) * cin
                            GB[row:row + cin, col:col + cout] += w_fold[kh, kw]
                        else:                   # u == -1: previous packed row -> G_A
                            row = ((k_pack - 1) * Win + j) * cin
                            GA[row:row + cin, col:col + cout] += w_fold[kh, kw]
        # G_A only touches the last image sub-row of the previous packed row:
        # keep only the 128-aligned tail (all dropped rows are exactly zero).
        GA = GA[astart:, :]
        sh_lane = np.tile(shift_np, m_pack * Wout)[None, :].astype(np.float32)
        kparams += [jnp.asarray(GA, jnp.bfloat16),
                    jnp.asarray(GB, jnp.bfloat16),
                    jnp.asarray(sh_lane)]
        ref_layers.append((jnp.asarray(w_fold), jnp.asarray(shift_np)))
        Hin, Win, k_pack = Hout, Wout, m_pack

    # Linear layer.  Fold PyTorch's (C,H,W) flatten order into the row-packed
    # (H, W*C) layout produced by the kernel (no runtime transpose).
    Hf, Wf, Cf = Hin, Win, chans[3]
    lin_in = Cf * Hf * Wf
    key, k1, k2 = jax.random.split(key, 3)
    w_l = 0.02 * jax.random.normal(k1, (lin_in, 4), jnp.float32)
    b_l = 0.02 * jax.random.normal(k2, (1, 4), jnp.float32)
    wl_np = np.asarray(w_l).reshape(Cf, Hf, Wf, 4)
    WL = np.ascontiguousarray(np.transpose(wl_np, (1, 2, 0, 3))).reshape(Hf, Wf * Cf, 4)
    kparams += [jnp.asarray(WL, jnp.float32), b_l]
    return tuple(kparams), (ref_layers, w_l, b_l)


# ------------------------------ pure-JAX reference ---------------------------

def reference_forward(x_nchw, ref_params):
    """Reference with the same folded (bf16-rounded) weights, NCHW like PyTorch."""
    ref_layers, w_l, b_l = ref_params
    h = x_nchw
    for w_fold, shift in ref_layers:
        h = h.astype(jnp.bfloat16).astype(jnp.float32)   # same quantization as kernel
        w_oihw = jnp.transpose(w_fold, (3, 2, 0, 1))
        y = lax.conv_general_dilated(
            h, w_oihw, window_strides=(2, 2), padding=((1, 1), (1, 1)),
            dimension_numbers=("NCHW", "OIHW", "NCHW"),
            precision=lax.Precision.HIGHEST)
        h = jnp.maximum(y + shift[None, :, None, None], 0.0)
    flat = h.reshape(h.shape[0], -1)
    return jnp.dot(flat, w_l, precision=lax.Precision.HIGHEST) + b_l


if __name__ == "__main__":
    key = jax.random.PRNGKey(0)
    key, kx, kp = jax.random.split(key, 3)

    # Small shapes consistent with the module: 1 input channel, spatial dims
    # divisible by 8 (three stride-2 convs); final feature map is 64 x 8 x 4.
    N, C, H, W = 2, 1, 64, 32
    x = jax.random.normal(kx, (N, C, H, W), jnp.float32)

    kparams, ref_params = init_params(kp, H, W)

    fwd = jax.jit(simple_conv_net_forward)
    out = jax.block_until_ready(fwd(x, kparams))
    assert out.shape == (N, 4), out.shape

    # Correctness check against a pure-JAX reference of the same folded network.
    ref = jax.block_until_ready(reference_forward(x, ref_params))
    np.testing.assert_allclose(np.asarray(out), np.asarray(ref), rtol=1e-2, atol=1e-2)

    print("KERNEL_OK")
</pallas_src>

<mosaic_0001>
module attributes {stable_mosaic.version = 11 : i64} {
  func.func @fused_kernel(%arg0: i32, %arg1: memref<1x9x256xf32, #tpu.memory_space<vmem>>, %arg2: memref<128x1024xbf16, #tpu.memory_space<vmem>>, %arg3: memref<256x1024xbf16, #tpu.memory_space<vmem>>, %arg4: memref<1x1024xf32, #tpu.memory_space<vmem>>, %arg5: memref<256x512xbf16, #tpu.memory_space<vmem>>, %arg6: memref<1024x512xbf16, #tpu.memory_space<vmem>>, %arg7: memref<1x512xf32, #tpu.memory_space<vmem>>, %arg8: memref<256x256xbf16, #tpu.memory_space<vmem>>, %arg9: memref<512x256xbf16, #tpu.memory_space<vmem>>, %arg10: memref<1x256xf32, #tpu.memory_space<vmem>>, %arg11: memref<8x256x4xf32, #tpu.memory_space<vmem>>, %arg12: memref<1x4xf32, #tpu.memory_space<vmem>>, %arg13: memref<1x1x4xf32, #tpu.memory_space<vmem>>, %arg14: memref<9x256xf32, #tpu.memory_space<vmem>>, %arg15: memref<9x256xf32, #tpu.memory_space<vmem>>) attributes {dimension_semantics = [#tpu.dimension_semantics<parallel>], iteration_bounds = array<i64: 2>, scalar_prefetch = 0 : i64, scratch_operands = 2 : i64, tpu.core_type = #tpu.core_type<tc>, window_params = [{transform_indices = @transform_0, window_bounds = array<i64: 1, 9, 256>}, {pipeline_mode = #tpu.pipeline_mode<synchronous>, transform_indices = @transform_1, window_bounds = array<i64: 128, 1024>}, {pipeline_mode = #tpu.pipeline_mode<synchronous>, transform_indices = @transform_2, window_bounds = array<i64: 256, 1024>}, {pipeline_mode = #tpu.pipeline_mode<synchronous>, transform_indices = @transform_3, window_bounds = array<i64: 1, 1024>}, {pipeline_mode = #tpu.pipeline_mode<synchronous>, transform_indices = @transform_4, window_bounds = array<i64: 256, 512>}, {pipeline_mode = #tpu.pipeline_mode<synchronous>, transform_indices = @transform_5, window_bounds = array<i64: 1024, 512>}, {pipeline_mode = #tpu.pipeline_mode<synchronous>, transform_indices = @transform_6, window_bounds = array<i64: 1, 512>}, {pipeline_mode = #tpu.pipeline_mode<synchronous>, transform_indices = @transform_7, window_bounds = array<i64: 256, 256>}, {pipeline_mode = #tpu.pipeline_mode<synchronous>, transform_indices = @transform_8, window_bounds = array<i64: 512, 256>}, {pipeline_mode = #tpu.pipeline_mode<synchronous>, transform_indices = @transform_9, window_bounds = array<i64: 1, 256>}, {pipeline_mode = #tpu.pipeline_mode<synchronous>, transform_indices = @transform_10, window_bounds = array<i64: 8, 256, 4>}, {pipeline_mode = #tpu.pipeline_mode<synchronous>, transform_indices = @transform_11, window_bounds = array<i64: 1, 4>}, {transform_indices = @transform_12, window_bounds = array<i64: 1, 1, 4>}]} {
    %c0 = arith.constant 0 : index
    %c0_0 = arith.constant 0 : index
    %c0_1 = arith.constant 0 : index
    %0 = vector.load %arg1[%c0, %c0_0, %c0_1] : memref<1x9x256xf32, #tpu.memory_space<vmem>>, vector<1x9x256xf32>
    %1 = vector.shape_cast %0 : vector<1x9x256xf32> to vector<9x256xf32>
    %2 = arith.truncf %1 : vector<9x256xf32> to vector<9x256xbf16>
    %3 = vector.extract_strided_slice %2 {offsets = [1, 0], sizes = [8, 256], strides = [1, 1]} : vector<9x256xbf16> to vector<8x256xbf16>
    %c0_2 = arith.constant 0 : index
    %c0_3 = arith.constant 0 : index
    %4 = vector.load %arg3[%c0_2, %c0_3] : memref<256x1024xbf16, #tpu.memory_space<vmem>>, vector<256x1024xbf16>
    %cst = arith.constant dense<0.000000e+00> : vector<8x1024xf32>
    %5 = tpu.matmul %3, %4, %cst {dimension_numbers = #tpu.dot_dimension_numbers<[1], [0], [0], [1], [0, 0, 1, 1], [], []>} : vector<8x256xbf16>, vector<256x1024xbf16>, vector<8x1024xf32> -> vector<8x1024xf32>
    %6 = vector.extract_strided_slice %2 {offsets = [0, 128], sizes = [8, 128], strides = [1, 1]} : vector<9x256xbf16> to vector<8x128xbf16>
    %c0_4 = arith.constant 0 : index
    %c0_5 = arith.constant 0 : index
    %7 = vector.load %arg2[%c0_4, %c0_5] : memref<128x1024xbf16, #tpu.memory_space<vmem>>, vector<128x1024xbf16>
    %cst_6 = arith.constant dense<0.000000e+00> : vector<8x1024xf32>
    %8 = tpu.matmul %6, %7, %cst_6 {dimension_numbers = #tpu.dot_dimension_numbers<[1], [0], [0], [1], [0, 0, 1, 1], [], []>} : vector<8x128xbf16>, vector<128x1024xbf16>, vector<8x1024xf32> -> vector<8x1024xf32>
    %9 = arith.addf %5, %8 : vector<8x1024xf32>
    %c0_7 = arith.constant 0 : index
    %c0_8 = arith.constant 0 : index
    %10 = vector.load %arg4[%c0_7, %c0_8] : memref<1x1024xf32, #tpu.memory_space<vmem>>, vector<1x1024xf32>
    %11 = vector.broadcast %10 : vector<1x1024xf32> to vector<8x1024xf32>
    %12 = arith.addf %9, %11 : vector<8x1024xf32>
    %cst_9 = arith.constant 0.000000e+00 : f32
    %13 = vector.broadcast %cst_9 : f32 to vector<8x1024xf32>
    %14 = arith.maximumf %12, %13 : vector<8x1024xf32>
    %cst_10 = arith.constant 0.000000e+00 : f32
    %15 = vector.broadcast %cst_10 : f32 to vector<1x256xf32>
    %c0_11 = arith.constant 0 : index
    %c0_12 = arith.constant 0 : index
    %16 = vector.load %arg14[%c0_11, %c0_12] : memref<9x256xf32, #tpu.memory_space<vmem>>, vector<1x256xf32>
    tpu.vector_store %arg14[%c0_11, %c0_12], %15 {strides = array<i32>} : memref<9x256xf32, #tpu.memory_space<vmem>>, vector<1x256xf32>,
    %17 = vector.extract_strided_slice %14 {offsets = [0, 768], sizes = [8, 256], strides = [1, 1]} : vector<8x1024xf32> to vector<8x256xf32>
    %c1 = arith.constant 1 : index
    %c0_13 = arith.constant 0 : index
    %18 = vector.load %arg14[%c1, %c0_13] : memref<9x256xf32, #tpu.memory_space<vmem>>, vector<8x256xf32>
    tpu.vector_store %arg14[%c1, %c0_13], %17 {strides = array<i32>} : memref<9x256xf32, #tpu.memory_space<vmem>>, vector<8x256xf32>,
    %19 = arith.truncf %14 : vector<8x1024xf32> to vector<8x1024xbf16>
    %c0_14 = arith.constant 0 : index
    %c0_15 = arith.constant 0 : index
    %20 = vector.load %arg6[%c0_14, %c0_15] : memref<1024x512xbf16, #tpu.memory_space<vmem>>, vector<1024x512xbf16>
    %cst_16 = arith.constant dense<0.000000e+00> : vector<8x512xf32>
    %21 = tpu.matmul %19, %20, %cst_16 {dimension_numbers = #tpu.dot_dimension_numbers<[1], [0], [0], [1], [0, 0, 1, 1], [], []>} : vector<8x1024xbf16>, vector<1024x512xbf16>, vector<8x512xf32> -> vector<8x512xf32>
    %c0_17 = arith.constant 0 : index
    %c0_18 = arith.constant 0 : index
    %22 = vector.load %arg14[%c0_17, %c0_18] : memref<9x256xf32, #tpu.memory_space<vmem>>, vector<8x256xf32>
    %23 = arith.truncf %22 : vector<8x256xf32> to vector<8x256xbf16>
    %c0_19 = arith.constant 0 : index
    %c0_20 = arith.constant 0 : index
    %24 = vector.load %arg5[%c0_19, %c0_20] : memref<256x512xbf16, #tpu.memory_space<vmem>>, vector<256x512xbf16>
    %cst_21 = arith.constant dense<0.000000e+00> : vector<8x512xf32>
    %25 = tpu.matmul %23, %24, %cst_21 {dimension_numbers = #tpu.dot_dimension_numbers<[1], [0], [0], [1], [0, 0, 1, 1], [], []>} : vector<8x256xbf16>, vector<256x512xbf16>, vector<8x512xf32> -> vector<8x512xf32>
    %26 = arith.addf %21, %25 : vector<8x512xf32>
    %c0_22 = arith.constant 0 : index
    %c0_23 = arith.constant 0 : index
    %27 = vector.load %arg7[%c0_22, %c0_23] : memref<1x512xf32, #tpu.memory_space<vmem>>, vector<1x512xf32>
    %28 = vector.broadcast %27 : vector<1x512xf32> to vector<8x512xf32>
    %29 = arith.addf %26, %28 : vector<8x512xf32>
    %cst_24 = arith.constant 0.000000e+00 : f32
    %30 = vector.broadcast %cst_24 : f32 to vector<8x512xf32>
    %31 = arith.maximumf %29, %30 : vector<8x512xf32>
    %cst_25 = arith.constant 0.000000e+00 : f32
    %32 = vector.broadcast %cst_25 : f32 to vector<1x256xf32>
    %c0_26 = arith.constant 0 : index
    %c0_27 = arith.constant 0 : index
    %33 = vector.load %arg15[%c0_26, %c0_27] : memref<9x256xf32, #tpu.memory_space<vmem>>, vector<1x256xf32>
    tpu.vector_store %arg15[%c0_26, %c0_27], %32 {strides = array<i32>} : memref<9x256xf32, #tpu.memory_space<vmem>>, vector<1x256xf32>,
    %34 = vector.extract_strided_slice %31 {offsets = [0, 256], sizes = [8, 256], strides = [1, 1]} : vector<8x512xf32> to vector<8x256xf32>
    %c1_28 = arith.constant 1 : index
    %c0_29 = arith.constant 0 : index
    %35 = vector.load %arg15[%c1_28, %c0_29] : memref<9x256xf32, #tpu.memory_space<vmem>>, vector<8x256xf32>
    tpu.vector_store %arg15[%c1_28, %c0_29], %34 {strides = array<i32>} : memref<9x256xf32, #tpu.memory_space<vmem>>, vector<8x256xf32>,
    %36 = arith.truncf %31 : vector<8x512xf32> to vector<8x512xbf16>
    %c0_30 = arith.constant 0 : index
    %c0_31 = arith.constant 0 : index
    %37 = vector.load %arg9[%c0_30, %c0_31] : memref<512x256xbf16, #tpu.memory_space<vmem>>, vector<512x256xbf16>
    %cst_32 = arith.constant dense<0.000000e+00> : vector<8x256xf32>
    %38 = tpu.matmul %36, %37, %cst_32 {dimension_numbers = #tpu.dot_dimension_numbers<[1], [0], [0], [1], [0, 0, 1, 1], [], []>} : vector<8x512xbf16>, vector<512x256xbf16>, vector<8x256xf32> -> vector<8x256xf32>
    %c0_33 = arith.constant 0 : index
    %c0_34 = arith.constant 0 : index
    %39 = vector.load %arg15[%c0_33, %c0_34] : memref<9x256xf32, #tpu.memory_space<vmem>>, vector<8x256xf32>
    %40 = arith.truncf %39 : vector<8x256xf32> to vector<8x256xbf16>
    %c0_35 = arith.constant 0 : index
    %c0_36 = arith.constant 0 : index
    %41 = vector.load %arg8[%c0_35, %c0_36] : memref<256x256xbf16, #tpu.memory_space<vmem>>, vector<256x256xbf16>
    %cst_37 = arith.constant dense<0.000000e+00> : vector<8x256xf32>
    %42 = tpu.matmul %40, %41, %cst_37 {dimension_numbers = #tpu.dot_dimension_numbers<[1], [0], [0], [1], [0, 0, 1, 1], [], []>} : vector<8x256xbf16>, vector<256x256xbf16>, vector<8x256xf32> -> vector<8x256xf32>
    %43 = arith.addf %38, %42 : vector<8x256xf32>
    %c0_38 = arith.constant 0 : index
    %c0_39 = arith.constant 0 : index
    %44 = vector.load %arg10[%c0_38, %c0_39] : memref<1x256xf32, #tpu.memory_space<vmem>>, vector<1x256xf32>
    %45 = vector.broadcast %44 : vector<1x256xf32> to vector<8x256xf32>
    %46 = arith.addf %43, %45 : vector<8x256xf32>
    %cst_40 = arith.constant 0.000000e+00 : f32
    %47 = vector.broadcast %cst_40 : f32 to vector<8x256xf32>
    %48 = arith.maximumf %46, %47 : vector<8x256xf32>
    %c0_41 = arith.constant 0 : index
    %c0_42 = arith.constant 0 : index
    %49 = vector.load %arg12[%c0_41, %c0_42] : memref<1x4xf32, #tpu.memory_space<vmem>>, vector<1x4xf32>
    %50 = vector.extract_strided_slice %48 {offsets = [0, 0], sizes = [1, 256], strides = [1, 1]} : vector<8x256xf32> to vector<1x256xf32>
    %c0_43 = arith.constant 0 : index
    %c0_44 = arith.constant 0 : index
    %c0_45 = arith.constant 0 : index
    %51 = vector.load %arg11[%c0_43, %c0_44, %c0_45] : memref<8x256x4xf32, #tpu.memory_space<vmem>>, vector<1x256x4xf32>
    %52 = vector.shape_cast %51 : vector<1x256x4xf32> to vector<256x4xf32>
    %cst_46 = arith.constant dense<0.000000e+00> : vector<1x4xf32>
    %53 = tpu.matmul %50, %52, %cst_46 {dimension_numbers = #tpu.dot_dimension_numbers<[1], [0], [0], [1], [0, 0, 1, 1], [], []>} : vector<1x256xf32>, vector<256x4xf32>, vector<1x4xf32> -> vector<1x4xf32>
    %54 = arith.addf %49, %53 : vector<1x4xf32>
    %55 = vector.extract_strided_slice %48 {offsets = [1, 0], sizes = [1, 256], strides = [1, 1]} : vector<8x256xf32> to vector<1x256xf32>
    %c1_47 = arith.constant 1 : index
    %c0_48 = arith.constant 0 : index
    %c0_49 = arith.constant 0 : index
    %56 = vector.load %arg11[%c1_47, %c0_48, %c0_49] : memref<8x256x4xf32, #tpu.memory_space<vmem>>, vector<1x256x4xf32>
    %57 = vector.shape_cast %56 : vector<1x256x4xf32> to vector<256x4xf32>
    %cst_50 = arith.constant dense<0.000000e+00> : vector<1x4xf32>
    %58 = tpu.matmul %55, %57, %cst_50 {dimension_numbers = #tpu.dot_dimension_numbers<[1], [0], [0], [1], [0, 0, 1, 1], [], []>} : vector<1x256xf32>, vector<256x4xf32>, vector<1x4xf32> -> vector<1x4xf32>
    %59 = arith.addf %54, %58 : vector<1x4xf32>
    %60 = vector.extract_strided_slice %48 {offsets = [2, 0], sizes = [1, 256], strides = [1, 1]} : vector<8x256xf32> to vector<1x256xf32>
    %c2 = arith.constant 2 : index
    %c0_51 = arith.constant 0 : index
    %c0_52 = arith.constant 0 : index
    %61 = vector.load %arg11[%c2, %c0_51, %c0_52] : memref<8x256x4xf32, #tpu.memory_space<vmem>>, vector<1x256x4xf32>
    %62 = vector.shape_cast %61 : vector<1x256x4xf32> to vector<256x4xf32>
    %cst_53 = arith.constant dense<0.000000e+00> : vector<1x4xf32>
    %63 = tpu.matmul %60, %62, %cst_53 {dimension_numbers = #tpu.dot_dimension_numbers<[1], [0], [0], [1], [0, 0, 1, 1], [], []>} : vector<1x256xf32>, vector<256x4xf32>, vector<1x4xf32> -> vector<1x4xf32>
    %64 = arith.addf %59, %63 : vector<1x4xf32>
    %65 = vector.extract_strided_slice %48 {offsets = [3, 0], sizes = [1, 256], strides = [1, 1]} : vector<8x256xf32> to vector<1x256xf32>
    %c3 = arith.constant 3 : index
    %c0_54 = arith.constant 0 : index
    %c0_55 = arith.constant 0 : index
    %66 = vector.load %arg11[%c3, %c0_54, %c0_55] : memref<8x256x4xf32, #tpu.memory_space<vmem>>, vector<1x256x4xf32>
    %67 = vector.shape_cast %66 : vector<1x256x4xf32> to vector<256x4xf32>
    %cst_56 = arith.constant dense<0.000000e+00> : vector<1x4xf32>
    %68 = tpu.matmul %65, %67, %cst_56 {dimension_numbers = #tpu.dot_dimension_numbers<[1], [0], [0], [1], [0, 0, 1, 1], [], []>} : vector<1x256xf32>, vector<256x4xf32>, vector<1x4xf32> -> vector<1x4xf32>
    %69 = arith.addf %64, %68 : vector<1x4xf32>
    %70 = vector.extract_strided_slice %48 {offsets = [4, 0], sizes = [1, 256], strides = [1, 1]} : vector<8x256xf32> to vector<1x256xf32>
    %c4 = arith.constant 4 : index
    %c0_57 = arith.constant 0 : index
    %c0_58 = arith.constant 0 : index
    %71 = vector.load %arg11[%c4, %c0_57, %c0_58] : memref<8x256x4xf32, #tpu.memory_space<vmem>>, vector<1x256x4xf32>
    %72 = vector.shape_cast %71 : vector<1x256x4xf32> to vector<256x4xf32>
    %cst_59 = arith.constant dense<0.000000e+00> : vector<1x4xf32>
    %73 = tpu.matmul %70, %72, %cst_59 {dimension_numbers = #tpu.dot_dimension_numbers<[1], [0], [0], [1], [0, 0, 1, 1], [], []>} : vector<1x256xf32>, vector<256x4xf32>, vector<1x4xf32> -> vector<1x4xf32>
    %74 = arith.addf %69, %73 : vector<1x4xf32>
    %75 = vector.extract_strided_slice %48 {offsets = [5, 0], sizes = [1, 256], strides = [1, 1]} : vector<8x256xf32> to vector<1x256xf32>
    %c5 = arith.constant 5 : index
    %c0_60 = arith.constant 0 : index
    %c0_61 = arith.constant 0 : index
    %76 = vector.load %arg11[%c5, %c0_60, %c0_61] : memref<8x256x4xf32, #tpu.memory_space<vmem>>, vector<1x256x4xf32>
    %77 = vector.shape_cast %76 : vector<1x256x4xf32> to vector<256x4xf32>
    %cst_62 = arith.constant dense<0.000000e+00> : vector<1x4xf32>
    %78 = tpu.matmul %75, %77, %cst_62 {dimension_numbers = #tpu.dot_dimension_numbers<[1], [0], [0], [1], [0, 0, 1, 1], [], []>} : vector<1x256xf32>, vector<256x4xf32>, vector<1x4xf32> -> vector<1x4xf32>
    %79 = arith.addf %74, %78 : vector<1x4xf32>
    %80 = vector.extract_strided_slice %48 {offsets = [6, 0], sizes = [1, 256], strides = [1, 1]} : vector<8x256xf32> to vector<1x256xf32>
    %c6 = arith.constant 6 : index
    %c0_63 = arith.constant 0 : index
    %c0_64 = arith.constant 0 : index
    %81 = vector.load %arg11[%c6, %c0_63, %c0_64] : memref<8x256x4xf32, #tpu.memory_space<vmem>>, vector<1x256x4xf32>
    %82 = vector.shape_cast %81 : vector<1x256x4xf32> to vector<256x4xf32>
    %cst_65 = arith.constant dense<0.000000e+00> : vector<1x4xf32>
    %83 = tpu.matmul %80, %82, %cst_65 {dimension_numbers = #tpu.dot_dimension_numbers<[1], [0], [0], [1], [0, 0, 1, 1], [], []>} : vector<1x256xf32>, vector<256x4xf32>, vector<1x4xf32> -> vector<1x4xf32>
    %84 = arith.addf %79, %83 : vector<1x4xf32>
    %85 = vector.extract_strided_slice %48 {offsets = [7, 0], sizes = [1, 256], strides = [1, 1]} : vector<8x256xf32> to vector<1x256xf32>
    %c7 = arith.constant 7 : index
    %c0_66 = arith.constant 0 : index
    %c0_67 = arith.constant 0 : index
    %86 = vector.load %arg11[%c7, %c0_66, %c0_67] : memref<8x256x4xf32, #tpu.memory_space<vmem>>, vector<1x256x4xf32>
    %87 = vector.shape_cast %86 : vector<1x256x4xf32> to vector<256x4xf32>
    %cst_68 = arith.constant dense<0.000000e+00> : vector<1x4xf32>
    %88 = tpu.matmul %85, %87, %cst_68 {dimension_numbers = #tpu.dot_dimension_numbers<[1], [0], [0], [1], [0, 0, 1, 1], [], []>} : vector<1x256xf32>, vector<256x4xf32>, vector<1x4xf32> -> vector<1x4xf32>
    %89 = arith.addf %84, %88 : vector<1x4xf32>
    %c0_69 = arith.constant 0 : index
    %c0_70 = arith.constant 0 : index
    %c0_71 = arith.constant 0 : index
    %90 = vector.load %arg13[%c0_69, %c0_70, %c0_71] : memref<1x1x4xf32, #tpu.memory_space<vmem>>, vector<1x1x4xf32>
    %91 = vector.shape_cast %90 : vector<1x1x4xf32> to vector<1x4xf32>
    %92 = vector.shape_cast %89 : vector<1x4xf32> to vector<1x1x4xf32>
    tpu.vector_store %arg13[%c0_69, %c0_70, %c0_71], %92 {strides = array<i32>} : memref<1x1x4xf32, #tpu.memory_space<vmem>>, vector<1x1x4xf32>,
    return
  }
  func.func @transform_0(%arg0: i32) -> (i32, i32, i32) {
    %c0_i32 = arith.constant 0 : i32
    %c0_i32_0 = arith.constant 0 : i32
    %c0_i32_1 = arith.constant 0 : i32
    return %arg0, %c0_i32, %c0_i32_0 : i32, i32, i32
  }
  func.func @transform_1(%arg0: i32) -> (i32, i32) {
    %c0_i32 = arith.constant 0 : i32
    %c0_i32_0 = arith.constant 0 : i32
    %c0_i32_1 = arith.constant 0 : i32
    return %c0_i32, %c0_i32_0 : i32, i32
  }
  func.func @transform_2(%arg0: i32) -> (i32, i32) {
    %c0_i32 = arith.constant 0 : i32
    %c0_i32_0 = arith.constant 0 : i32
    %c0_i32_1 = arith.constant 0 : i32
    return %c0_i32, %c0_i32_0 : i32, i32
  }
  func.func @transform_3(%arg0: i32) -> (i32, i32) {
    %c0_i32 = arith.constant 0 : i32
    %c0_i32_0 = arith.constant 0 : i32
    %c0_i32_1 = arith.constant 0 : i32
    return %c0_i32, %c0_i32_0 : i32, i32
  }
  func.func @transform_4(%arg0: i32) -> (i32, i32) {
    %c0_i32 = arith.constant 0 : i32
    %c0_i32_0 = arith.constant 0 : i32
    %c0_i32_1 = arith.constant 0 : i32
    return %c0_i32, %c0_i32_0 : i32, i32
  }
  func.func @transform_5(%arg0: i32) -> (i32, i32) {
    %c0_i32 = arith.constant 0 : i32
    %c0_i32_0 = arith.constant 0 : i32
    %c0_i32_1 = arith.constant 0 : i32
    return %c0_i32, %c0_i32_0 : i32, i32
  }
  func.func @transform_6(%arg0: i32) -> (i32, i32) {
    %c0_i32 = arith.constant 0 : i32
    %c0_i32_0 = arith.constant 0 : i32
    %c0_i32_1 = arith.constant 0 : i32
    return %c0_i32, %c0_i32_0 : i32, i32
  }
  func.func @transform_7(%arg0: i32) -> (i32, i32) {
    %c0_i32 = arith.constant 0 : i32
    %c0_i32_0 = arith.constant 0 : i32
    %c0_i32_1 = arith.constant 0 : i32
    return %c0_i32, %c0_i32_0 : i32, i32
  }
  func.func @transform_8(%arg0: i32) -> (i32, i32) {
    %c0_i32 = arith.constant 0 : i32
    %c0_i32_0 = arith.constant 0 : i32
    %c0_i32_1 = arith.constant 0 : i32
    return %c0_i32, %c0_i32_0 : i32, i32
  }
  func.func @transform_9(%arg0: i32) -> (i32, i32) {
    %c0_i32 = arith.constant 0 : i32
    %c0_i32_0 = arith.constant 0 : i32
    %c0_i32_1 = arith.constant 0 : i32
    return %c0_i32, %c0_i32_0 : i32, i32
  }
  func.func @transform_10(%arg0: i32) -> (i32, i32, i32) {
    %c0_i32 = arith.constant 0 : i32
    %c0_i32_0 = arith.constant 0 : i32
    %c0_i32_1 = arith.constant 0 : i32
    %c0_i32_2 = arith.constant 0 : i32
    return %c0_i32, %c0_i32_0, %c0_i32_1 : i32, i32, i32
  }
  func.func @transform_11(%arg0: i32) -> (i32, i32) {
    %c0_i32 = arith.constant 0 : i32
    %c0_i32_0 = arith.constant 0 : i32
    %c0_i32_1 = arith.constant 0 : i32
    return %c0_i32, %c0_i32_0 : i32, i32
  }
  func.func @transform_12(%arg0: i32) -> (i32, i32, i32) {
    %c0_i32 = arith.constant 0 : i32
    %c0_i32_0 = arith.constant 0 : i32
    %c0_i32_1 = arith.constant 0 : i32
    return %arg0, %c0_i32, %c0_i32_0 : i32, i32, i32
  }
}

</mosaic_0001>

<llo_original>
// kernel: simple_conv_net_forward.1
$region0: #{simple_conv_net_forward.1}
  #allocation0 [shape = 'u32[]', space=smem, size = 0x4, offset = 0x4, fixed_abs, tag = 'smem constant byte address 0x4 - core index']
  #allocation1 [shape = 'u32[144,128]{1,0:T(1,128)}', space=vmem, size = 0x12000, scoped, tag = 'internal scratch']
  #allocation2 [shape = 'f32[9,256]{1,0:T(8,128)}', space=vmem, size = 0x4000, scoped, tag = 'scratch operand']
  #allocation3 [shape = 'f32[9,256]{1,0:T(8,128)}', space=vmem, size = 0x4000, scoped, tag = 'scratch operand']
  %s0 = inlined_call_operand.vmem [shape: f32[2,9,256], index: 0, kind: input, shape index: {}]
  %s1 = inlined_call_operand.vmem [shape: bf16[128,1024], index: 1, kind: input, shape index: {}]
  %s2 = inlined_call_operand.hbm [shape: bf16[256,1024], index: 2, kind: input, shape index: {}]
  %s3 = inlined_call_operand.vmem [shape: f32[1,1024], index: 3, kind: input, shape index: {}]
  %s4 = inlined_call_operand.hbm [shape: bf16[256,512], index: 4, kind: input, shape index: {}]
  %s5 = inlined_call_operand.vmem [shape: bf16[1024,512], index: 5, kind: input, shape index: {}]
  %s6 = inlined_call_operand.vmem [shape: f32[1,512], index: 6, kind: input, shape index: {}]
  %s7 = inlined_call_operand.hbm [shape: bf16[256,256], index: 7, kind: input, shape index: {}]
  %s8 = inlined_call_operand.hbm [shape: bf16[512,256], index: 8, kind: input, shape index: {}]
  %s9 = inlined_call_operand.vmem [shape: f32[1,256], index: 9, kind: input, shape index: {}]
  %s10 = inlined_call_operand.vmem [shape: f32[8,256,4], index: 10, kind: input, shape index: {}]
  %s11 = inlined_call_operand.vmem [shape: f32[1,4], index: 11, kind: input, shape index: {}]
  %s12 = inlined_call_operand.hbm [shape: f32[2,1,4], index: 12, kind: output, shape index: {}]
  %s13 = sld [smem:[#allocation0]]
  $region97: #{simple_conv_net_forward.1} parent=0
    _
  %s15 = ssub.s32 1, %s13
  %s16 = scalar_select 0, %s15, %s13
  $region1: #{simple_conv_net_forward.1} parent=0
    #allocation4 [shape = 'u8[524288]{0}', space=vmem, size = 0x80000, scoped, tag = 'input window, operand 2, single buffered']
    #allocation5 [shape = 's32[2]{0}', space=sflag, size = 0x8, scoped, tag = 'scoped memory for simple_conv_net_forward.1']
    #allocation6 [shape = 's32[2]{0}', space=sflag, size = 0x8, scoped, tag = 'scoped memory for simple_conv_net_forward.1']
    #allocation7 [shape = 'u8[262144]{0}', space=vmem, size = 0x40000, scoped, tag = 'input window, operand 4, single buffered']
    #allocation8 [shape = 's32[1]{0}', space=sflag, size = 0x4, scoped, tag = 'scoped memory for simple_conv_net_forward.1']
    #allocation9 [shape = 'u8[131072]{0}', space=vmem, size = 0x20000, scoped, tag = 'input window, operand 7, single buffered']
    #allocation10 [shape = 'u8[262144]{0}', space=vmem, size = 0x40000, scoped, tag = 'input window, operand 8, single buffered']
    #allocation11 [shape = 's32[1]{0}', space=sflag, size = 0x4, scoped, tag = 'scoped memory for simple_conv_net_forward.1']
    #allocation12 [shape = 'u8[1024]{0}', space=vmem, size = 0x400, scoped, tag = 'output window, operand 0']
    %17 = vsyncpa [#allocation5], 0
    %18 = vsyncpa [#allocation8], 0
    %19 = vsyncpa [#allocation11], 0
    %20 = vsyncpa [#allocation6], 0
    %s21 = scalar_lea.sflag [#allocation6], 1
    %22 = vsyncpa %s21, 0
    loop: start=0, step=1, limit=4
    $region2: #{simple_conv_net_forward.1} parent=1 // loop_pre_header
      _
    $region3: #{simple_conv_net_forward.1} parent=1 // loop_header
      %s24 = sphi 0, %s28
      %p25 = scmp.ge.s32.totalorder %s24, 4
      %s34 = sphi 0, %s36
      %s37 = sphi 0, %s34
      %s38 = sphi 0, %s37
      %s54 = sphi 0, %s38
      %s58 = sphi 0, %s58
      %s60 = sphi 0, %s58
      %s61 = sphi 0, %s60
      %s75 = sphi 0, %s61
      %s79 = sphi 0, %s79
      %s81 = sphi 0, %s79
      %s82 = sphi 0, %s81
      %s96 = sphi 0, %s82
      %s100 = sphi 0, %s100
      %s102 = sphi 0, %s100
      %s103 = sphi 0, %s102
      %s117 = sphi 0, %s103
      %s121 = sphi 0, %s121
      %s123 = sphi 0, %s121
      %s124 = sphi 0, %s123
      %s138 = sphi 0, %s124
      %s142 = sphi 0, %s142
      %s144 = sphi 0, %s142
      %s145 = sphi 0, %s144
      %s159 = sphi 0, %s145
      %s163 = sphi 0, %s163
      %s165 = sphi 0, %s163
      %s166 = sphi 0, %s165
      %s180 = sphi 0, %s166
      %s184 = sphi 0, %s184
      %s186 = sphi 0, %s184
      %s187 = sphi 0, %s186
      %s201 = sphi 0, %s187
      %s205 = sphi 0, %s205
      %s207 = sphi 0, %s205
      %s208 = sphi 0, %s207
      %s222 = sphi 0, %s208
      %s226 = sphi 0, %s226
      %s228 = sphi 0, %s226
      %s229 = sphi 0, %s228
      %s243 = sphi 0, %s229
      %s247 = sphi 0, %s247
      %s249 = sphi 0, %s247
      %s250 = sphi 0, %s249
      %s264 = sphi 0, %s250
      %s268 = sphi 0, %s268
      %s270 = sphi 0, %s268
      %s271 = sphi 0, %s270
      %s285 = sphi 0, %s271
      %s291 = sphi 0, %s293
      %s294 = sphi 0, %s291
      %s295 = sphi 0, %s294
      %s311 = sphi 0, %s295
    $region4: #{simple_conv_net_forward.1} parent=1 // loop_header_branch
      %27 = sbr.rel (%p25) target = $region8
    $region5: #{simple_conv_net_forward.1} parent=1 // loop_body
      %s29 = ssub.s32 %s24, 1
      %s30 = ssub.s32 %s24, 2
      %s31 = sadd.s32 %s24, 1
      %s32 = ssub.s32 %s24, %s31
      %p33 = scmp.eq.s32.totalorder %s32, 0
      %s35 = sadd.s32 %s34, 1
      %s36 = scalar_select %p33, %s34, %s35
      %p39 = pneg %p33
      %p40 = scmp.eq.s32.totalorder %s24, 1
      %p41 = por %p39, %p40
      %p42 = scmp.ne.s32.totalorder %s34, %s37
      %p43 = scmp.eq.s32.totalorder %s24, 0
      %p44 = por %p42, %p43
      %p45 = scmp.ne.s32.totalorder %s34, %s37
      %p46 = scmp.eq.s32.totalorder %s29, 1
      %p47 = por %p45, %p46
      %p48 = scmp.ne.s32.totalorder %s37, %s38
      %p49 = scmp.eq.s32.totalorder %s29, 0
      %p50 = por %p48, %p49
      %p51 = scmp.ne.s32.totalorder %s37, %s38
      %p52 = scmp.eq.s32.totalorder %s30, 1
      %p53 = por %p51, %p52
      %p55 = scmp.ne.s32.totalorder %s38, %s54
      %p56 = scmp.eq.s32.totalorder %s30, 0
      %p57 = por %p55, %p56
      %s59 = sadd.s32 %s58, 1
      %p62 = scmp.eq.s32.totalorder %s24, 1
      %p63 = scmp.ne.s32.totalorder %s58, %s60
      %p64 = scmp.eq.s32.totalorder %s24, 0
      %p65 = por %p63, %p64
      %p66 = scmp.ne.s32.totalorder %s58, %s60
      %p67 = scmp.eq.s32.totalorder %s29, 1
      %p68 = por %p66, %p67
      %p69 = scmp.ne.s32.totalorder %s60, %s61
      %p70 = scmp.eq.s32.totalorder %s29, 0
      %p71 = por %p69, %p70
      %p72 = scmp.ne.s32.totalorder %s60, %s61
      %p73 = scmp.eq.s32.totalorder %s30, 1
      %p74 = por %p72, %p73
      %p76 = scmp.ne.s32.totalorder %s61, %s75
      %p77 = scmp.eq.s32.totalorder %s30, 0
      %p78 = por %p76, %p77
      %s80 = sadd.s32 %s79, 1
      %p83 = scmp.eq.s32.totalorder %s24, 1
      %p84 = scmp.ne.s32.totalorder %s79, %s81
      %p85 = scmp.eq.s32.totalorder %s24, 0
      %p86 = por %p84, %p85
      %p87 = scmp.ne.s32.totalorder %s79, %s81
      %p88 = scmp.eq.s32.totalorder %s29, 1
      %p89 = por %p87, %p88
      %p90 = scmp.ne.s32.totalorder %s81, %s82
      %p91 = scmp.eq.s32.totalorder %s29, 0
      %p92 = por %p90, %p91
      %p93 = scmp.ne.s32.totalorder %s81, %s82
      %p94 = scmp.eq.s32.totalorder %s30, 1
      %p95 = por %p93, %p94
      %p97 = scmp.ne.s32.totalorder %s82, %s96
      %p98 = scmp.eq.s32.totalorder %s30, 0
      %p99 = por %p97, %p98
      %s101 = sadd.s32 %s100, 1
      %p104 = scmp.eq.s32.totalorder %s24, 1
      %p105 = scmp.ne.s32.totalorder %s100, %s102
      %p106 = scmp.eq.s32.totalorder %s24, 0
      %p107 = por %p105, %p106
      %p108 = scmp.ne.s32.totalorder %s100, %s102
      %p109 = scmp.eq.s32.totalorder %s29, 1
      %p110 = por %p108, %p109
      %p111 = scmp.ne.s32.totalorder %s102, %s103
      %p112 = scmp.eq.s32.totalorder %s29, 0
      %p113 = por %p111, %p112
      %p114 = scmp.ne.s32.totalorder %s102, %s103
      %p115 = scmp.eq.s32.totalorder %s30, 1
      %p116 = por %p114, %p115
      %p118 = scmp.ne.s32.totalorder %s103, %s117
      %p119 = scmp.eq.s32.totalorder %s30, 0
      %p120 = por %p118, %p119
      %s122 = sadd.s32 %s121, 1
      %p125 = scmp.eq.s32.totalorder %s24, 1
      %p126 = scmp.ne.s32.totalorder %s121, %s123
      %p127 = scmp.eq.s32.totalorder %s24, 0
      %p128 = por %p126, %p127
      %p129 = scmp.ne.s32.totalorder %s121, %s123
      %p130 = scmp.eq.s32.totalorder %s29, 1
      %p131 = por %p129, %p130
      %p132 = scmp.ne.s32.totalorder %s123, %s124
      %p133 = scmp.eq.s32.totalorder %s29, 0
      %p134 = por %p132, %p133
      %p135 = scmp.ne.s32.totalorder %s123, %s124
      %p136 = scmp.eq.s32.totalorder %s30, 1
      %p137 = por %p135, %p136
      %p139 = scmp.ne.s32.totalorder %s124, %s138
      %p140 = scmp.eq.s32.totalorder %s30, 0
      %p141 = por %p139, %p140
      %s143 = sadd.s32 %s142, 1
      %p146 = scmp.eq.s32.totalorder %s24, 1
      %p147 = scmp.ne.s32.totalorder %s142, %s144
      %p148 = scmp.eq.s32.totalorder %s24, 0
      %p149 = por %p147, %p148
      %p150 = scmp.ne.s32.totalorder %s142, %s144
      %p151 = scmp.eq.s32.totalorder %s29, 1
      %p152 = por %p150, %p151
      %p153 = scmp.ne.s32.totalorder %s144, %s145
      %p154 = scmp.eq.s32.totalorder %s29, 0
      %p155 = por %p153, %p154
      %p156 = scmp.ne.s32.totalorder %s144, %s145
      %p157 = scmp.eq.s32.totalorder %s30, 1
      %p158 = por %p156, %p157
      %p160 = scmp.ne.s32.totalorder %s145, %s159
      %p161 = scmp.eq.s32.totalorder %s30, 0
      %p162 = por %p160, %p161
      %s164 = sadd.s32 %s163, 1
      %p167 = scmp.eq.s32.totalorder %s24, 1
      %p168 = scmp.ne.s32.totalorder %s163, %s165
      %p169 = scmp.eq.s32.totalorder %s24, 0
      %p170 = por %p168, %p169
      %p171 = scmp.ne.s32.totalorder %s163, %s165
      %p172 = scmp.eq.s32.totalorder %s29, 1
      %p173 = por %p171, %p172
      %p174 = scmp.ne.s32.totalorder %s165, %s166
      %p175 = scmp.eq.s32.totalorder %s29, 0
      %p176 = por %p174, %p175
      %p177 = scmp.ne.s32.totalorder %s165, %s166
      %p178 = scmp.eq.s32.totalorder %s30, 1
      %p179 = por %p177, %p178
      %p181 = scmp.ne.s32.totalorder %s166, %s180
      %p182 = scmp.eq.s32.totalorder %s30, 0
      %p183 = por %p181, %p182
      %s185 = sadd.s32 %s184, 1
      %p188 = scmp.eq.s32.totalorder %s24, 1
      %p189 = scmp.ne.s32.totalorder %s184, %s186
      %p190 = scmp.eq.s32.totalorder %s24, 0
      %p191 = por %p189, %p190
      %p192 = scmp.ne.s32.totalorder %s184, %s186
      %p193 = scmp.eq.s32.totalorder %s29, 1
      %p194 = por %p192, %p193
      %p195 = scmp.ne.s32.totalorder %s186, %s187
      %p196 = scmp.eq.s32.totalorder %s29, 0
      %p197 = por %p195, %p196
      %p198 = scmp.ne.s32.totalorder %s186, %s187
      %p199 = scmp.eq.s32.totalorder %s30, 1
      %p200 = por %p198, %p199
      %p202 = scmp.ne.s32.totalorder %s187, %s201
      %p203 = scmp.eq.s32.totalorder %s30, 0
      %p204 = por %p202, %p203
      %s206 = sadd.s32 %s205, 1
      %p209 = scmp.eq.s32.totalorder %s24, 1
      %p210 = scmp.ne.s32.totalorder %s205, %s207
      %p211 = scmp.eq.s32.totalorder %s24, 0
      %p212 = por %p210, %p211
      %p213 = scmp.ne.s32.totalorder %s205, %s207
      %p214 = scmp.eq.s32.totalorder %s29, 1
      %p215 = por %p213, %p214
      %p216 = scmp.ne.s32.totalorder %s207, %s208
      %p217 = scmp.eq.s32.totalorder %s29, 0
      %p218 = por %p216, %p217
      %p219 = scmp.ne.s32.totalorder %s207, %s208
      %p220 = scmp.eq.s32.totalorder %s30, 1
      %p221 = por %p219, %p220
      %p223 = scmp.ne.s32.totalorder %s208, %s222
      %p224 = scmp.eq.s32.totalorder %s30, 0
      %p225 = por %p223, %p224
      %s227 = sadd.s32 %s226, 1
      %p230 = scmp.eq.s32.totalorder %s24, 1
      %p231 = scmp.ne.s32.totalorder %s226, %s228
      %p232 = scmp.eq.s32.totalorder %s24, 0
      %p233 = por %p231, %p232
      %p234 = scmp.ne.s32.totalorder %s226, %s228
      %p235 = scmp.eq.s32.totalorder %s29, 1
      %p236 = por %p234, %p235
      %p237 = scmp.ne.s32.totalorder %s228, %s229
      %p238 = scmp.eq.s32.totalorder %s29, 0
      %p239 = por %p237, %p238
      %p240 = scmp.ne.s32.totalorder %s228, %s229
      %p241 = scmp.eq.s32.totalorder %s30, 1
      %p242 = por %p240, %p241
      %p244 = scmp.ne.s32.totalorder %s229, %s243
      %p245 = scmp.eq.s32.totalorder %s30, 0
      %p246 = por %p244, %p245
      %s248 = sadd.s32 %s247, 1
      %p251 = scmp.eq.s32.totalorder %s24, 1
      %p252 = scmp.ne.s32.totalorder %s247, %s249
      %p253 = scmp.eq.s32.totalorder %s24, 0
      %p254 = por %p252, %p253
      %p255 = scmp.ne.s32.totalorder %s247, %s249
      %p256 = scmp.eq.s32.totalorder %s29, 1
      %p257 = por %p255, %p256
      %p258 = scmp.ne.s32.totalorder %s249, %s250
      %p259 = scmp.eq.s32.totalorder %s29, 0
      %p260 = por %p258, %p259
      %p261 = scmp.ne.s32.totalorder %s249, %s250
      %p262 = scmp.eq.s32.totalorder %s30, 1
      %p263 = por %p261, %p262
      %p265 = scmp.ne.s32.totalorder %s250, %s264
      %p266 = scmp.eq.s32.totalorder %s30, 0
      %p267 = por %p265, %p266
      %s269 = sadd.s32 %s268, 1
      %p272 = scmp.eq.s32.totalorder %s24, 1
      %p273 = scmp.ne.s32.totalorder %s268, %s270
      %p274 = scmp.eq.s32.totalorder %s24, 0
      %p275 = por %p273, %p274
      %p276 = scmp.ne.s32.totalorder %s268, %s270
      %p277 = scmp.eq.s32.totalorder %s29, 1
      %p278 = por %p276, %p277
      %p279 = scmp.ne.s32.totalorder %s270, %s271
      %p280 = scmp.eq.s32.totalorder %s29, 0
      %p281 = por %p279, %p280
      %p282 = scmp.ne.s32.totalorder %s270, %s271
      %p283 = scmp.eq.s32.totalorder %s30, 1
      %p284 = por %p282, %p283
      %p286 = scmp.ne.s32.totalorder %s271, %s285
      %p287 = scmp.eq.s32.totalorder %s30, 0
      %p288 = por %p286, %p287
      %s289 = ssub.s32 %s24, %s31
      %p290 = scmp.eq.s32.totalorder %s289, 0
      %s292 = sadd.s32 %s291, 1
      %s293 = scalar_select %p290, %s291, %s292
      %p296 = pneg %p290
      %p297 = scmp.eq.s32.totalorder %s24, 1
      %p298 = por %p296, %p297
      %p299 = scmp.ne.s32.totalorder %s291, %s294
      %p300 = scmp.eq.s32.totalorder %s24, 0
      %p301 = por %p299, %p300
      %p302 = scmp.ne.s32.totalorder %s291, %s294
      %p303 = scmp.eq.s32.totalorder %s29, 1
      %p304 = por %p302, %p303
      %p305 = scmp.ne.s32.totalorder %s294, %s295
      %p306 = scmp.eq.s32.totalorder %s29, 0
      %p307 = por %p305, %p306
      %p308 = scmp.ne.s32.totalorder %s294, %s295
      %p309 = scmp.eq.s32.totalorder %s30, 1
      %p310 = por %p308, %p309
      %p312 = scmp.ne.s32.totalorder %s295, %s311
      %p313 = scmp.eq.s32.totalorder %s30, 0
      %p314 = por %p312, %p313
      %p315 = scmp.le.s32.totalorder 1, %s24
      %p316 = scmp.lt.s32.totalorder %s24, 3
      %p317 = pnand %p315, %p316
      %p318 = pneg %p317
      // Predicated region
      $region9: #{simple_conv_net_forward.1} parent=5 // pred_check
        _
      $region10: #{simple_conv_net_forward.1} parent=5 // pred_check_branch
        %320 = sbr.rel (%p317) target = $region12
      $region11: #{simple_conv_net_forward.1} parent=5 // pred_region
        %s321 = ssub.s32 %s24, 1
        // Predicated region
        $region13: #{simple_conv_net_forward.1} parent=11 // pred_check
          %p322 = pneg %p71
        $region14: #{simple_conv_net_forward.1} parent=11 // pred_check_branch
          %324 = sbr.rel (%p322) target = $region16
        $region15: #{simple_conv_net_forward.1} parent=11 // pred_region
          _
        $region16: #{simple_conv_net_forward.1} parent=11 // pred_fallthru
          _
        // Predicated region
        $region17: #{simple_conv_net_forward.1} parent=11 // pred_check
          %p325 = pneg %p92
        $region18: #{simple_conv_net_forward.1} parent=11 // pred_check_branch
          %327 = sbr.rel (%p325) target = $region20
        $region19: #{simple_conv_net_forward.1} parent=11 // pred_region
          %s329 = ssub.s32 16384, 16384
          %330 = vsyncadd [#allocation5], %s329
          %s331 = sshll.u32 [#allocation4], 4
          %s332 = int_to_ptr.vmem [resolvable:$true] %s331
          %337 = dma.hbm_to_vmem [thread:$0]  %s2, 16384, %s332, [#allocation5], 512, 512, 32
        $region20: #{simple_conv_net_forward.1} parent=11 // pred_fallthru
          _
        // Predicated region
        $region21: #{simple_conv_net_forward.1} parent=11 // pred_check
          %p338 = pneg %p113
        $region22: #{simple_conv_net_forward.1} parent=11 // pred_check_branch
          %340 = sbr.rel (%p338) target = $region24
        $region23: #{simple_conv_net_forward.1} parent=11 // pred_region
          _
        $region24: #{simple_conv_net_forward.1} parent=11 // pred_fallthru
          _
        // Predicated region
        $region25: #{simple_conv_net_forward.1} parent=11 // pred_check
          %p341 = pneg %p134
        $region26: #{simple_conv_net_forward.1} parent=11 // pred_check_branch
          %343 = sbr.rel (%p341) target = $region28
        $region27: #{simple_conv_net_forward.1} parent=11 // pred_region
          %s345 = ssub.s32 8192, 8192
          %346 = vsyncadd [#allocation8], %s345
          %s347 = sshll.u32 [#allocation7], 4
          %s348 = int_to_ptr.vmem [resolvable:$true] %s347
          %353 = dma.hbm_to_vmem [thread:$0]  %s4, 8192, %s348, [#allocation8], 256, 256, 16
        $region28: #{simple_conv_net_forward.1} parent=11 // pred_fallthru
          _
        // Predicated region
        $region29: #{simple_conv_net_forward.1} parent=11 // pred_check
          %p354 = pneg %p155
        $region30: #{simple_conv_net_forward.1} parent=11 // pred_check_branch
          %356 = sbr.rel (%p354) target = $region32
        $region31: #{simple_conv_net_forward.1} parent=11 // pred_region
          _
        $region32: #{simple_conv_net_forward.1} parent=11 // pred_fallthru
          _
        // Predicated region
        $region33: #{simple_conv_net_forward.1} parent=11 // pred_check
          %p357 = pneg %p176
        $region34: #{simple_conv_net_forward.1} parent=11 // pred_check_branch
          %359 = sbr.rel (%p357) target = $region36
        $region35: #{simple_conv_net_forward.1} parent=11 // pred_region
          _
        $region36: #{simple_conv_net_forward.1} parent=11 // pred_fallthru
          _
        // Predicated region
        $region37: #{simple_conv_net_forward.1} parent=11 // pred_check
          %p360 = pneg %p197
        $region38: #{simple_conv_net_forward.1} parent=11 // pred_check_branch
          %362 = sbr.rel (%p360) target = $region40
        $region39: #{simple_conv_net_forward.1} parent=11 // pred_region
          %s364 = ssub.s32 4096, 4096
          %365 = vsyncadd [#allocation8], %s364
          %s366 = sshll.u32 [#allocation9], 4
          %s367 = int_to_ptr.vmem [resolvable:$true] %s366
          %372 = dma.hbm_to_vmem [thread:$0]  %s7, 4096, %s367, [#allocation8], 128, 128, 8
        $region40: #{simple_conv_net_forward.1} parent=11 // pred_fallthru
          _
        // Predicated region
        $region41: #{simple_conv_net_forward.1} parent=11 // pred_check
          %p373 = pneg %p218
        $region42: #{simple_conv_net_forward.1} parent=11 // pred_check_branch
          %375 = sbr.rel (%p373) target = $region44
        $region43: #{simple_conv_net_forward.1} parent=11 // pred_region
          %s377 = ssub.s32 8192, 8192
          %378 = vsyncadd [#allocation11], %s377
          %s379 = sshll.u32 [#allocation10], 4
          %s380 = int_to_ptr.vmem [resolvable:$true] %s379
          %385 = dma.hbm_to_vmem [thread:$0]  %s8, 8192, %s380, [#allocation11], 128, 128, 8
        $region44: #{simple_conv_net_forward.1} parent=11 // pred_fallthru
          _
        // Predicated region
        $region45: #{simple_conv_net_forward.1} parent=11 // pred_check
          %p386 = pneg %p239
        $region46: #{simple_conv_net_forward.1} parent=11 // pred_check_branch
          %388 = sbr.rel (%p386) target = $region48
        $region47: #{simple_conv_net_forward.1} parent=11 // pred_region
          _
        $region48: #{simple_conv_net_forward.1} parent=11 // pred_fallthru
          _
        // Predicated region
        $region49: #{simple_conv_net_forward.1} parent=11 // pred_check
          %p389 = pneg %p260
        $region50: #{simple_conv_net_forward.1} parent=11 // pred_check_branch
          %391 = sbr.rel (%p389) target = $region52
        $region51: #{simple_conv_net_forward.1} parent=11 // pred_region
          _
        $region52: #{simple_conv_net_forward.1} parent=11 // pred_fallthru
          _
        // Predicated region
        $region53: #{simple_conv_net_forward.1} parent=11 // pred_check
          %p392 = pneg %p281
        $region54: #{simple_conv_net_forward.1} parent=11 // pred_check_branch
          %394 = sbr.rel (%p392) target = $region56
        $region55: #{simple_conv_net_forward.1} parent=11 // pred_region
          _
        $region56: #{simple_conv_net_forward.1} parent=11 // pred_fallthru
          _
      $region12: #{simple_conv_net_forward.1} parent=5 // pred_fallthru
        _
      %p395 = scmp.lt.s32.totalorder %s24, 2
      // Predicated region
      $region57: #{simple_conv_net_forward.1} parent=5 // pred_check
        %p396 = pneg %p395
      $region58: #{simple_conv_net_forward.1} parent=5 // pred_check_branch
        %398 = sbr.rel (%p396) target = $region60
      $region59: #{simple_conv_net_forward.1} parent=5 // pred_region
        // Predicated region
        $region61: #{simple_conv_net_forward.1} parent=59 // pred_check
          %p399 = pneg %p44
        $region62: #{simple_conv_net_forward.1} parent=59 // pred_check_branch
          %401 = sbr.rel (%p399) target = $region64
        $region63: #{simple_conv_net_forward.1} parent=59 // pred_region
          %p402 = scmp.lt.s32.totalorder %s24, 1
          %s403 = scalar_select %p402, %s24, 1
          %s404 = smul.addr %s403, 4
          %s405 = smul.addr %s404, 8
          %s406 = scalar_lea.vmem %s0, %s405
        $region64: #{simple_conv_net_forward.1} parent=59 // pred_fallthru
          _
      $region60: #{simple_conv_net_forward.1} parent=5 // pred_fallthru
        _
      %p407 = scmp.le.s32.totalorder 1, %s24
      %p408 = scmp.lt.s32.totalorder %s24, 3
      %p409 = pnand %p407, %p408
      %p410 = pneg %p409
      // Predicated region
      $region65: #{simple_conv_net_forward.1} parent=5 // pred_check
        _
      $region66: #{simple_conv_net_forward.1} parent=5 // pred_check_branch
        %412 = sbr.rel (%p409) target = $region68
      $region67: #{simple_conv_net_forward.1} parent=5 // pred_region
        %s413 = ssub.s32 %s24, 1
        // Predicated region
        $region69: #{simple_conv_net_forward.1} parent=67 // pred_check
          %p414 = pneg %p92
        $region70: #{simple_conv_net_forward.1} parent=67 // pred_check_branch
          %416 = sbr.rel (%p414) target = $region72
        $region71: #{simple_conv_net_forward.1} parent=67 // pred_region
          %417 = dma.done [#allocation5], 16384
        $region72: #{simple_conv_net_forward.1} parent=67 // pred_fallthru
          _
        // Predicated region
        $region73: #{simple_conv_net_forward.1} parent=67 // pred_check
          %p418 = pneg %p134
        $region74: #{simple_conv_net_forward.1} parent=67 // pred_check_branch
          %420 = sbr.rel (%p418) target = $region76
        $region75: #{simple_conv_net_forward.1} parent=67 // pred_region
          %421 = dma.done [#allocation8], 8192
        $region76: #{simple_conv_net_forward.1} parent=67 // pred_fallthru
          _
        // Predicated region
        $region77: #{simple_conv_net_forward.1} parent=67 // pred_check
          %p422 = pneg %p197
        $region78: #{simple_conv_net_forward.1} parent=67 // pred_check_branch
          %424 = sbr.rel (%p422) target = $region80
        $region79: #{simple_conv_net_forward.1} parent=67 // pred_region
          %425 = dma.done [#allocation8], 4096
        $region80: #{simple_conv_net_forward.1} parent=67 // pred_fallthru
          _
        // Predicated region
        $region81: #{simple_conv_net_forward.1} parent=67 // pred_check
          %p426 = pneg %p218
        $region82: #{simple_conv_net_forward.1} parent=67 // pred_check_branch
          %428 = sbr.rel (%p426) target = $region84
        $region83: #{simple_conv_net_forward.1} parent=67 // pred_region
          %429 = dma.done [#allocation11], 8192
        $region84: #{simple_conv_net_forward.1} parent=67 // pred_fallthru
          _
        %p430 = scmp.lt.s32.totalorder %s29, 1
        %s431 = scalar_select %p430, %s29, 1
        %s432 = smul.addr %s431, 4
        %s433 = smul.addr %s432, 8
        %s434 = scalar_lea.vmem %s0, %s433
        %p435 = pneg %p50
        %p436 = pneg %p47
        %p437 = pneg %p71
        %p438 = pneg %p68
        %p439 = pneg %p92
        %p440 = pneg %p89
        %p441 = pneg %p113
        %p442 = pneg %p110
        %p443 = pneg %p134
        %p444 = pneg %p131
        %p445 = pneg %p155
        %p446 = pneg %p152
        %p447 = pneg %p176
        %p448 = pneg %p173
        %p449 = pneg %p197
        %p450 = pneg %p194
        %p451 = pneg %p218
        %p452 = pneg %p215
        %p453 = pneg %p239
        %p454 = pneg %p236
        %p455 = pneg %p260
        %p456 = pneg %p257
        %p457 = pneg %p281
        %p458 = pneg %p278
        %p459 = pneg %p307
        %p460 = pneg %p304
        %s461 = sand.u32 %s294, 1
        %s462 = scalar_lea.sflag [#allocation6], %s461
        %s463 = sand.u32 %s294, 1
        %s464 = scalar_lea.vmem [#allocation12], %s463
        %p465 = scmp.lt.s32.totalorder %s29, 1
        %s466 = scalar_select %p465, %s29, 1
        %s467 = smul.addr %s466, 4
        %s468 = smul.addr %s467, 8
        %s469 = scalar_lea.vmem %s0, %s468
        %v471 = vld [vmem:[%s469] sm:$0xff]
        %v472 = vld [vmem:[%s469 + $0x8] sm:$0xff]
        %v473 = vld [vmem:[%s469 + $0x10] sm:$0x1]
        %v474 = vld [vmem:[%s469 + $0x18] sm:$0x1]
        %v475 = vpack.c.bf16 %v473, %v471
        %v476 = vpack.c.bf16 %v474, %v472
        %v477 = vld [vmem:[#allocation4] sm:$0xff]
        %v478 = vld [vmem:[#allocation4 + $0x8] sm:$0xff]
        %v479 = vld [vmem:[#allocation4 + $0x10] sm:$0xff]
        %v480 = vld [vmem:[#allocation4 + $0x18] sm:$0xff]
        %v481 = vld [vmem:[#allocation4 + $0x20] sm:$0xff]
        %v482 = vld [vmem:[#allocation4 + $0x28] sm:$0xff]
        %v483 = vld [vmem:[#allocation4 + $0x30] sm:$0xff]
        %v484 = vld [vmem:[#allocation4 + $0x38] sm:$0xff]
        %v485 = vld [vmem:[#allocation4 + $0x40] sm:$0xff]
        %v486 = vld [vmem:[#allocation4 + $0x48] sm:$0xff]
        %v487 = vld [vmem:[#allocation4 + $0x50] sm:$0xff]
        %v488 = vld [vmem:[#allocation4 + $0x58] sm:$0xff]
        %v489 = vld [vmem:[#allocation4 + $0x60] sm:$0xff]
        %v490 = vld [vmem:[#allocation4 + $0x68] sm:$0xff]
        %v491 = vld [vmem:[#allocation4 + $0x70] sm:$0xff]
        %v492 = vld [vmem:[#allocation4 + $0x78] sm:$0xff]
        %v493 = vld [vmem:[#allocation4 + $0x80] sm:$0xff]
        %v494 = vld [vmem:[#allocation4 + $0x88] sm:$0xff]
        %v495 = vld [vmem:[#allocation4 + $0x90] sm:$0xff]
        %v496 = vld [vmem:[#allocation4 + $0x98] sm:$0xff]
        %v497 = vld [vmem:[#allocation4 + $0xa0] sm:$0xff]
        %v498 = vld [vmem:[#allocation4 + $0xa8] sm:$0xff]
        %v499 = vld [vmem:[#allocation4 + $0xb0] sm:$0xff]
        %v500 = vld [vmem:[#allocation4 + $0xb8] sm:$0xff]
        %v501 = vld [vmem:[#allocation4 + $0xc0] sm:$0xff]
        %v502 = vld [vmem:[#allocation4 + $0xc8] sm:$0xff]
        %v503 = vld [vmem:[#allocation4 + $0xd0] sm:$0xff]
        %v504 = vld [vmem:[#allocation4 + $0xd8] sm:$0xff]
        %v505 = vld [vmem:[#allocation4 + $0xe0] sm:$0xff]
        %v506 = vld [vmem:[#allocation4 + $0xe8] sm:$0xff]
        %v507 = vld [vmem:[#allocation4 + $0xf0] sm:$0xff]
        %v508 = vld [vmem:[#allocation4 + $0xf8] sm:$0xff]
        %v509 = vld [vmem:[#allocation4 + $0x100] sm:$0xff]
        %v510 = vld [vmem:[#allocation4 + $0x108] sm:$0xff]
        %v511 = vld [vmem:[#allocation4 + $0x110] sm:$0xff]
        %v512 = vld [vmem:[#allocation4 + $0x118] sm:$0xff]
        %v513 = vld [vmem:[#allocation4 + $0x120] sm:$0xff]
        %v514 = vld [vmem:[#allocation4 + $0x128] sm:$0xff]
        %v515 = vld [vmem:[#allocation4 + $0x130] sm:$0xff]
        %v516 = vld [vmem:[#allocation4 + $0x138] sm:$0xff]
        %v517 = vld [vmem:[#allocation4 + $0x140] sm:$0xff]
        %v518 = vld [vmem:[#allocation4 + $0x148] sm:$0xff]
        %v519 = vld [vmem:[#allocation4 + $0x150] sm:$0xff]
        %v520 = vld [vmem:[#allocation4 + $0x158] sm:$0xff]
        %v521 = vld [vmem:[#allocation4 + $0x160] sm:$0xff]
        %v522 = vld [vmem:[#allocation4 + $0x168] sm:$0xff]
        %v523 = vld [vmem:[#allocation4 + $0x170] sm:$0xff]
        %v524 = vld [vmem:[#allocation4 + $0x178] sm:$0xff]
        %v525 = vld [vmem:[#allocation4 + $0x180] sm:$0xff]
        %v526 = vld [vmem:[#allocation4 + $0x188] sm:$0xff]
        %v527 = vld [vmem:[#allocation4 + $0x190] sm:$0xff]
        %v528 = vld [vmem:[#allocation4 + $0x198] sm:$0xff]
        %v529 = vld [vmem:[#allocation4 + $0x1a0] sm:$0xff]
        %v530 = vld [vmem:[#allocation4 + $0x1a8] sm:$0xff]
        %v531 = vld [vmem:[#allocation4 + $0x1b0] sm:$0xff]
        %v532 = vld [vmem:[#allocation4 + $0x1b8] sm:$0xff]
        %v533 = vld [vmem:[#allocation4 + $0x1c0] sm:$0xff]
        %v534 = vld [vmem:[#allocation4 + $0x1c8] sm:$0xff]
        %v535 = vld [vmem:[#allocation4 + $0x1d0] sm:$0xff]
        %v536 = vld [vmem:[#allocation4 + $0x1d8] sm:$0xff]
        %v537 = vld [vmem:[#allocation4 + $0x1e0] sm:$0xff]
        %v538 = vld [vmem:[#allocation4 + $0x1e8] sm:$0xff]
        %v539 = vld [vmem:[#allocation4 + $0x1f0] sm:$0xff]
        %v540 = vld [vmem:[#allocation4 + $0x1f8] sm:$0xff]
        %v541 = vld [vmem:[#allocation4 + $0x200] sm:$0xff]
        %v542 = vld [vmem:[#allocation4 + $0x208] sm:$0xff]
        %v543 = vld [vmem:[#allocation4 + $0x210] sm:$0xff]
        %v544 = vld [vmem:[#allocation4 + $0x218] sm:$0xff]
        %v545 = vld [vmem:[#allocation4 + $0x220] sm:$0xff]
        %v546 = vld [vmem:[#allocation4 + $0x228] sm:$0xff]
        %v547 = vld [vmem:[#allocation4 + $0x230] sm:$0xff]
        %v548 = vld [vmem:[#allocation4 + $0x238] sm:$0xff]
        %v549 = vld [vmem:[#allocation4 + $0x240] sm:$0xff]
        %v550 = vld [vmem:[#allocation4 + $0x248] sm:$0xff]
        %v551 = vld [vmem:[#allocation4 + $0x250] sm:$0xff]
        %v552 = vld [vmem:[#allocation4 + $0x258] sm:$0xff]
        %v553 = vld [vmem:[#allocation4 + $0x260] sm:$0xff]
        %v554 = vld [vmem:[#allocation4 + $0x268] sm:$0xff]
        %v555 = vld [vmem:[#allocation4 + $0x270] sm:$0xff]
        %v556 = vld [vmem:[#allocation4 + $0x278] sm:$0xff]
        %v557 = vld [vmem:[#allocation4 + $0x280] sm:$0xff]
        %v558 = vld [vmem:[#allocation4 + $0x288] sm:$0xff]
        %v559 = vld [vmem:[#allocation4 + $0x290] sm:$0xff]
        %v560 = vld [vmem:[#allocation4 + $0x298] sm:$0xff]
        %v561 = vld [vmem:[#allocation4 + $0x2a0] sm:$0xff]
        %v562 = vld [vmem:[#allocation4 + $0x2a8] sm:$0xff]
        %v563 = vld [vmem:[#allocation4 + $0x2b0] sm:$0xff]
        %v564 = vld [vmem:[#allocation4 + $0x2b8] sm:$0xff]
        %v565 = vld [vmem:[#allocation4 + $0x2c0] sm:$0xff]
        %v566 = vld [vmem:[#allocation4 + $0x2c8] sm:$0xff]
        %v567 = vld [vmem:[#allocation4 + $0x2d0] sm:$0xff]
        %v568 = vld [vmem:[#allocation4 + $0x2d8] sm:$0xff]
        %v569 = vld [vmem:[#allocation4 + $0x2e0] sm:$0xff]
        %v570 = vld [vmem:[#allocation4 + $0x2e8] sm:$0xff]
        %v571 = vld [vmem:[#allocation4 + $0x2f0] sm:$0xff]
        %v572 = vld [vmem:[#allocation4 + $0x2f8] sm:$0xff]
        %v573 = vld [vmem:[#allocation4 + $0x300] sm:$0xff]
        %v574 = vld [vmem:[#allocation4 + $0x308] sm:$0xff]
        %v575 = vld [vmem:[#allocation4 + $0x310] sm:$0xff]
        %v576 = vld [vmem:[#allocation4 + $0x318] sm:$0xff]
        %v577 = vld [vmem:[#allocation4 + $0x320] sm:$0xff]
        %v578 = vld [vmem:[#allocation4 + $0x328] sm:$0xff]
        %v579 = vld [vmem:[#allocation4 + $0x330] sm:$0xff]
        %v580 = vld [vmem:[#allocation4 + $0x338] sm:$0xff]
        %v581 = vld [vmem:[#allocation4 + $0x340] sm:$0xff]
        %v582 = vld [vmem:[#allocation4 + $0x348] sm:$0xff]
        %v583 = vld [vmem:[#allocation4 + $0x350] sm:$0xff]
        %v584 = vld [vmem:[#allocation4 + $0x358] sm:$0xff]
        %v585 = vld [vmem:[#allocation4 + $0x360] sm:$0xff]
        %v586 = vld [vmem:[#allocation4 + $0x368] sm:$0xff]
        %v587 = vld [vmem:[#allocation4 + $0x370] sm:$0xff]
        %v588 = vld [vmem:[#allocation4 + $0x378] sm:$0xff]
        %v589 = vld [vmem:[#allocation4 + $0x380] sm:$0xff]
        %v590 = vld [vmem:[#allocation4 + $0x388] sm:$0xff]
        %v591 = vld [vmem:[#allocation4 + $0x390] sm:$0xff]
        %v592 = vld [vmem:[#allocation4 + $0x398] sm:$0xff]
        %v593 = vld [vmem:[#allocation4 + $0x3a0] sm:$0xff]
        %v594 = vld [vmem:[#allocation4 + $0x3a8] sm:$0xff]
        %v595 = vld [vmem:[#allocation4 + $0x3b0] sm:$0xff]
        %v596 = vld [vmem:[#allocation4 + $0x3b8] sm:$0xff]
        %v597 = vld [vmem:[#allocation4 + $0x3c0] sm:$0xff]
        %v598 = vld [vmem:[#allocation4 + $0x3c8] sm:$0xff]
        %v599 = vld [vmem:[#allocation4 + $0x3d0] sm:$0xff]
        %v600 = vld [vmem:[#allocation4 + $0x3d8] sm:$0xff]
        %v601 = vld [vmem:[#allocation4 + $0x3e0] sm:$0xff]
        %v602 = vld [vmem:[#allocation4 + $0x3e8] sm:$0xff]
        %v603 = vld [vmem:[#allocation4 + $0x3f0] sm:$0xff]
        %v604 = vld [vmem:[#allocation4 + $0x3f8] sm:$0xff]
        %v605 = vld [vmem:[%s1] sm:$0xff]
        %v606 = vld [vmem:[%s1 + $0x8] sm:$0xff]
        %v607 = vld [vmem:[%s1 + $0x10] sm:$0xff]
        %v608 = vld [vmem:[%s1 + $0x18] sm:$0xff]
        %v609 = vld [vmem:[%s1 + $0x20] sm:$0xff]
        %v610 = vld [vmem:[%s1 + $0x28] sm:$0xff]
        %v611 = vld [vmem:[%s1 + $0x30] sm:$0xff]
        %v612 = vld [vmem:[%s1 + $0x38] sm:$0xff]
        %v613 = vld [vmem:[%s1 + $0x40] sm:$0xff]
        %v614 = vld [vmem:[%s1 + $0x48] sm:$0xff]
        %v615 = vld [vmem:[%s1 + $0x50] sm:$0xff]
        %v616 = vld [vmem:[%s1 + $0x58] sm:$0xff]
        %v617 = vld [vmem:[%s1 + $0x60] sm:$0xff]
        %v618 = vld [vmem:[%s1 + $0x68] sm:$0xff]
        %v619 = vld [vmem:[%s1 + $0x70] sm:$0xff]
        %v620 = vld [vmem:[%s1 + $0x78] sm:$0xff]
        %v621 = vld [vmem:[%s1 + $0x80] sm:$0xff]
        %v622 = vld [vmem:[%s1 + $0x88] sm:$0xff]
        %v623 = vld [vmem:[%s1 + $0x90] sm:$0xff]
        %v624 = vld [vmem:[%s1 + $0x98] sm:$0xff]
        %v625 = vld [vmem:[%s1 + $0xa0] sm:$0xff]
        %v626 = vld [vmem:[%s1 + $0xa8] sm:$0xff]
        %v627 = vld [vmem:[%s1 + $0xb0] sm:$0xff]
        %v628 = vld [vmem:[%s1 + $0xb8] sm:$0xff]
        %v629 = vld [vmem:[%s1 + $0xc0] sm:$0xff]
        %v630 = vld [vmem:[%s1 + $0xc8] sm:$0xff]
        %v631 = vld [vmem:[%s1 + $0xd0] sm:$0xff]
        %v632 = vld [vmem:[%s1 + $0xd8] sm:$0xff]
        %v633 = vld [vmem:[%s1 + $0xe0] sm:$0xff]
        %v634 = vld [vmem:[%s1 + $0xe8] sm:$0xff]
        %v635 = vld [vmem:[%s1 + $0xf0] sm:$0xff]
        %v636 = vld [vmem:[%s1 + $0xf8] sm:$0xff]
        %v637 = vld [vmem:[%s1 + $0x100] sm:$0xff]
        %v638 = vld [vmem:[%s1 + $0x108] sm:$0xff]
        %v639 = vld [vmem:[%s1 + $0x110] sm:$0xff]
        %v640 = vld [vmem:[%s1 + $0x118] sm:$0xff]
        %v641 = vld [vmem:[%s1 + $0x120] sm:$0xff]
        %v642 = vld [vmem:[%s1 + $0x128] sm:$0xff]
        %v643 = vld [vmem:[%s1 + $0x130] sm:$0xff]
        %v644 = vld [vmem:[%s1 + $0x138] sm:$0xff]
        %v645 = vld [vmem:[%s1 + $0x140] sm:$0xff]
        %v646 = vld [vmem:[%s1 + $0x148] sm:$0xff]
        %v647 = vld [vmem:[%s1 + $0x150] sm:$0xff]
        %v648 = vld [vmem:[%s1 + $0x158] sm:$0xff]
        %v649 = vld [vmem:[%s1 + $0x160] sm:$0xff]
        %v650 = vld [vmem:[%s1 + $0x168] sm:$0xff]
        %v651 = vld [vmem:[%s1 + $0x170] sm:$0xff]
        %v652 = vld [vmem:[%s1 + $0x178] sm:$0xff]
        %v653 = vld [vmem:[%s1 + $0x180] sm:$0xff]
        %v654 = vld [vmem:[%s1 + $0x188] sm:$0xff]
        %v655 = vld [vmem:[%s1 + $0x190] sm:$0xff]
        %v656 = vld [vmem:[%s1 + $0x198] sm:$0xff]
        %v657 = vld [vmem:[%s1 + $0x1a0] sm:$0xff]
        %v658 = vld [vmem:[%s1 + $0x1a8] sm:$0xff]
        %v659 = vld [vmem:[%s1 + $0x1b0] sm:$0xff]
        %v660 = vld [vmem:[%s1 + $0x1b8] sm:$0xff]
        %v661 = vld [vmem:[%s1 + $0x1c0] sm:$0xff]
        %v662 = vld [vmem:[%s1 + $0x1c8] sm:$0xff]
        %v663 = vld [vmem:[%s1 + $0x1d0] sm:$0xff]
        %v664 = vld [vmem:[%s1 + $0x1d8] sm:$0xff]
        %v665 = vld [vmem:[%s1 + $0x1e0] sm:$0xff]
        %v666 = vld [vmem:[%s1 + $0x1e8] sm:$0xff]
        %v667 = vld [vmem:[%s1 + $0x1f0] sm:$0xff]
        %v668 = vld [vmem:[%s1 + $0x1f8] sm:$0xff]
        %v733 = vunpack.c.l.b16 %v605
        %v734 = vunpack.c.h.b16 %v605
        %v735 = vunpack.c.l.b16 %v606
        %v736 = vunpack.c.h.b16 %v606
        %v737 = vunpack.c.l.b16 %v607
        %v738 = vunpack.c.h.b16 %v607
        %v739 = vunpack.c.l.b16 %v608
        %v740 = vunpack.c.h.b16 %v608
        %v741 = vunpack.c.l.b16 %v609
        %v742 = vunpack.c.h.b16 %v609
        %v743 = vunpack.c.l.b16 %v610
        %v744 = vunpack.c.h.b16 %v610
        %v745 = vunpack.c.l.b16 %v611
        %v746 = vunpack.c.h.b16 %v611
        %v747 = vunpack.c.l.b16 %v612
        %v748 = vunpack.c.h.b16 %v612
        %v749 = vunpack.c.l.b16 %v613
        %v750 = vunpack.c.h.b16 %v613
        %v751 = vunpack.c.l.b16 %v614
        %v752 = vunpack.c.h.b16 %v614
        %v753 = vunpack.c.l.b16 %v615
        %v754 = vunpack.c.h.b16 %v615
        %v755 = vunpack.c.l.b16 %v616
        %v756 = vunpack.c.h.b16 %v616
        %v757 = vunpack.c.l.b16 %v617
        %v758 = vunpack.c.h.b16 %v617
        %v759 = vunpack.c.l.b16 %v618
        %v760 = vunpack.c.h.b16 %v618
        %v761 = vunpack.c.l.b16 %v619
        %v762 = vunpack.c.h.b16 %v619
        %v763 = vunpack.c.l.b16 %v620
        %v764 = vunpack.c.h.b16 %v620
        %v765 = vunpack.c.l.b16 %v621
        %v766 = vunpack.c.h.b16 %v621
        %v767 = vunpack.c.l.b16 %v622
        %v768 = vunpack.c.h.b16 %v622
        %v769 = vunpack.c.l.b16 %v623
        %v770 = vunpack.c.h.b16 %v623
        %v771 = vunpack.c.l.b16 %v624
        %v772 = vunpack.c.h.b16 %v624
        %v773 = vunpack.c.l.b16 %v625
        %v774 = vunpack.c.h.b16 %v625
        %v775 = vunpack.c.l.b16 %v626
        %v776 = vunpack.c.h.b16 %v626
        %v777 = vunpack.c.l.b16 %v627
        %v778 = vunpack.c.h.b16 %v627
        %v779 = vunpack.c.l.b16 %v628
        %v780 = vunpack.c.h.b16 %v628
        %v781 = vunpack.c.l.b16 %v629
        %v782 = vunpack.c.h.b16 %v629
        %v783 = vunpack.c.l.b16 %v630
        %v784 = vunpack.c.h.b16 %v630
        %v785 = vunpack.c.l.b16 %v631
        %v786 = vunpack.c.h.b16 %v631
        %v787 = vunpack.c.l.b16 %v632
        %v788 = vunpack.c.h.b16 %v632
        %v789 = vunpack.c.l.b16 %v633
        %v790 = vunpack.c.h.b16 %v633
        %v791 = vunpack.c.l.b16 %v634
        %v792 = vunpack.c.h.b16 %v634
        %v793 = vunpack.c.l.b16 %v635
        %v794 = vunpack.c.h.b16 %v635
        %v795 = vunpack.c.l.b16 %v636
        %v796 = vunpack.c.h.b16 %v636
        %v797 = vunpack.c.l.b16 %v637
        %v798 = vunpack.c.h.b16 %v637
        %v799 = vunpack.c.l.b16 %v638
        %v800 = vunpack.c.h.b16 %v638
        %v801 = vunpack.c.l.b16 %v639
        %v802 = vunpack.c.h.b16 %v639
        %v803 = vunpack.c.l.b16 %v640
        %v804 = vunpack.c.h.b16 %v640
        %v805 = vunpack.c.l.b16 %v641
        %v806 = vunpack.c.h.b16 %v641
        %v807 = vunpack.c.l.b16 %v642
        %v808 = vunpack.c.h.b16 %v642
        %v809 = vunpack.c.l.b16 %v643
        %v810 = vunpack.c.h.b16 %v643
        %v811 = vunpack.c.l.b16 %v644
        %v812 = vunpack.c.h.b16 %v644
        %v813 = vunpack.c.l.b16 %v645
        %v814 = vunpack.c.h.b16 %v645
        %v815 = vunpack.c.l.b16 %v646
        %v816 = vunpack.c.h.b16 %v646
        %v817 = vunpack.c.l.b16 %v647
        %v818 = vunpack.c.h.b16 %v647
        %v819 = vunpack.c.l.b16 %v648
        %v820 = vunpack.c.h.b16 %v648
        %v821 = vunpack.c.l.b16 %v649
        %v822 = vunpack.c.h.b16 %v649
        %v823 = vunpack.c.l.b16 %v650
        %v824 = vunpack.c.h.b16 %v650
        %v825 = vunpack.c.l.b16 %v651
        %v826 = vunpack.c.h.b16 %v651
        %v827 = vunpack.c.l.b16 %v652
        %v828 = vunpack.c.h.b16 %v652
        %v829 = vunpack.c.l.b16 %v653
        %v830 = vunpack.c.h.b16 %v653
        %v831 = vunpack.c.l.b16 %v654
        %v832 = vunpack.c.h.b16 %v654
        %v833 = vunpack.c.l.b16 %v655
        %v834 = vunpack.c.h.b16 %v655
        %v835 = vunpack.c.l.b16 %v656
        %v836 = vunpack.c.h.b16 %v656
        %v837 = vunpack.c.l.b16 %v657
        %v838 = vunpack.c.h.b16 %v657
        %v839 = vunpack.c.l.b16 %v658
        %v840 = vunpack.c.h.b16 %v658
        %v841 = vunpack.c.l.b16 %v659
        %v842 = vunpack.c.h.b16 %v659
        %v843 = vunpack.c.l.b16 %v660
        %v844 = vunpack.c.h.b16 %v660
        %v845 = vunpack.c.l.b16 %v661
        %v846 = vunpack.c.h.b16 %v661
        %v847 = vunpack.c.l.b16 %v662
        %v848 = vunpack.c.h.b16 %v662
        %v849 = vunpack.c.l.b16 %v663
        %v850 = vunpack.c.h.b16 %v663
        %v851 = vunpack.c.l.b16 %v664
        %v852 = vunpack.c.h.b16 %v664
        %v853 = vunpack.c.l.b16 %v665
        %v854 = vunpack.c.h.b16 %v665
        %v855 = vunpack.c.l.b16 %v666
        %v856 = vunpack.c.h.b16 %v666
        %v857 = vunpack.c.l.b16 %v667
        %v858 = vunpack.c.h.b16 %v667
        %v859 = vunpack.c.l.b16 %v668
        %v860 = vunpack.c.h.b16 %v668
        %v861 = vpack.c.b16 %v741, %v733
        %v862 = vpack.c.b16 %v742, %v734
        %v863 = vpack.c.b16 %v743, %v735
        %v864 = vpack.c.b16 %v744, %v736
        %v865 = vpack.c.b16 %v745, %v737
        %v866 = vpack.c.b16 %v746, %v738
        %v867 = vpack.c.b16 %v747, %v739
        %v868 = vpack.c.b16 %v748, %v740
        %v869 = vpack.c.b16 %v757, %v749
        %v870 = vpack.c.b16 %v758, %v750
        %v871 = vpack.c.b16 %v759, %v751
        %v872 = vpack.c.b16 %v760, %v752
        %v873 = vpack.c.b16 %v761, %v753
        %v874 = vpack.c.b16 %v762, %v754
        %v875 = vpack.c.b16 %v763, %v755
        %v876 = vpack.c.b16 %v764, %v756
        %v877 = vpack.c.b16 %v773, %v765
        %v878 = vpack.c.b16 %v774, %v766
        %v879 = vpack.c.b16 %v775, %v767
        %v880 = vpack.c.b16 %v776, %v768
        %v881 = vpack.c.b16 %v777, %v769
        %v882 = vpack.c.b16 %v778, %v770
        %v883 = vpack.c.b16 %v779, %v771
        %v884 = vpack.c.b16 %v780, %v772
        %v885 = vpack.c.b16 %v789, %v781
        %v886 = vpack.c.b16 %v790, %v782
        %v887 = vpack.c.b16 %v791, %v783
        %v888 = vpack.c.b16 %v792, %v784
        %v889 = vpack.c.b16 %v793, %v785
        %v890 = vpack.c.b16 %v794, %v786
        %v891 = vpack.c.b16 %v795, %v787
        %v892 = vpack.c.b16 %v796, %v788
        %v893 = vpack.c.b16 %v805, %v797
        %v894 = vpack.c.b16 %v806, %v798
        %v895 = vpack.c.b16 %v807, %v799
        %v896 = vpack.c.b16 %v808, %v800
        %v897 = vpack.c.b16 %v809, %v801
        %v898 = vpack.c.b16 %v810, %v802
        %v899 = vpack.c.b16 %v811, %v803
        %v900 = vpack.c.b16 %v812, %v804
        %v901 = vpack.c.b16 %v821, %v813
        %v902 = vpack.c.b16 %v822, %v814
        %v903 = vpack.c.b16 %v823, %v815
        %v904 = vpack.c.b16 %v824, %v816
        %v905 = vpack.c.b16 %v825, %v817
        %v906 = vpack.c.b16 %v826, %v818
        %v907 = vpack.c.b16 %v827, %v819
        %v908 = vpack.c.b16 %v828, %v820
        %v909 = vpack.c.b16 %v837, %v829
        %v910 = vpack.c.b16 %v838, %v830
        %v911 = vpack.c.b16 %v839, %v831
        %v912 = vpack.c.b16 %v840, %v832
        %v913 = vpack.c.b16 %v841, %v833
        %v914 = vpack.c.b16 %v842, %v834
        %v915 = vpack.c.b16 %v843, %v835
        %v916 = vpack.c.b16 %v844, %v836
        %v917 = vpack.c.b16 %v853, %v845
        %v918 = vpack.c.b16 %v854, %v846
        %v919 = vpack.c.b16 %v855, %v847
        %v920 = vpack.c.b16 %v856, %v848
        %v921 = vpack.c.b16 %v857, %v849
        %v922 = vpack.c.b16 %v858, %v850
        %v923 = vpack.c.b16 %v859, %v851
        %v924 = vpack.c.b16 %v860, %v852
        %989 = vmatprep.subr.bf16.mxu0 %v862
        %990 = vmatpush1.bf16.msra.mxu0 %v861
        %991 = vmatprep.subr.bf16.mxu0 %v870
        %992 = vmatpush1.bf16.msra.mxu0 %v869
        %993 = vmatprep.subr.bf16.mxu0 %v878
        %994 = vmatpush1.bf16.msra.mxu0 %v877
        %995 = vmatprep.subr.bf16.mxu0 %v886
        %996 = vmatpush1.bf16.msra.mxu0 %v885
        %997 = vmatprep.subr.bf16.mxu0 %v894
        %998 = vmatpush1.bf16.msra.mxu0 %v893
        %999 = vmatprep.subr.bf16.mxu0 %v902
        %1000 = vmatpush1.bf16.msra.mxu0 %v901
        %1001 = vmatprep.subr.bf16.mxu0 %v910
        %1002 = vmatpush1.bf16.msra.mxu0 %v909
        %1003 = vmatprep.subr.bf16.mxu0 %v918
        %1004 = vmatpush1.bf16.msra.mxu0 %v917
        %1005 = vmatprep.subr.bf16.mxu0 0
        %1006 = vmatpush1.bf16.msra.mxu0 0
        %1007 = vmatprep.subr.bf16.mxu0 0
        %1008 = vmatpush1.bf16.msra.mxu0 0
        %1009 = vmatprep.subr.bf16.mxu0 0
        %1010 = vmatpush1.bf16.msra.mxu0 0
        %1011 = vmatprep.subr.bf16.mxu0 0
        %1012 = vmatpush1.bf16.msra.mxu0 0
        %1013 = vmatprep.subr.bf16.mxu0 0
        %1014 = vmatpush1.bf16.msra.mxu0 0
        %1015 = vmatprep.subr.bf16.mxu0 0
        %1016 = vmatpush1.bf16.msra.mxu0 0
        %1017 = vmatprep.subr.bf16.mxu0 0
        %1018 = vmatpush1.bf16.msra.mxu0 0
        %1019 = vmatprep.subr.bf16.mxu0 0
        %1020 = vmatpush1.bf16.msra.mxu0 0
        %1021 = vmatprep.mubr.bf16.mxu0 0
        %1022 = vmatmul.mubr.bf16.gmra.mrb[0].mxu0 %v476
        %v1023 = vpop.f32.mrb[0].mxu0
        %v1024 = vadd.f32 0.0, %v1023
        %v1025 = vpop.f32.mrb[0].mxu0
        %v1026 = vadd.f32 0.0, %v1025
        %v1027 = vpop.f32.mrb[0].mxu0
        %v1028 = vpop.f32.mrb[0].mxu0
        %1029 = vdwg.mxu0
        %1030 = vmatprep.subr.bf16.mxu0 %v864
        %1031 = vmatpush1.bf16.msra.mxu0 %v863
        %1032 = vmatprep.subr.bf16.mxu0 %v872
        %1033 = vmatpush1.bf16.msra.mxu0 %v871
        %1034 = vmatprep.subr.bf16.mxu0 %v880
        %1035 = vmatpush1.bf16.msra.mxu0 %v879
        %1036 = vmatprep.subr.bf16.mxu0 %v888
        %1037 = vmatpush1.bf16.msra.mxu0 %v887
        %1038 = vmatprep.subr.bf16.mxu0 %v896
        %1039 = vmatpush1.bf16.msra.mxu0 %v895
        %1040 = vmatprep.subr.bf16.mxu0 %v904
        %1041 = vmatpush1.bf16.msra.mxu0 %v903
        %1042 = vmatprep.subr.bf16.mxu0 %v912
        %1043 = vmatpush1.bf16.msra.mxu0 %v911
        %1044 = vmatprep.subr.bf16.mxu0 %v920
        %1045 = vmatpush1.bf16.msra.mxu0 %v919
        %1046 = vmatprep.subr.bf16.mxu0 0
        %1047 = vmatpush1.bf16.msra.mxu0 0
        %1048 = vmatprep.subr.bf16.mxu0 0
        %1049 = vmatpush1.bf16.msra.mxu0 0
        %1050 = vmatprep.subr.bf16.mxu0 0
        %1051 = vmatpush1.bf16.msra.mxu0 0
        %1052 = vmatprep.subr.bf16.mxu0 0
        %1053 = vmatpush1.bf16.msra.mxu0 0
        %1054 = vmatprep.subr.bf16.mxu0 0
        %1055 = vmatpush1.bf16.msra.mxu0 0
        %1056 = vmatprep.subr.bf16.mxu0 0
        %1057 = vmatpush1.bf16.msra.mxu0 0
        %1058 = vmatprep.subr.bf16.mxu0 0
        %1059 = vmatpush1.bf16.msra.mxu0 0
        %1060 = vmatprep.subr.bf16.mxu0 0
        %1061 = vmatpush1.bf16.msra.mxu0 0
        %1062 = vmatprep.mubr.bf16.mxu0 0
        %1063 = vmatmul.mubr.bf16.gmra.mrb[0].mxu0 %v476
        %v1064 = vpop.f32.mrb[0].mxu0
        %v1065 = vadd.f32 0.0, %v1064
        %v1066 = vpop.f32.mrb[0].mxu0
        %v1067 = vadd.f32 0.0, %v1066
        %v1068 = vpop.f32.mrb[0].mxu0
        %v1069 = vpop.f32.mrb[0].mxu0
        %1070 = vdwg.mxu0
        %1071 = vmatprep.subr.bf16.mxu0 %v866
        %1072 = vmatpush1.bf16.msra.mxu0 %v865
        %1073 = vmatprep.subr.bf16.mxu0 %v874
        %1074 = vmatpush1.bf16.msra.mxu0 %v873
        %1075 = vmatprep.subr.bf16.mxu0 %v882
        %1076 = vmatpush1.bf16.msra.mxu0 %v881
        %1077 = vmatprep.subr.bf16.mxu0 %v890
        %1078 = vmatpush1.bf16.msra.mxu0 %v889
        %1079 = vmatprep.subr.bf16.mxu0 %v898
        %1080 = vmatpush1.bf16.msra.mxu0 %v897
        %1081 = vmatprep.subr.bf16.mxu0 %v906
        %1082 = vmatpush1.bf16.msra.mxu0 %v905
        %1083 = vmatprep.subr.bf16.mxu0 %v914
        %1084 = vmatpush1.bf16.msra.mxu0 %v913
        %1085 = vmatprep.subr.bf16.mxu0 %v922
        %1086 = vmatpush1.bf16.msra.mxu0 %v921
        %1087 = vmatprep.subr.bf16.mxu0 0
        %1088 = vmatpush1.bf16.msra.mxu0 0
        %1089 = vmatprep.subr.bf16.mxu0 0
        %1090 = vmatpush1.bf16.msra.mxu0 0
        %1091 = vmatprep.subr.bf16.mxu0 0
        %1092 = vmatpush1.bf16.msra.mxu0 0
        %1093 = vmatprep.subr.bf16.mxu0 0
        %1094 = vmatpush1.bf16.msra.mxu0 0
        %1095 = vmatprep.subr.bf16.mxu0 0
        %1096 = vmatpush1.bf16.msra.mxu0 0
        %1097 = vmatprep.subr.bf16.mxu0 0
        %1098 = vmatpush1.bf16.msra.mxu0 0
        %1099 = vmatprep.subr.bf16.mxu0 0
        %1100 = vmatpush1.bf16.msra.mxu0 0
        %1101 = vmatprep.subr.bf16.mxu0 0
        %1102 = vmatpush1.bf16.msra.mxu0 0
        %1103 = vmatprep.mubr.bf16.mxu0 0
        %1104 = vmatmul.mubr.bf16.gmra.mrb[0].mxu0 %v476
        %v1105 = vpop.f32.mrb[0].mxu0
        %v1106 = vadd.f32 0.0, %v1105
        %v1107 = vpop.f32.mrb[0].mxu0
        %v1108 = vadd.f32 0.0, %v1107
        %v1109 = vpop.f32.mrb[0].mxu0
        %v1110 = vpop.f32.mrb[0].mxu0
        %1111 = vdwg.mxu0
        %1112 = vmatprep.subr.bf16.mxu0 %v868
        %1113 = vmatpush1.bf16.msra.mxu0 %v867
        %1114 = vmatprep.subr.bf16.mxu0 %v876
        %1115 = vmatpush1.bf16.msra.mxu0 %v875
        %1116 = vmatprep.subr.bf16.mxu0 %v884
        %1117 = vmatpush1.bf16.msra.mxu0 %v883
        %1118 = vmatprep.subr.bf16.mxu0 %v892
        %1119 = vmatpush1.bf16.msra.mxu0 %v891
        %1120 = vmatprep.subr.bf16.mxu0 %v900
        %1121 = vmatpush1.bf16.msra.mxu0 %v899
        %1122 = vmatprep.subr.bf16.mxu0 %v908
        %1123 = vmatpush1.bf16.msra.mxu0 %v907
        %1124 = vmatprep.subr.bf16.mxu0 %v916
        %1125 = vmatpush1.bf16.msra.mxu0 %v915
        %1126 = vmatprep.subr.bf16.mxu0 %v924
        %1127 = vmatpush1.bf16.msra.mxu0 %v923
        %1128 = vmatprep.subr.bf16.mxu0 0
        %1129 = vmatpush1.bf16.msra.mxu0 0
        %1130 = vmatprep.subr.bf16.mxu0 0
        %1131 = vmatpush1.bf16.msra.mxu0 0
        %1132 = vmatprep.subr.bf16.mxu0 0
        %1133 = vmatpush1.bf16.msra.mxu0 0
        %1134 = vmatprep.subr.bf16.mxu0 0
        %1135 = vmatpush1.bf16.msra.mxu0 0
        %1136 = vmatprep.subr.bf16.mxu0 0
        %1137 = vmatpush1.bf16.msra.mxu0 0
        %1138 = vmatprep.subr.bf16.mxu0 0
        %1139 = vmatpush1.bf16.msra.mxu0 0
        %1140 = vmatprep.subr.bf16.mxu0 0
        %1141 = vmatpush1.bf16.msra.mxu0 0
        %1142 = vmatprep.subr.bf16.mxu0 0
        %1143 = vmatpush1.bf16.msra.mxu0 0
        %1144 = vmatprep.mubr.bf16.mxu0 0
        %1145 = vmatmul.mubr.bf16.gmra.mrb[0].mxu0 %v476
        %v1146 = vpop.f32.mrb[0].mxu0
        %v1147 = vadd.f32 0.0, %v1146
        %v1148 = vpop.f32.mrb[0].mxu0
        %v1149 = vadd.f32 0.0, %v1148
        %v1150 = vpop.f32.mrb[0].mxu0
        %v1151 = vpop.f32.mrb[0].mxu0
        %1152 = vdwg.mxu0
        %v1154 = vshrl.u32 %v475, 16
        %v1156 = vshll.u32 %v475, 16
        %v1158 = vrot.slane %v1156, 1
        %v1159 = vor.u32 %v1154, %v1158
        %v1161 = vshrl.u32 %v476, 16
        %v1163 = vshll.u32 %v476, 16
        %v1165 = vrot.slane %v1163, 1
        %v1166 = vor.u32 %v1161, %v1165
        %v1297 = vunpack.c.l.b16 %v477
        %v1298 = vunpack.c.h.b16 %v477
        %v1299 = vunpack.c.l.b16 %v478
        %v1300 = vunpack.c.h.b16 %v478
        %v1301 = vunpack.c.l.b16 %v479
        %v1302 = vunpack.c.h.b16 %v479
        %v1303 = vunpack.c.l.b16 %v480
        %v1304 = vunpack.c.h.b16 %v480
        %v1305 = vunpack.c.l.b16 %v481
        %v1306 = vunpack.c.h.b16 %v481
        %v1307 = vunpack.c.l.b16 %v482
        %v1308 = vunpack.c.h.b16 %v482
        %v1309 = vunpack.c.l.b16 %v483
        %v1310 = vunpack.c.h.b16 %v483
        %v1311 = vunpack.c.l.b16 %v484
        %v1312 = vunpack.c.h.b16 %v484
        %v1313 = vunpack.c.l.b16 %v485
        %v1314 = vunpack.c.h.b16 %v485
        %v1315 = vunpack.c.l.b16 %v486
        %v1316 = vunpack.c.h.b16 %v486
        %v1317 = vunpack.c.l.b16 %v487
        %v1318 = vunpack.c.h.b16 %v487
        %v1319 = vunpack.c.l.b16 %v488
        %v1320 = vunpack.c.h.b16 %v488
        %v1321 = vunpack.c.l.b16 %v489
        %v1322 = vunpack.c.h.b16 %v489
        %v1323 = vunpack.c.l.b16 %v490
        %v1324 = vunpack.c.h.b16 %v490
        %v1325 = vunpack.c.l.b16 %v491
        %v1326 = vunpack.c.h.b16 %v491
        %v1327 = vunpack.c.l.b16 %v492
        %v1328 = vunpack.c.h.b16 %v492
        %v1329 = vunpack.c.l.b16 %v493
        %v1330 = vunpack.c.h.b16 %v493
        %v1331 = vunpack.c.l.b16 %v494
        %v1332 = vunpack.c.h.b16 %v494
        %v1333 = vunpack.c.l.b16 %v495
        %v1334 = vunpack.c.h.b16 %v495
        %v1335 = vunpack.c.l.b16 %v496
        %v1336 = vunpack.c.h.b16 %v496
        %v1337 = vunpack.c.l.b16 %v497
        %v1338 = vunpack.c.h.b16 %v497
        %v1339 = vunpack.c.l.b16 %v498
        %v1340 = vunpack.c.h.b16 %v498
        %v1341 = vunpack.c.l.b16 %v499
        %v1342 = vunpack.c.h.b16 %v499
        %v1343 = vunpack.c.l.b16 %v500
        %v1344 = vunpack.c.h.b16 %v500
        %v1345 = vunpack.c.l.b16 %v501
        %v1346 = vunpack.c.h.b16 %v501
        %v1347 = vunpack.c.l.b16 %v502
        %v1348 = vunpack.c.h.b16 %v502
        %v1349 = vunpack.c.l.b16 %v503
        %v1350 = vunpack.c.h.b16 %v503
        %v1351 = vunpack.c.l.b16 %v504
        %v1352 = vunpack.c.h.b16 %v504
        %v1353 = vunpack.c.l.b16 %v505
        %v1354 = vunpack.c.h.b16 %v505
        %v1355 = vunpack.c.l.b16 %v506
        %v1356 = vunpack.c.h.b16 %v506
        %v1357 = vunpack.c.l.b16 %v507
        %v1358 = vunpack.c.h.b16 %v507
        %v1359 = vunpack.c.l.b16 %v508
        %v1360 = vunpack.c.h.b16 %v508
        %v1361 = vunpack.c.l.b16 %v509
        %v1362 = vunpack.c.h.b16 %v509
        %v1363 = vunpack.c.l.b16 %v510
        %v1364 = vunpack.c.h.b16 %v510
        %v1365 = vunpack.c.l.b16 %v511
        %v1366 = vunpack.c.h.b16 %v511
        %v1367 = vunpack.c.l.b16 %v512
        %v1368 = vunpack.c.h.b16 %v512
        %v1369 = vunpack.c.l.b16 %v513
        %v1370 = vunpack.c.h.b16 %v513
        %v1371 = vunpack.c.l.b16 %v514
        %v1372 = vunpack.c.h.b16 %v514
        %v1373 = vunpack.c.l.b16 %v515
        %v1374 = vunpack.c.h.b16 %v515
        %v1375 = vunpack.c.l.b16 %v516
        %v1376 = vunpack.c.h.b16 %v516
        %v1377 = vunpack.c.l.b16 %v517
        %v1378 = vunpack.c.h.b16 %v517
        %v1379 = vunpack.c.l.b16 %v518
        %v1380 = vunpack.c.h.b16 %v518
        %v1381 = vunpack.c.l.b16 %v519
        %v1382 = vunpack.c.h.b16 %v519
        %v1383 = vunpack.c.l.b16 %v520
        %v1384 = vunpack.c.h.b16 %v520
        %v1385 = vunpack.c.l.b16 %v521
        %v1386 = vunpack.c.h.b16 %v521
        %v1387 = vunpack.c.l.b16 %v522
        %v1388 = vunpack.c.h.b16 %v522
        %v1389 = vunpack.c.l.b16 %v523
        %v1390 = vunpack.c.h.b16 %v523
        %v1391 = vunpack.c.l.b16 %v524
        %v1392 = vunpack.c.h.b16 %v524
        %v1393 = vunpack.c.l.b16 %v525
        %v1394 = vunpack.c.h.b16 %v525
        %v1395 = vunpack.c.l.b16 %v526
        %v1396 = vunpack.c.h.b16 %v526
        %v1397 = vunpack.c.l.b16 %v527
        %v1398 = vunpack.c.h.b16 %v527
        %v1399 = vunpack.c.l.b16 %v528
        %v1400 = vunpack.c.h.b16 %v528
        %v1401 = vunpack.c.l.b16 %v529
        %v1402 = vunpack.c.h.b16 %v529
        %v1403 = vunpack.c.l.b16 %v530
        %v1404 = vunpack.c.h.b16 %v530
        %v1405 = vunpack.c.l.b16 %v531
        %v1406 = vunpack.c.h.b16 %v531
        %v1407 = vunpack.c.l.b16 %v532
        %v1408 = vunpack.c.h.b16 %v532
        %v1409 = vunpack.c.l.b16 %v533
        %v1410 = vunpack.c.h.b16 %v533
        %v1411 = vunpack.c.l.b16 %v534
        %v1412 = vunpack.c.h.b16 %v534
        %v1413 = vunpack.c.l.b16 %v535
        %v1414 = vunpack.c.h.b16 %v535
        %v1415 = vunpack.c.l.b16 %v536
        %v1416 = vunpack.c.h.b16 %v536
        %v1417 = vunpack.c.l.b16 %v537
        %v1418 = vunpack.c.h.b16 %v537
        %v1419 = vunpack.c.l.b16 %v538
        %v1420 = vunpack.c.h.b16 %v538
        %v1421 = vunpack.c.l.b16 %v539
        %v1422 = vunpack.c.h.b16 %v539
        %v1423 = vunpack.c.l.b16 %v540
        %v1424 = vunpack.c.h.b16 %v540
        %v1425 = vunpack.c.l.b16 %v541
        %v1426 = vunpack.c.h.b16 %v541
        %v1427 = vunpack.c.l.b16 %v542
        %v1428 = vunpack.c.h.b16 %v542
        %v1429 = vunpack.c.l.b16 %v543
        %v1430 = vunpack.c.h.b16 %v543
        %v1431 = vunpack.c.l.b16 %v544
        %v1432 = vunpack.c.h.b16 %v544
        %v1433 = vunpack.c.l.b16 %v545
        %v1434 = vunpack.c.h.b16 %v545
        %v1435 = vunpack.c.l.b16 %v546
        %v1436 = vunpack.c.h.b16 %v546
        %v1437 = vunpack.c.l.b16 %v547
        %v1438 = vunpack.c.h.b16 %v547
        %v1439 = vunpack.c.l.b16 %v548
        %v1440 = vunpack.c.h.b16 %v548
        %v1441 = vunpack.c.l.b16 %v549
        %v1442 = vunpack.c.h.b16 %v549
        %v1443 = vunpack.c.l.b16 %v550
        %v1444 = vunpack.c.h.b16 %v550
        %v1445 = vunpack.c.l.b16 %v551
        %v1446 = vunpack.c.h.b16 %v551
        %v1447 = vunpack.c.l.b16 %v552
        %v1448 = vunpack.c.h.b16 %v552
        %v1449 = vunpack.c.l.b16 %v553
        %v1450 = vunpack.c.h.b16 %v553
        %v1451 = vunpack.c.l.b16 %v554
        %v1452 = vunpack.c.h.b16 %v554
        %v1453 = vunpack.c.l.b16 %v555
        %v1454 = vunpack.c.h.b16 %v555
        %v1455 = vunpack.c.l.b16 %v556
        %v1456 = vunpack.c.h.b16 %v556
        %v1457 = vunpack.c.l.b16 %v557
        %v1458 = vunpack.c.h.b16 %v557
        %v1459 = vunpack.c.l.b16 %v558
        %v1460 = vunpack.c.h.b16 %v558
        %v1461 = vunpack.c.l.b16 %v559
        %v1462 = vunpack.c.h.b16 %v559
        %v1463 = vunpack.c.l.b16 %v560
        %v1464 = vunpack.c.h.b16 %v560
        %v1465 = vunpack.c.l.b16 %v561
        %v1466 = vunpack.c.h.b16 %v561
        %v1467 = vunpack.c.l.b16 %v562
        %v1468 = vunpack.c.h.b16 %v562
        %v1469 = vunpack.c.l.b16 %v563
        %v1470 = vunpack.c.h.b16 %v563
        %v1471 = vunpack.c.l.b16 %v564
        %v1472 = vunpack.c.h.b16 %v564
        %v1473 = vunpack.c.l.b16 %v565
        %v1474 = vunpack.c.h.b16 %v565
        %v1475 = vunpack.c.l.b16 %v566
        %v1476 = vunpack.c.h.b16 %v566
        %v1477 = vunpack.c.l.b16 %v567
        %v1478 = vunpack.c.h.b16 %v567
        %v1479 = vunpack.c.l.b16 %v568
        %v1480 = vunpack.c.h.b16 %v568
        %v1481 = vunpack.c.l.b16 %v569
        %v1482 = vunpack.c.h.b16 %v569
        %v1483 = vunpack.c.l.b16 %v570
        %v1484 = vunpack.c.h.b16 %v570
        %v1485 = vunpack.c.l.b16 %v571
        %v1486 = vunpack.c.h.b16 %v571
        %v1487 = vunpack.c.l.b16 %v572
        %v1488 = vunpack.c.h.b16 %v572
        %v1489 = vunpack.c.l.b16 %v573
        %v1490 = vunpack.c.h.b16 %v573
        %v1491 = vunpack.c.l.b16 %v574
        %v1492 = vunpack.c.h.b16 %v574
        %v1493 = vunpack.c.l.b16 %v575
        %v1494 = vunpack.c.h.b16 %v575
        %v1495 = vunpack.c.l.b16 %v576
        %v1496 = vunpack.c.h.b16 %v576
        %v1497 = vunpack.c.l.b16 %v577
        %v1498 = vunpack.c.h.b16 %v577
        %v1499 = vunpack.c.l.b16 %v578
        %v1500 = vunpack.c.h.b16 %v578
        %v1501 = vunpack.c.l.b16 %v579
        %v1502 = vunpack.c.h.b16 %v579
        %v1503 = vunpack.c.l.b16 %v580
        %v1504 = vunpack.c.h.b16 %v580
        %v1505 = vunpack.c.l.b16 %v581
        %v1506 = vunpack.c.h.b16 %v581
        %v1507 = vunpack.c.l.b16 %v582
        %v1508 = vunpack.c.h.b16 %v582
        %v1509 = vunpack.c.l.b16 %v583
        %v1510 = vunpack.c.h.b16 %v583
        %v1511 = vunpack.c.l.b16 %v584
        %v1512 = vunpack.c.h.b16 %v584
        %v1513 = vunpack.c.l.b16 %v585
        %v1514 = vunpack.c.h.b16 %v585
        %v1515 = vunpack.c.l.b16 %v586
        %v1516 = vunpack.c.h.b16 %v586
        %v1517 = vunpack.c.l.b16 %v587
        %v1518 = vunpack.c.h.b16 %v587
        %v1519 = vunpack.c.l.b16 %v588
        %v1520 = vunpack.c.h.b16 %v588
        %v1521 = vunpack.c.l.b16 %v589
        %v1522 = vunpack.c.h.b16 %v589
        %v1523 = vunpack.c.l.b16 %v590
        %v1524 = vunpack.c.h.b16 %v590
        %v1525 = vunpack.c.l.b16 %v591
        %v1526 = vunpack.c.h.b16 %v591
        %v1527 = vunpack.c.l.b16 %v592
        %v1528 = vunpack.c.h.b16 %v592
        %v1529 = vunpack.c.l.b16 %v593
        %v1530 = vunpack.c.h.b16 %v593
        %v1531 = vunpack.c.l.b16 %v594
        %v1532 = vunpack.c.h.b16 %v594
        %v1533 = vunpack.c.l.b16 %v595
        %v1534 = vunpack.c.h.b16 %v595
        %v1535 = vunpack.c.l.b16 %v596
        %v1536 = vunpack.c.h.b16 %v596
        %v1537 = vunpack.c.l.b16 %v597
        %v1538 = vunpack.c.h.b16 %v597
        %v1539 = vunpack.c.l.b16 %v598
        %v1540 = vunpack.c.h.b16 %v598
        %v1541 = vunpack.c.l.b16 %v599
        %v1542 = vunpack.c.h.b16 %v599
        %v1543 = vunpack.c.l.b16 %v600
        %v1544 = vunpack.c.h.b16 %v600
        %v1545 = vunpack.c.l.b16 %v601
        %v1546 = vunpack.c.h.b16 %v601
        %v1547 = vunpack.c.l.b16 %v602
        %v1548 = vunpack.c.h.b16 %v602
        %v1549 = vunpack.c.l.b16 %v603
        %v1550 = vunpack.c.h.b16 %v603
        %v1551 = vunpack.c.l.b16 %v604
        %v1552 = vunpack.c.h.b16 %v604
        %v1553 = vpack.c.b16 %v1305, %v1297
        %v1554 = vpack.c.b16 %v1306, %v1298
        %v1555 = vpack.c.b16 %v1307, %v1299
        %v1556 = vpack.c.b16 %v1308, %v1300
        %v1557 = vpack.c.b16 %v1309, %v1301
        %v1558 = vpack.c.b16 %v1310, %v1302
        %v1559 = vpack.c.b16 %v1311, %v1303
        %v1560 = vpack.c.b16 %v1312, %v1304
        %v1561 = vpack.c.b16 %v1321, %v1313
        %v1562 = vpack.c.b16 %v1322, %v1314
        %v1563 = vpack.c.b16 %v1323, %v1315
        %v1564 = vpack.c.b16 %v1324, %v1316
        %v1565 = vpack.c.b16 %v1325, %v1317
        %v1566 = vpack.c.b16 %v1326, %v1318
        %v1567 = vpack.c.b16 %v1327, %v1319
        %v1568 = vpack.c.b16 %v1328, %v1320
        %v1569 = vpack.c.b16 %v1337, %v1329
        %v1570 = vpack.c.b16 %v1338, %v1330
        %v1571 = vpack.c.b16 %v1339, %v1331
        %v1572 = vpack.c.b16 %v1340, %v1332
        %v1573 = vpack.c.b16 %v1341, %v1333
        %v1574 = vpack.c.b16 %v1342, %v1334
        %v1575 = vpack.c.b16 %v1343, %v1335
        %v1576 = vpack.c.b16 %v1344, %v1336
        %v1577 = vpack.c.b16 %v1353, %v1345
        %v1578 = vpack.c.b16 %v1354, %v1346
        %v1579 = vpack.c.b16 %v1355, %v1347
        %v1580 = vpack.c.b16 %v1356, %v1348
        %v1581 = vpack.c.b16 %v1357, %v1349
        %v1582 = vpack.c.b16 %v1358, %v1350
        %v1583 = vpack.c.b16 %v1359, %v1351
        %v1584 = vpack.c.b16 %v1360, %v1352
        %v1585 = vpack.c.b16 %v1369, %v1361
        %v1586 = vpack.c.b16 %v1370, %v1362
        %v1587 = vpack.c.b16 %v1371, %v1363
        %v1588 = vpack.c.b16 %v1372, %v1364
        %v1589 = vpack.c.b16 %v1373, %v1365
        %v1590 = vpack.c.b16 %v1374, %v1366
        %v1591 = vpack.c.b16 %v1375, %v1367
        %v1592 = vpack.c.b16 %v1376, %v1368
        %v1593 = vpack.c.b16 %v1385, %v1377
        %v1594 = vpack.c.b16 %v1386, %v1378
        %v1595 = vpack.c.b16 %v1387, %v1379
        %v1596 = vpack.c.b16 %v1388, %v1380
        %v1597 = vpack.c.b16 %v1389, %v1381
        %v1598 = vpack.c.b16 %v1390, %v1382
        %v1599 = vpack.c.b16 %v1391, %v1383
        %v1600 = vpack.c.b16 %v1392, %v1384
        %v1601 = vpack.c.b16 %v1401, %v1393
        %v1602 = vpack.c.b16 %v1402, %v1394
        %v1603 = vpack.c.b16 %v1403, %v1395
        %v1604 = vpack.c.b16 %v1404, %v1396
        %v1605 = vpack.c.b16 %v1405, %v1397
        %v1606 = vpack.c.b16 %v1406, %v1398
        %v1607 = vpack.c.b16 %v1407, %v1399
        %v1608 = vpack.c.b16 %v1408, %v1400
        %v1609 = vpack.c.b16 %v1417, %v1409
        %v1610 = vpack.c.b16 %v1418, %v1410
        %v1611 = vpack.c.b16 %v1419, %v1411
        %v1612 = vpack.c.b16 %v1420, %v1412
        %v1613 = vpack.c.b16 %v1421, %v1413
        %v1614 = vpack.c.b16 %v1422, %v1414
        %v1615 = vpack.c.b16 %v1423, %v1415
        %v1616 = vpack.c.b16 %v1424, %v1416
        %v1617 = vpack.c.b16 %v1433, %v1425
        %v1618 = vpack.c.b16 %v1434, %v1426
        %v1619 = vpack.c.b16 %v1435, %v1427
        %v1620 = vpack.c.b16 %v1436, %v1428
        %v1621 = vpack.c.b16 %v1437, %v1429
        %v1622 = vpack.c.b16 %v1438, %v1430
        %v1623 = vpack.c.b16 %v1439, %v1431
        %v1624 = vpack.c.b16 %v1440, %v1432
        %v1625 = vpack.c.b16 %v1449, %v1441
        %v1626 = vpack.c.b16 %v1450, %v1442
        %v1627 = vpack.c.b16 %v1451, %v1443
        %v1628 = vpack.c.b16 %v1452, %v1444
        %v1629 = vpack.c.b16 %v1453, %v1445
        %v1630 = vpack.c.b16 %v1454, %v1446
        %v1631 = vpack.c.b16 %v1455, %v1447
        %v1632 = vpack.c.b16 %v1456, %v1448
        %v1633 = vpack.c.b16 %v1465, %v1457
        %v1634 = vpack.c.b16 %v1466, %v1458
        %v1635 = vpack.c.b16 %v1467, %v1459
        %v1636 = vpack.c.b16 %v1468, %v1460
        %v1637 = vpack.c.b16 %v1469, %v1461
        %v1638 = vpack.c.b16 %v1470, %v1462
        %v1639 = vpack.c.b16 %v1471, %v1463
        %v1640 = vpack.c.b16 %v1472, %v1464
        %v1641 = vpack.c.b16 %v1481, %v1473
        %v1642 = vpack.c.b16 %v1482, %v1474
        %v1643 = vpack.c.b16 %v1483, %v1475
        %v1644 = vpack.c.b16 %v1484, %v1476
        %v1645 = vpack.c.b16 %v1485, %v1477
        %v1646 = vpack.c.b16 %v1486, %v1478
        %v1647 = vpack.c.b16 %v1487, %v1479
        %v1648 = vpack.c.b16 %v1488, %v1480
        %v1649 = vpack.c.b16 %v1497, %v1489
        %v1650 = vpack.c.b16 %v1498, %v1490
        %v1651 = vpack.c.b16 %v1499, %v1491
        %v1652 = vpack.c.b16 %v1500, %v1492
        %v1653 = vpack.c.b16 %v1501, %v1493
        %v1654 = vpack.c.b16 %v1502, %v1494
        %v1655 = vpack.c.b16 %v1503, %v1495
        %v1656 = vpack.c.b16 %v1504, %v1496
        %v1657 = vpack.c.b16 %v1513, %v1505
        %v1658 = vpack.c.b16 %v1514, %v1506
        %v1659 = vpack.c.b16 %v1515, %v1507
        %v1660 = vpack.c.b16 %v1516, %v1508
        %v1661 = vpack.c.b16 %v1517, %v1509
        %v1662 = vpack.c.b16 %v1518, %v1510
        %v1663 = vpack.c.b16 %v1519, %v1511
        %v1664 = vpack.c.b16 %v1520, %v1512
        %v1665 = vpack.c.b16 %v1529, %v1521
        %v1666 = vpack.c.b16 %v1530, %v1522
        %v1667 = vpack.c.b16 %v1531, %v1523
        %v1668 = vpack.c.b16 %v1532, %v1524
        %v1669 = vpack.c.b16 %v1533, %v1525
        %v1670 = vpack.c.b16 %v1534, %v1526
        %v1671 = vpack.c.b16 %v1535, %v1527
        %v1672 = vpack.c.b16 %v1536, %v1528
        %v1673 = vpack.c.b16 %v1545, %v1537
        %v1674 = vpack.c.b16 %v1546, %v1538
        %v1675 = vpack.c.b16 %v1547, %v1539
        %v1676 = vpack.c.b16 %v1548, %v1540
        %v1677 = vpack.c.b16 %v1549, %v1541
        %v1678 = vpack.c.b16 %v1550, %v1542
        %v1679 = vpack.c.b16 %v1551, %v1543
        %v1680 = vpack.c.b16 %v1552, %v1544
        %1809 = vmatprep.subr.bf16.mxu0 %v1554
        %1810 = vmatpush1.bf16.msra.mxu0 %v1553
        %1811 = vmatprep.subr.bf16.mxu0 %v1562
        %1812 = vmatpush1.bf16.msra.mxu0 %v1561
        %1813 = vmatprep.subr.bf16.mxu0 %v1570
        %1814 = vmatpush1.bf16.msra.mxu0 %v1569
        %1815 = vmatprep.subr.bf16.mxu0 %v1578
        %1816 = vmatpush1.bf16.msra.mxu0 %v1577
        %1817 = vmatprep.subr.bf16.mxu0 %v1586
        %1818 = vmatpush1.bf16.msra.mxu0 %v1585
        %1819 = vmatprep.subr.bf16.mxu0 %v1594
        %1820 = vmatpush1.bf16.msra.mxu0 %v1593
        %1821 = vmatprep.subr.bf16.mxu0 %v1602
        %1822 = vmatpush1.bf16.msra.mxu0 %v1601
        %1823 = vmatprep.subr.bf16.mxu0 %v1610
        %1824 = vmatpush1.bf16.msra.mxu0 %v1609
        %1825 = vmatprep.subr.bf16.mxu0 %v1618
        %1826 = vmatpush1.bf16.msra.mxu0 %v1617
        %1827 = vmatprep.subr.bf16.mxu0 %v1626
        %1828 = vmatpush1.bf16.msra.mxu0 %v1625
        %1829 = vmatprep.subr.bf16.mxu0 %v1634
        %1830 = vmatpush1.bf16.msra.mxu0 %v1633
        %1831 = vmatprep.subr.bf16.mxu0 %v1642
        %1832 = vmatpush1.bf16.msra.mxu0 %v1641
        %1833 = vmatprep.subr.bf16.mxu0 %v1650
        %1834 = vmatpush1.bf16.msra.mxu0 %v1649
        %1835 = vmatprep.subr.bf16.mxu0 %v1658
        %1836 = vmatpush1.bf16.msra.mxu0 %v1657
        %1837 = vmatprep.subr.bf16.mxu0 %v1666
        %1838 = vmatpush1.bf16.msra.mxu0 %v1665
        %1839 = vmatprep.subr.bf16.mxu0 %v1674
        %1840 = vmatpush1.bf16.msra.mxu0 %v1673
        %1841 = vmatprep.mubr.bf16.mxu0 %v1166
        %1842 = vmatmul.mubr.bf16.gmra.mrb[0].mxu0 %v1159
        %v1843 = vpop.f32.mrb[0].mxu0
        %v1844 = vadd.f32 %v1024, %v1843
        %v1845 = vpop.f32.mrb[0].mxu0
        %v1846 = vadd.f32 %v1026, %v1845
        %v1847 = vpop.f32.mrb[0].mxu0
        %v1848 = vpop.f32.mrb[0].mxu0
        %1849 = vdwg.mxu0
        %1850 = vmatprep.subr.bf16.mxu0 %v1556
        %1851 = vmatpush1.bf16.msra.mxu0 %v1555
        %1852 = vmatprep.subr.bf16.mxu0 %v1564
        %1853 = vmatpush1.bf16.msra.mxu0 %v1563
        %1854 = vmatprep.subr.bf16.mxu0 %v1572
        %1855 = vmatpush1.bf16.msra.mxu0 %v1571
        %1856 = vmatprep.subr.bf16.mxu0 %v1580
        %1857 = vmatpush1.bf16.msra.mxu0 %v1579
        %1858 = vmatprep.subr.bf16.mxu0 %v1588
        %1859 = vmatpush1.bf16.msra.mxu0 %v1587
        %1860 = vmatprep.subr.bf16.mxu0 %v1596
        %1861 = vmatpush1.bf16.msra.mxu0 %v1595
        %1862 = vmatprep.subr.bf16.mxu0 %v1604
        %1863 = vmatpush1.bf16.msra.mxu0 %v1603
        %1864 = vmatprep.subr.bf16.mxu0 %v1612
        %1865 = vmatpush1.bf16.msra.mxu0 %v1611
        %1866 = vmatprep.subr.bf16.mxu0 %v1620
        %1867 = vmatpush1.bf16.msra.mxu0 %v1619
        %1868 = vmatprep.subr.bf16.mxu0 %v1628
        %1869 = vmatpush1.bf16.msra.mxu0 %v1627
        %1870 = vmatprep.subr.bf16.mxu0 %v1636
        %1871 = vmatpush1.bf16.msra.mxu0 %v1635
        %1872 = vmatprep.subr.bf16.mxu0 %v1644
        %1873 = vmatpush1.bf16.msra.mxu0 %v1643
        %1874 = vmatprep.subr.bf16.mxu0 %v1652
        %1875 = vmatpush1.bf16.msra.mxu0 %v1651
        %1876 = vmatprep.subr.bf16.mxu0 %v1660
        %1877 = vmatpush1.bf16.msra.mxu0 %v1659
        %1878 = vmatprep.subr.bf16.mxu0 %v1668
        %1879 = vmatpush1.bf16.msra.mxu0 %v1667
        %1880 = vmatprep.subr.bf16.mxu0 %v1676
        %1881 = vmatpush1.bf16.msra.mxu0 %v1675
        %1882 = vmatprep.mubr.bf16.mxu0 %v1166
        %1883 = vmatmul.mubr.bf16.gmra.mrb[0].mxu0 %v1159
        %v1884 = vpop.f32.mrb[0].mxu0
        %v1885 = vadd.f32 %v1065, %v1884
        %v1886 = vpop.f32.mrb[0].mxu0
        %v1887 = vadd.f32 %v1067, %v1886
        %v1888 = vpop.f32.mrb[0].mxu0
        %v1889 = vpop.f32.mrb[0].mxu0
        %1890 = vdwg.mxu0
        %1891 = vmatprep.subr.bf16.mxu0 %v1558
        %1892 = vmatpush1.bf16.msra.mxu0 %v1557
        %1893 = vmatprep.subr.bf16.mxu0 %v1566
        %1894 = vmatpush1.bf16.msra.mxu0 %v1565
        %1895 = vmatprep.subr.bf16.mxu0 %v1574
        %1896 = vmatpush1.bf16.msra.mxu0 %v1573
        %1897 = vmatprep.subr.bf16.mxu0 %v1582
        %1898 = vmatpush1.bf16.msra.mxu0 %v1581
        %1899 = vmatprep.subr.bf16.mxu0 %v1590
        %1900 = vmatpush1.bf16.msra.mxu0 %v1589
        %1901 = vmatprep.subr.bf16.mxu0 %v1598
        %1902 = vmatpush1.bf16.msra.mxu0 %v1597
        %1903 = vmatprep.subr.bf16.mxu0 %v1606
        %1904 = vmatpush1.bf16.msra.mxu0 %v1605
        %1905 = vmatprep.subr.bf16.mxu0 %v1614
        %1906 = vmatpush1.bf16.msra.mxu0 %v1613
        %1907 = vmatprep.subr.bf16.mxu0 %v1622
        %1908 = vmatpush1.bf16.msra.mxu0 %v1621
        %1909 = vmatprep.subr.bf16.mxu0 %v1630
        %1910 = vmatpush1.bf16.msra.mxu0 %v1629
        %1911 = vmatprep.subr.bf16.mxu0 %v1638
        %1912 = vmatpush1.bf16.msra.mxu0 %v1637
        %1913 = vmatprep.subr.bf16.mxu0 %v1646
        %1914 = vmatpush1.bf16.msra.mxu0 %v1645
        %1915 = vmatprep.subr.bf16.mxu0 %v1654
        %1916 = vmatpush1.bf16.msra.mxu0 %v1653
        %1917 = vmatprep.subr.bf16.mxu0 %v1662
        %1918 = vmatpush1.bf16.msra.mxu0 %v1661
        %1919 = vmatprep.subr.bf16.mxu0 %v1670
        %1920 = vmatpush1.bf16.msra.mxu0 %v1669
        %1921 = vmatprep.subr.bf16.mxu0 %v1678
        %1922 = vmatpush1.bf16.msra.mxu0 %v1677
        %1923 = vmatprep.mubr.bf16.mxu0 %v1166
        %1924 = vmatmul.mubr.bf16.gmra.mrb[0].mxu0 %v1159
        %v1925 = vpop.f32.mrb[0].mxu0
        %v1926 = vadd.f32 %v1106, %v1925
        %v1927 = vpop.f32.mrb[0].mxu0
        %v1928 = vadd.f32 %v1108, %v1927
        %v1929 = vpop.f32.mrb[0].mxu0
        %v1930 = vpop.f32.mrb[0].mxu0
        %1931 = vdwg.mxu0
        %1932 = vmatprep.subr.bf16.mxu0 %v1560
        %1933 = vmatpush1.bf16.msra.mxu0 %v1559
        %1934 = vmatprep.subr.bf16.mxu0 %v1568
        %1935 = vmatpush1.bf16.msra.mxu0 %v1567
        %1936 = vmatprep.subr.bf16.mxu0 %v1576
        %1937 = vmatpush1.bf16.msra.mxu0 %v1575
        %1938 = vmatprep.subr.bf16.mxu0 %v1584
        %1939 = vmatpush1.bf16.msra.mxu0 %v1583
        %1940 = vmatprep.subr.bf16.mxu0 %v1592
        %1941 = vmatpush1.bf16.msra.mxu0 %v1591
        %1942 = vmatprep.subr.bf16.mxu0 %v1600
        %1943 = vmatpush1.bf16.msra.mxu0 %v1599
        %1944 = vmatprep.subr.bf16.mxu0 %v1608
        %1945 = vmatpush1.bf16.msra.mxu0 %v1607
        %1946 = vmatprep.subr.bf16.mxu0 %v1616
        %1947 = vmatpush1.bf16.msra.mxu0 %v1615
        %1948 = vmatprep.subr.bf16.mxu0 %v1624
        %1949 = vmatpush1.bf16.msra.mxu0 %v1623
        %1950 = vmatprep.subr.bf16.mxu0 %v1632
        %1951 = vmatpush1.bf16.msra.mxu0 %v1631
        %1952 = vmatprep.subr.bf16.mxu0 %v1640
        %1953 = vmatpush1.bf16.msra.mxu0 %v1639
        %1954 = vmatprep.subr.bf16.mxu0 %v1648
        %1955 = vmatpush1.bf16.msra.mxu0 %v1647
        %1956 = vmatprep.subr.bf16.mxu0 %v1656
        %1957 = vmatpush1.bf16.msra.mxu0 %v1655
        %1958 = vmatprep.subr.bf16.mxu0 %v1664
        %1959 = vmatpush1.bf16.msra.mxu0 %v1663
        %1960 = vmatprep.subr.bf16.mxu0 %v1672
        %1961 = vmatpush1.bf16.msra.mxu0 %v1671
        %1962 = vmatprep.subr.bf16.mxu0 %v1680
        %1963 = vmatpush1.bf16.msra.mxu0 %v1679
        %1964 = vmatprep.mubr.bf16.mxu0 %v1166
        %1965 = vmatmul.mubr.bf16.gmra.mrb[0].mxu0 %v1159
        %v1966 = vpop.f32.mrb[0].mxu0
        %v1967 = vadd.f32 %v1147, %v1966
        %v1968 = vpop.f32.mrb[0].mxu0
        %v1969 = vadd.f32 %v1149, %v1968
        %v1970 = vpop.f32.mrb[0].mxu0
        %v1971 = vpop.f32.mrb[0].mxu0
        %1972 = vdwg.mxu0
        %v1973 = vld [vmem:[%s3] sm:$0xff]
        %v1975 = vlaneseq
        %v1976 = vshrl.u32 %v1975, 7
        %v1977 = vsub.s32 0, %v1976
        %v1978 = vrot.slane %v1973, %v1977
        %v1979 = vlaneseq
        %v1980 = vshrl.u32 %v1979, 7
        %v1981 = vsub.s32 1, %v1980
        %v1982 = vrot.slane %v1973, %v1981
        %v1983 = vlaneseq
        %v1984 = vshrl.u32 %v1983, 7
        %v1985 = vsub.s32 2, %v1984
        %v1986 = vrot.slane %v1973, %v1985
        %v1987 = vlaneseq
        %v1988 = vshrl.u32 %v1987, 7
        %v1989 = vsub.s32 3, %v1988
        %v1990 = vrot.slane %v1973, %v1989
        %v1991 = vlaneseq
        %v1992 = vshrl.u32 %v1991, 7
        %v1993 = vsub.s32 4, %v1992
        %v1994 = vrot.slane %v1973, %v1993
        %v1995 = vlaneseq
        %v1996 = vshrl.u32 %v1995, 7
        %v1997 = vsub.s32 5, %v1996
        %v1998 = vrot.slane %v1973, %v1997
        %v1999 = vlaneseq
        %v2000 = vshrl.u32 %v1999, 7
        %v2001 = vsub.s32 6, %v2000
        %v2002 = vrot.slane %v1973, %v2001
        %v2003 = vlaneseq
        %v2004 = vshrl.u32 %v2003, 7
        %v2005 = vsub.s32 7, %v2004
        %v2006 = vrot.slane %v1973, %v2005
        %v2015 = vadd.f32 %v1844, %v1978
        %v2016 = vadd.f32 %v1846, %v1982
        %v2017 = vadd.f32 %v1885, %v1986
        %v2018 = vadd.f32 %v1887, %v1990
        %v2019 = vadd.f32 %v1926, %v1994
        %v2020 = vadd.f32 %v1928, %v1998
        %v2021 = vadd.f32 %v1967, %v2002
        %v2022 = vadd.f32 %v1969, %v2006
        %v2023 = vmax.f32 %v2015, 0.0
        %v2024 = vmax.f32 %v2016, 0.0
        %v2025 = vmax.f32 %v2017, 0.0
        %v2026 = vmax.f32 %v2018, 0.0
        %v2027 = vmax.f32 %v2019, 0.0
        %v2028 = vmax.f32 %v2020, 0.0
        %v2029 = vmax.f32 %v2021, 0.0
        %v2030 = vmax.f32 %v2022, 0.0
        %v2031 = vlaneseq
        %vm2032 = vcmp.ge.s32.totalorder %v2031, 0
        %vm2033 = vcmp.lt.s32.totalorder %v2031, 256
        %vm2034 = vmand %vm2032, %vm2033
        %2035 = vst.msk [vmem:[#allocation2] ss:$8 sm:$0x3] %vm2034, 0.0
        %2036 = vst.msk [vmem:[#allocation2] ss:$8 sm:$0x0] %vm2034, 0.0
        %v2039 = vrot.slane %v2029, 7
        %v2040 = vrot.slane %v2030, 7
        %2043 = vst [vmem:[#allocation2] sm:$0xfe] %v2039
        %2044 = vst [vmem:[#allocation2 + $0x8] sm:$0xfe] %v2040
        %2045 = vst [vmem:[#allocation2 + $0x10] sm:$0x1] %v2039
        %2046 = vst [vmem:[#allocation2 + $0x18] sm:$0x1] %v2040
        %v2047 = vpack.c.bf16 %v2023, %v2023
        %v2048 = vpack.c.bf16 %v2024, %v2024
        %v2049 = vpack.c.bf16 %v2025, %v2025
        %v2050 = vpack.c.bf16 %v2026, %v2026
        %v2051 = vpack.c.bf16 %v2027, %v2027
        %v2052 = vpack.c.bf16 %v2028, %v2028
        %v2053 = vpack.c.bf16 %v2029, %v2029
        %v2054 = vpack.c.bf16 %v2030, %v2030
        %v2055 = vld [vmem:[%s5] sm:$0xff]
        %v2056 = vld [vmem:[%s5 + $0x8] sm:$0xff]
        %v2057 = vld [vmem:[%s5 + $0x10] sm:$0xff]
        %v2058 = vld [vmem:[%s5 + $0x18] sm:$0xff]
        %v2059 = vld [vmem:[%s5 + $0x20] sm:$0xff]
        %v2060 = vld [vmem:[%s5 + $0x28] sm:$0xff]
        %v2061 = vld [vmem:[%s5 + $0x30] sm:$0xff]
        %v2062 = vld [vmem:[%s5 + $0x38] sm:$0xff]
        %v2063 = vld [vmem:[%s5 + $0x40] sm:$0xff]
        %v2064 = vld [vmem:[%s5 + $0x48] sm:$0xff]
        %v2065 = vld [vmem:[%s5 + $0x50] sm:$0xff]
        %v2066 = vld [vmem:[%s5 + $0x58] sm:$0xff]
        %v2067 = vld [vmem:[%s5 + $0x60] sm:$0xff]
        %v2068 = vld [vmem:[%s5 + $0x68] sm:$0xff]
        %v2069 = vld [vmem:[%s5 + $0x70] sm:$0xff]
        %v2070 = vld [vmem:[%s5 + $0x78] sm:$0xff]
        %v2071 = vld [vmem:[%s5 + $0x80] sm:$0xff]
        %v2072 = vld [vmem:[%s5 + $0x88] sm:$0xff]
        %v2073 = vld [vmem:[%s5 + $0x90] sm:$0xff]
        %v2074 = vld [vmem:[%s5 + $0x98] sm:$0xff]
        %v2075 = vld [vmem:[%s5 + $0xa0] sm:$0xff]
        %v2076 = vld [vmem:[%s5 + $0xa8] sm:$0xff]
        %v2077 = vld [vmem:[%s5 + $0xb0] sm:$0xff]
        %v2078 = vld [vmem:[%s5 + $0xb8] sm:$0xff]
        %v2079 = vld [vmem:[%s5 + $0xc0] sm:$0xff]
        %v2080 = vld [vmem:[%s5 + $0xc8] sm:$0xff]
        %v2081 = vld [vmem:[%s5 + $0xd0] sm:$0xff]
        %v2082 = vld [vmem:[%s5 + $0xd8] sm:$0xff]
        %v2083 = vld [vmem:[%s5 + $0xe0] sm:$0xff]
        %v2084 = vld [vmem:[%s5 + $0xe8] sm:$0xff]
        %v2085 = vld [vmem:[%s5 + $0xf0] sm:$0xff]
        %v2086 = vld [vmem:[%s5 + $0xf8] sm:$0xff]
        %v2087 = vld [vmem:[%s5 + $0x100] sm:$0xff]
        %v2088 = vld [vmem:[%s5 + $0x108] sm:$0xff]
        %v2089 = vld [vmem:[%s5 + $0x110] sm:$0xff]
        %v2090 = vld [vmem:[%s5 + $0x118] sm:$0xff]
        %v2091 = vld [vmem:[%s5 + $0x120] sm:$0xff]
        %v2092 = vld [vmem:[%s5 + $0x128] sm:$0xff]
        %v2093 = vld [vmem:[%s5 + $0x130] sm:$0xff]
        %v2094 = vld [vmem:[%s5 + $0x138] sm:$0xff]
        %v2095 = vld [vmem:[%s5 + $0x140] sm:$0xff]
        %v2096 = vld [vmem:[%s5 + $0x148] sm:$0xff]
        %v2097 = vld [vmem:[%s5 + $0x150] sm:$0xff]
        %v2098 = vld [vmem:[%s5 + $0x158] sm:$0xff]
        %v2099 = vld [vmem:[%s5 + $0x160] sm:$0xff]
        %v2100 = vld [vmem:[%s5 + $0x168] sm:$0xff]
        %v2101 = vld [vmem:[%s5 + $0x170] sm:$0xff]
        %v2102 = vld [vmem:[%s5 + $0x178] sm:$0xff]
        %v2103 = vld [vmem:[%s5 + $0x180] sm:$0xff]
        %v2104 = vld [vmem:[%s5 + $0x188] sm:$0xff]
        %v2105 = vld [vmem:[%s5 + $0x190] sm:$0xff]
        %v2106 = vld [vmem:[%s5 + $0x198] sm:$0xff]
        %v2107 = vld [vmem:[%s5 + $0x1a0] sm:$0xff]
        %v2108 = vld [vmem:[%s5 + $0x1a8] sm:$0xff]
        %v2109 = vld [vmem:[%s5 + $0x1b0] sm:$0xff]
        %v2110 = vld [vmem:[%s5 + $0x1b8] sm:$0xff]
        %v2111 = vld [vmem:[%s5 + $0x1c0] sm:$0xff]
        %v2112 = vld [vmem:[%s5 + $0x1c8] sm:$0xff]
        %v2113 = vld [vmem:[%s5 + $0x1d0] sm:$0xff]
        %v2114 = vld [vmem:[%s5 + $0x1d8] sm:$0xff]
        %v2115 = vld [vmem:[%s5 + $0x1e0] sm:$0xff]
        %v2116 = vld [vmem:[%s5 + $0x1e8] sm:$0xff]
        %v2117 = vld [vmem:[%s5 + $0x1f0] sm:$0xff]
        %v2118 = vld [vmem:[%s5 + $0x1f8] sm:$0xff]
        %v2119 = vld [vmem:[%s5 + $0x200] sm:$0xff]
        %v2120 = vld [vmem:[%s5 + $0x208] sm:$0xff]
        %v2121 = vld [vmem:[%s5 + $0x210] sm:$0xff]
        %v2122 = vld [vmem:[%s5 + $0x218] sm:$0xff]
        %v2123 = vld [vmem:[%s5 + $0x220] sm:$0xff]
        %v2124 = vld [vmem:[%s5 + $0x228] sm:$0xff]
        %v2125 = vld [vmem:[%s5 + $0x230] sm:$0xff]
        %v2126 = vld [vmem:[%s5 + $0x238] sm:$0xff]
        %v2127 = vld [vmem:[%s5 + $0x240] sm:$0xff]
        %v2128 = vld [vmem:[%s5 + $0x248] sm:$0xff]
        %v2129 = vld [vmem:[%s5 + $0x250] sm:$0xff]
        %v2130 = vld [vmem:[%s5 + $0x258] sm:$0xff]
        %v2131 = vld [vmem:[%s5 + $0x260] sm:$0xff]
        %v2132 = vld [vmem:[%s5 + $0x268] sm:$0xff]
        %v2133 = vld [vmem:[%s5 + $0x270] sm:$0xff]
        %v2134 = vld [vmem:[%s5 + $0x278] sm:$0xff]
        %v2135 = vld [vmem:[%s5 + $0x280] sm:$0xff]
        %v2136 = vld [vmem:[%s5 + $0x288] sm:$0xff]
        %v2137 = vld [vmem:[%s5 + $0x290] sm:$0xff]
        %v2138 = vld [vmem:[%s5 + $0x298] sm:$0xff]
        %v2139 = vld [vmem:[%s5 + $0x2a0] sm:$0xff]
        %v2140 = vld [vmem:[%s5 + $0x2a8] sm:$0xff]
        %v2141 = vld [vmem:[%s5 + $0x2b0] sm:$0xff]
        %v2142 = vld [vmem:[%s5 + $0x2b8] sm:$0xff]
        %v2143 = vld [vmem:[%s5 + $0x2c0] sm:$0xff]
        %v2144 = vld [vmem:[%s5 + $0x2c8] sm:$0xff]
        %v2145 = vld [vmem:[%s5 + $0x2d0] sm:$0xff]
        %v2146 = vld [vmem:[%s5 + $0x2d8] sm:$0xff]
        %v2147 = vld [vmem:[%s5 + $0x2e0] sm:$0xff]
        %v2148 = vld [vmem:[%s5 + $0x2e8] sm:$0xff]
        %v2149 = vld [vmem:[%s5 + $0x2f0] sm:$0xff]
        %v2150 = vld [vmem:[%s5 + $0x2f8] sm:$0xff]
        %v2151 = vld [vmem:[%s5 + $0x300] sm:$0xff]
        %v2152 = vld [vmem:[%s5 + $0x308] sm:$0xff]
        %v2153 = vld [vmem:[%s5 + $0x310] sm:$0xff]
        %v2154 = vld [vmem:[%s5 + $0x318] sm:$0xff]
        %v2155 = vld [vmem:[%s5 + $0x320] sm:$0xff]
        %v2156 = vld [vmem:[%s5 + $0x328] sm:$0xff]
        %v2157 = vld [vmem:[%s5 + $0x330] sm:$0xff]
        %v2158 = vld [vmem:[%s5 + $0x338] sm:$0xff]
        %v2159 = vld [vmem:[%s5 + $0x340] sm:$0xff]
        %v2160 = vld [vmem:[%s5 + $0x348] sm:$0xff]
        %v2161 = vld [vmem:[%s5 + $0x350] sm:$0xff]
        %v2162 = vld [vmem:[%s5 + $0x358] sm:$0xff]
        %v2163 = vld [vmem:[%s5 + $0x360] sm:$0xff]
        %v2164 = vld [vmem:[%s5 + $0x368] sm:$0xff]
        %v2165 = vld [vmem:[%s5 + $0x370] sm:$0xff]
        %v2166 = vld [vmem:[%s5 + $0x378] sm:$0xff]
        %v2167 = vld [vmem:[%s5 + $0x380] sm:$0xff]
        %v2168 = vld [vmem:[%s5 + $0x388] sm:$0xff]
        %v2169 = vld [vmem:[%s5 + $0x390] sm:$0xff]
        %v2170 = vld [vmem:[%s5 + $0x398] sm:$0xff]
        %v2171 = vld [vmem:[%s5 + $0x3a0] sm:$0xff]
        %v2172 = vld [vmem:[%s5 + $0x3a8] sm:$0xff]
        %v2173 = vld [vmem:[%s5 + $0x3b0] sm:$0xff]
        %v2174 = vld [vmem:[%s5 + $0x3b8] sm:$0xff]
        %v2175 = vld [vmem:[%s5 + $0x3c0] sm:$0xff]
        %v2176 = vld [vmem:[%s5 + $0x3c8] sm:$0xff]
        %v2177 = vld [vmem:[%s5 + $0x3d0] sm:$0xff]
        %v2178 = vld [vmem:[%s5 + $0x3d8] sm:$0xff]
        %v2179 = vld [vmem:[%s5 + $0x3e0] sm:$0xff]
        %v2180 = vld [vmem:[%s5 + $0x3e8] sm:$0xff]
        %v2181 = vld [vmem:[%s5 + $0x3f0] sm:$0xff]
        %v2182 = vld [vmem:[%s5 + $0x3f8] sm:$0xff]
        %v2183 = vld [vmem:[%s5 + $0x400] sm:$0xff]
        %v2184 = vld [vmem:[%s5 + $0x408] sm:$0xff]
        %v2185 = vld [vmem:[%s5 + $0x410] sm:$0xff]
        %v2186 = vld [vmem:[%s5 + $0x418] sm:$0xff]
        %v2187 = vld [vmem:[%s5 + $0x420] sm:$0xff]
        %v2188 = vld [vmem:[%s5 + $0x428] sm:$0xff]
        %v2189 = vld [vmem:[%s5 + $0x430] sm:$0xff]
        %v2190 = vld [vmem:[%s5 + $0x438] sm:$0xff]
        %v2191 = vld [vmem:[%s5 + $0x440] sm:$0xff]
        %v2192 = vld [vmem:[%s5 + $0x448] sm:$0xff]
        %v2193 = vld [vmem:[%s5 + $0x450] sm:$0xff]
        %v2194 = vld [vmem:[%s5 + $0x458] sm:$0xff]
        %v2195 = vld [vmem:[%s5 + $0x460] sm:$0xff]
        %v2196 = vld [vmem:[%s5 + $0x468] sm:$0xff]
        %v2197 = vld [vmem:[%s5 + $0x470] sm:$0xff]
        %v2198 = vld [vmem:[%s5 + $0x478] sm:$0xff]
        %v2199 = vld [vmem:[%s5 + $0x480] sm:$0xff]
        %v2200 = vld [vmem:[%s5 + $0x488] sm:$0xff]
        %v2201 = vld [vmem:[%s5 + $0x490] sm:$0xff]
        %v2202 = vld [vmem:[%s5 + $0x498] sm:$0xff]
        %v2203 = vld [vmem:[%s5 + $0x4a0] sm:$0xff]
        %v2204 = vld [vmem:[%s5 + $0x4a8] sm:$0xff]
        %v2205 = vld [vmem:[%s5 + $0x4b0] sm:$0xff]
        %v2206 = vld [vmem:[%s5 + $0x4b8] sm:$0xff]
        %v2207 = vld [vmem:[%s5 + $0x4c0] sm:$0xff]
        %v2208 = vld [vmem:[%s5 + $0x4c8] sm:$0xff]
        %v2209 = vld [vmem:[%s5 + $0x4d0] sm:$0xff]
        %v2210 = vld [vmem:[%s5 + $0x4d8] sm:$0xff]
        %v2211 = vld [vmem:[%s5 + $0x4e0] sm:$0xff]
        %v2212 = vld [vmem:[%s5 + $0x4e8] sm:$0xff]
        %v2213 = vld [vmem:[%s5 + $0x4f0] sm:$0xff]
        %v2214 = vld [vmem:[%s5 + $0x4f8] sm:$0xff]
        %v2215 = vld [vmem:[%s5 + $0x500] sm:$0xff]
        %v2216 = vld [vmem:[%s5 + $0x508] sm:$0xff]
        %v2217 = vld [vmem:[%s5 + $0x510] sm:$0xff]
        %v2218 = vld [vmem:[%s5 + $0x518] sm:$0xff]
        %v2219 = vld [vmem:[%s5 + $0x520] sm:$0xff]
        %v2220 = vld [vmem:[%s5 + $0x528] sm:$0xff]
        %v2221 = vld [vmem:[%s5 + $0x530] sm:$0xff]
        %v2222 = vld [vmem:[%s5 + $0x538] sm:$0xff]
        %v2223 = vld [vmem:[%s5 + $0x540] sm:$0xff]
        %v2224 = vld [vmem:[%s5 + $0x548] sm:$0xff]
        %v2225 = vld [vmem:[%s5 + $0x550] sm:$0xff]
        %v2226 = vld [vmem:[%s5 + $0x558] sm:$0xff]
        %v2227 = vld [vmem:[%s5 + $0x560] sm:$0xff]
        %v2228 = vld [vmem:[%s5 + $0x568] sm:$0xff]
        %v2229 = vld [vmem:[%s5 + $0x570] sm:$0xff]
        %v2230 = vld [vmem:[%s5 + $0x578] sm:$0xff]
        %v2231 = vld [vmem:[%s5 + $0x580] sm:$0xff]
        %v2232 = vld [vmem:[%s5 + $0x588] sm:$0xff]
        %v2233 = vld [vmem:[%s5 + $0x590] sm:$0xff]
        %v2234 = vld [vmem:[%s5 + $0x598] sm:$0xff]
        %v2235 = vld [vmem:[%s5 + $0x5a0] sm:$0xff]
        %v2236 = vld [vmem:[%s5 + $0x5a8] sm:$0xff]
        %v2237 = vld [vmem:[%s5 + $0x5b0] sm:$0xff]
        %v2238 = vld [vmem:[%s5 + $0x5b8] sm:$0xff]
        %v2239 = vld [vmem:[%s5 + $0x5c0] sm:$0xff]
        %v2240 = vld [vmem:[%s5 + $0x5c8] sm:$0xff]
        %v2241 = vld [vmem:[%s5 + $0x5d0] sm:$0xff]
        %v2242 = vld [vmem:[%s5 + $0x5d8] sm:$0xff]
        %v2243 = vld [vmem:[%s5 + $0x5e0] sm:$0xff]
        %v2244 = vld [vmem:[%s5 + $0x5e8] sm:$0xff]
        %v2245 = vld [vmem:[%s5 + $0x5f0] sm:$0xff]
        %v2246 = vld [vmem:[%s5 + $0x5f8] sm:$0xff]
        %v2247 = vld [vmem:[%s5 + $0x600] sm:$0xff]
        %v2248 = vld [vmem:[%s5 + $0x608] sm:$0xff]
        %v2249 = vld [vmem:[%s5 + $0x610] sm:$0xff]
        %v2250 = vld [vmem:[%s5 + $0x618] sm:$0xff]
        %v2251 = vld [vmem:[%s5 + $0x620] sm:$0xff]
        %v2252 = vld [vmem:[%s5 + $0x628] sm:$0xff]
        %v2253 = vld [vmem:[%s5 + $0x630] sm:$0xff]
        %v2254 = vld [vmem:[%s5 + $0x638] sm:$0xff]
        %v2255 = vld [vmem:[%s5 + $0x640] sm:$0xff]
        %v2256 = vld [vmem:[%s5 + $0x648] sm:$0xff]
        %v2257 = vld [vmem:[%s5 + $0x650] sm:$0xff]
        %v2258 = vld [vmem:[%s5 + $0x658] sm:$0xff]
        %v2259 = vld [vmem:[%s5 + $0x660] sm:$0xff]
        %v2260 = vld [vmem:[%s5 + $0x668] sm:$0xff]
        %v2261 = vld [vmem:[%s5 + $0x670] sm:$0xff]
        %v2262 = vld [vmem:[%s5 + $0x678] sm:$0xff]
        %v2263 = vld [vmem:[%s5 + $0x680] sm:$0xff]
        %v2264 = vld [vmem:[%s5 + $0x688] sm:$0xff]
        %v2265 = vld [vmem:[%s5 + $0x690] sm:$0xff]
        %v2266 = vld [vmem:[%s5 + $0x698] sm:$0xff]
        %v2267 = vld [vmem:[%s5 + $0x6a0] sm:$0xff]
        %v2268 = vld [vmem:[%s5 + $0x6a8] sm:$0xff]
        %v2269 = vld [vmem:[%s5 + $0x6b0] sm:$0xff]
        %v2270 = vld [vmem:[%s5 + $0x6b8] sm:$0xff]
        %v2271 = vld [vmem:[%s5 + $0x6c0] sm:$0xff]
        %v2272 = vld [vmem:[%s5 + $0x6c8] sm:$0xff]
        %v2273 = vld [vmem:[%s5 + $0x6d0] sm:$0xff]
        %v2274 = vld [vmem:[%s5 + $0x6d8] sm:$0xff]
        %v2275 = vld [vmem:[%s5 + $0x6e0] sm:$0xff]
        %v2276 = vld [vmem:[%s5 + $0x6e8] sm:$0xff]
        %v2277 = vld [vmem:[%s5 + $0x6f0] sm:$0xff]
        %v2278 = vld [vmem:[%s5 + $0x6f8] sm:$0xff]
        %v2279 = vld [vmem:[%s5 + $0x700] sm:$0xff]
        %v2280 = vld [vmem:[%s5 + $0x708] sm:$0xff]
        %v2281 = vld [vmem:[%s5 + $0x710] sm:$0xff]
        %v2282 = vld [vmem:[%s5 + $0x718] sm:$0xff]
        %v2283 = vld [vmem:[%s5 + $0x720] sm:$0xff]
        %v2284 = vld [vmem:[%s5 + $0x728] sm:$0xff]
        %v2285 = vld [vmem:[%s5 + $0x730] sm:$0xff]
        %v2286 = vld [vmem:[%s5 + $0x738] sm:$0xff]
        %v2287 = vld [vmem:[%s5 + $0x740] sm:$0xff]
        %v2288 = vld [vmem:[%s5 + $0x748] sm:$0xff]
        %v2289 = vld [vmem:[%s5 + $0x750] sm:$0xff]
        %v2290 = vld [vmem:[%s5 + $0x758] sm:$0xff]
        %v2291 = vld [vmem:[%s5 + $0x760] sm:$0xff]
        %v2292 = vld [vmem:[%s5 + $0x768] sm:$0xff]
        %v2293 = vld [vmem:[%s5 + $0x770] sm:$0xff]
        %v2294 = vld [vmem:[%s5 + $0x778] sm:$0xff]
        %v2295 = vld [vmem:[%s5 + $0x780] sm:$0xff]
        %v2296 = vld [vmem:[%s5 + $0x788] sm:$0xff]
        %v2297 = vld [vmem:[%s5 + $0x790] sm:$0xff]
        %v2298 = vld [vmem:[%s5 + $0x798] sm:$0xff]
        %v2299 = vld [vmem:[%s5 + $0x7a0] sm:$0xff]
        %v2300 = vld [vmem:[%s5 + $0x7a8] sm:$0xff]
        %v2301 = vld [vmem:[%s5 + $0x7b0] sm:$0xff]
        %v2302 = vld [vmem:[%s5 + $0x7b8] sm:$0xff]
        %v2303 = vld [vmem:[%s5 + $0x7c0] sm:$0xff]
        %v2304 = vld [vmem:[%s5 + $0x7c8] sm:$0xff]
        %v2305 = vld [vmem:[%s5 + $0x7d0] sm:$0xff]
        %v2306 = vld [vmem:[%s5 + $0x7d8] sm:$0xff]
        %v2307 = vld [vmem:[%s5 + $0x7e0] sm:$0xff]
        %v2308 = vld [vmem:[%s5 + $0x7e8] sm:$0xff]
        %v2309 = vld [vmem:[%s5 + $0x7f0] sm:$0xff]
        %v2310 = vld [vmem:[%s5 + $0x7f8] sm:$0xff]
        %v2311 = vld [vmem:[#allocation2] sm:$0xff]
        %v2312 = vld [vmem:[#allocation2 + $0x8] sm:$0xff]
        %v2313 = vpack.c.bf16 %v2311, %v2311
        %v2314 = vpack.c.bf16 %v2312, %v2312
        %v2315 = vld [vmem:[#allocation7] sm:$0xff]
        %v2316 = vld [vmem:[#allocation7 + $0x8] sm:$0xff]
        %v2317 = vld [vmem:[#allocation7 + $0x10] sm:$0xff]
        %v2318 = vld [vmem:[#allocation7 + $0x18] sm:$0xff]
        %v2319 = vld [vmem:[#allocation7 + $0x20] sm:$0xff]
        %v2320 = vld [vmem:[#allocation7 + $0x28] sm:$0xff]
        %v2321 = vld [vmem:[#allocation7 + $0x30] sm:$0xff]
        %v2322 = vld [vmem:[#allocation7 + $0x38] sm:$0xff]
        %v2323 = vld [vmem:[#allocation7 + $0x40] sm:$0xff]
        %v2324 = vld [vmem:[#allocation7 + $0x48] sm:$0xff]
        %v2325 = vld [vmem:[#allocation7 + $0x50] sm:$0xff]
        %v2326 = vld [vmem:[#allocation7 + $0x58] sm:$0xff]
        %v2327 = vld [vmem:[#allocation7 + $0x60] sm:$0xff]
        %v2328 = vld [vmem:[#allocation7 + $0x68] sm:$0xff]
        %v2329 = vld [vmem:[#allocation7 + $0x70] sm:$0xff]
        %v2330 = vld [vmem:[#allocation7 + $0x78] sm:$0xff]
        %v2331 = vld [vmem:[#allocation7 + $0x80] sm:$0xff]
        %v2332 = vld [vmem:[#allocation7 + $0x88] sm:$0xff]
        %v2333 = vld [vmem:[#allocation7 + $0x90] sm:$0xff]
        %v2334 = vld [vmem:[#allocation7 + $0x98] sm:$0xff]
        %v2335 = vld [vmem:[#allocation7 + $0xa0] sm:$0xff]
        %v2336 = vld [vmem:[#allocation7 + $0xa8] sm:$0xff]
        %v2337 = vld [vmem:[#allocation7 + $0xb0] sm:$0xff]
        %v2338 = vld [vmem:[#allocation7 + $0xb8] sm:$0xff]
        %v2339 = vld [vmem:[#allocation7 + $0xc0] sm:$0xff]
        %v2340 = vld [vmem:[#allocation7 + $0xc8] sm:$0xff]
        %v2341 = vld [vmem:[#allocation7 + $0xd0] sm:$0xff]
        %v2342 = vld [vmem:[#allocation7 + $0xd8] sm:$0xff]
        %v2343 = vld [vmem:[#allocation7 + $0xe0] sm:$0xff]
        %v2344 = vld [vmem:[#allocation7 + $0xe8] sm:$0xff]
        %v2345 = vld [vmem:[#allocation7 + $0xf0] sm:$0xff]
        %v2346 = vld [vmem:[#allocation7 + $0xf8] sm:$0xff]
        %v2347 = vld [vmem:[#allocation7 + $0x100] sm:$0xff]
        %v2348 = vld [vmem:[#allocation7 + $0x108] sm:$0xff]
        %v2349 = vld [vmem:[#allocation7 + $0x110] sm:$0xff]
        %v2350 = vld [vmem:[#allocation7 + $0x118] sm:$0xff]
        %v2351 = vld [vmem:[#allocation7 + $0x120] sm:$0xff]
        %v2352 = vld [vmem:[#allocation7 + $0x128] sm:$0xff]
        %v2353 = vld [vmem:[#allocation7 + $0x130] sm:$0xff]
        %v2354 = vld [vmem:[#allocation7 + $0x138] sm:$0xff]
        %v2355 = vld [vmem:[#allocation7 + $0x140] sm:$0xff]
        %v2356 = vld [vmem:[#allocation7 + $0x148] sm:$0xff]
        %v2357 = vld [vmem:[#allocation7 + $0x150] sm:$0xff]
        %v2358 = vld [vmem:[#allocation7 + $0x158] sm:$0xff]
        %v2359 = vld [vmem:[#allocation7 + $0x160] sm:$0xff]
        %v2360 = vld [vmem:[#allocation7 + $0x168] sm:$0xff]
        %v2361 = vld [vmem:[#allocation7 + $0x170] sm:$0xff]
        %v2362 = vld [vmem:[#allocation7 + $0x178] sm:$0xff]
        %v2363 = vld [vmem:[#allocation7 + $0x180] sm:$0xff]
        %v2364 = vld [vmem:[#allocation7 + $0x188] sm:$0xff]
        %v2365 = vld [vmem:[#allocation7 + $0x190] sm:$0xff]
        %v2366 = vld [vmem:[#allocation7 + $0x198] sm:$0xff]
        %v2367 = vld [vmem:[#allocation7 + $0x1a0] sm:$0xff]
        %v2368 = vld [vmem:[#allocation7 + $0x1a8] sm:$0xff]
        %v2369 = vld [vmem:[#allocation7 + $0x1b0] sm:$0xff]
        %v2370 = vld [vmem:[#allocation7 + $0x1b8] sm:$0xff]
        %v2371 = vld [vmem:[#allocation7 + $0x1c0] sm:$0xff]
        %v2372 = vld [vmem:[#allocation7 + $0x1c8] sm:$0xff]
        %v2373 = vld [vmem:[#allocation7 + $0x1d0] sm:$0xff]
        %v2374 = vld [vmem:[#allocation7 + $0x1d8] sm:$0xff]
        %v2375 = vld [vmem:[#allocation7 + $0x1e0] sm:$0xff]
        %v2376 = vld [vmem:[#allocation7 + $0x1e8] sm:$0xff]
        %v2377 = vld [vmem:[#allocation7 + $0x1f0] sm:$0xff]
        %v2378 = vld [vmem:[#allocation7 + $0x1f8] sm:$0xff]
        %v2443 = vunpack.c.l.b16 %v2315
        %v2444 = vunpack.c.h.b16 %v2315
        %v2445 = vunpack.c.l.b16 %v2316
        %v2446 = vunpack.c.h.b16 %v2316
        %v2447 = vunpack.c.l.b16 %v2317
        %v2448 = vunpack.c.h.b16 %v2317
        %v2449 = vunpack.c.l.b16 %v2318
        %v2450 = vunpack.c.h.b16 %v2318
        %v2451 = vunpack.c.l.b16 %v2319
        %v2452 = vunpack.c.h.b16 %v2319
        %v2453 = vunpack.c.l.b16 %v2320
        %v2454 = vunpack.c.h.b16 %v2320
        %v2455 = vunpack.c.l.b16 %v2321
        %v2456 = vunpack.c.h.b16 %v2321
        %v2457 = vunpack.c.l.b16 %v2322
        %v2458 = vunpack.c.h.b16 %v2322
        %v2459 = vunpack.c.l.b16 %v2323
        %v2460 = vunpack.c.h.b16 %v2323
        %v2461 = vunpack.c.l.b16 %v2324
        %v2462 = vunpack.c.h.b16 %v2324
        %v2463 = vunpack.c.l.b16 %v2325
        %v2464 = vunpack.c.h.b16 %v2325
        %v2465 = vunpack.c.l.b16 %v2326
        %v2466 = vunpack.c.h.b16 %v2326
        %v2467 = vunpack.c.l.b16 %v2327
        %v2468 = vunpack.c.h.b16 %v2327
        %v2469 = vunpack.c.l.b16 %v2328
        %v2470 = vunpack.c.h.b16 %v2328
        %v2471 = vunpack.c.l.b16 %v2329
        %v2472 = vunpack.c.h.b16 %v2329
        %v2473 = vunpack.c.l.b16 %v2330
        %v2474 = vunpack.c.h.b16 %v2330
        %v2475 = vunpack.c.l.b16 %v2331
        %v2476 = vunpack.c.h.b16 %v2331
        %v2477 = vunpack.c.l.b16 %v2332
        %v2478 = vunpack.c.h.b16 %v2332
        %v2479 = vunpack.c.l.b16 %v2333
        %v2480 = vunpack.c.h.b16 %v2333
        %v2481 = vunpack.c.l.b16 %v2334
        %v2482 = vunpack.c.h.b16 %v2334
        %v2483 = vunpack.c.l.b16 %v2335
        %v2484 = vunpack.c.h.b16 %v2335
        %v2485 = vunpack.c.l.b16 %v2336
        %v2486 = vunpack.c.h.b16 %v2336
        %v2487 = vunpack.c.l.b16 %v2337
        %v2488 = vunpack.c.h.b16 %v2337
        %v2489 = vunpack.c.l.b16 %v2338
        %v2490 = vunpack.c.h.b16 %v2338
        %v2491 = vunpack.c.l.b16 %v2339
        %v2492 = vunpack.c.h.b16 %v2339
        %v2493 = vunpack.c.l.b16 %v2340
        %v2494 = vunpack.c.h.b16 %v2340
        %v2495 = vunpack.c.l.b16 %v2341
        %v2496 = vunpack.c.h.b16 %v2341
        %v2497 = vunpack.c.l.b16 %v2342
        %v2498 = vunpack.c.h.b16 %v2342
        %v2499 = vunpack.c.l.b16 %v2343
        %v2500 = vunpack.c.h.b16 %v2343
        %v2501 = vunpack.c.l.b16 %v2344
        %v2502 = vunpack.c.h.b16 %v2344
        %v2503 = vunpack.c.l.b16 %v2345
        %v2504 = vunpack.c.h.b16 %v2345
        %v2505 = vunpack.c.l.b16 %v2346
        %v2506 = vunpack.c.h.b16 %v2346
        %v2507 = vunpack.c.l.b16 %v2347
        %v2508 = vunpack.c.h.b16 %v2347
        %v2509 = vunpack.c.l.b16 %v2348
        %v2510 = vunpack.c.h.b16 %v2348
        %v2511 = vunpack.c.l.b16 %v2349
        %v2512 = vunpack.c.h.b16 %v2349
        %v2513 = vunpack.c.l.b16 %v2350
        %v2514 = vunpack.c.h.b16 %v2350
        %v2515 = vunpack.c.l.b16 %v2351
        %v2516 = vunpack.c.h.b16 %v2351
        %v2517 = vunpack.c.l.b16 %v2352
        %v2518 = vunpack.c.h.b16 %v2352
        %v2519 = vunpack.c.l.b16 %v2353
        %v2520 = vunpack.c.h.b16 %v2353
        %v2521 = vunpack.c.l.b16 %v2354
        %v2522 = vunpack.c.h.b16 %v2354
        %v2523 = vunpack.c.l.b16 %v2355
        %v2524 = vunpack.c.h.b16 %v2355
        %v2525 = vunpack.c.l.b16 %v2356
        %v2526 = vunpack.c.h.b16 %v2356
        %v2527 = vunpack.c.l.b16 %v2357
        %v2528 = vunpack.c.h.b16 %v2357
        %v2529 = vunpack.c.l.b16 %v2358
        %v2530 = vunpack.c.h.b16 %v2358
        %v2531 = vunpack.c.l.b16 %v2359
        %v2532 = vunpack.c.h.b16 %v2359
        %v2533 = vunpack.c.l.b16 %v2360
        %v2534 = vunpack.c.h.b16 %v2360
        %v2535 = vunpack.c.l.b16 %v2361
        %v2536 = vunpack.c.h.b16 %v2361
        %v2537 = vunpack.c.l.b16 %v2362
        %v2538 = vunpack.c.h.b16 %v2362
        %v2539 = vunpack.c.l.b16 %v2363
        %v2540 = vunpack.c.h.b16 %v2363
        %v2541 = vunpack.c.l.b16 %v2364
        %v2542 = vunpack.c.h.b16 %v2364
        %v2543 = vunpack.c.l.b16 %v2365
        %v2544 = vunpack.c.h.b16 %v2365
        %v2545 = vunpack.c.l.b16 %v2366
        %v2546 = vunpack.c.h.b16 %v2366
        %v2547 = vunpack.c.l.b16 %v2367
        %v2548 = vunpack.c.h.b16 %v2367
        %v2549 = vunpack.c.l.b16 %v2368
        %v2550 = vunpack.c.h.b16 %v2368
        %v2551 = vunpack.c.l.b16 %v2369
        %v2552 = vunpack.c.h.b16 %v2369
        %v2553 = vunpack.c.l.b16 %v2370
        %v2554 = vunpack.c.h.b16 %v2370
        %v2555 = vunpack.c.l.b16 %v2371
        %v2556 = vunpack.c.h.b16 %v2371
        %v2557 = vunpack.c.l.b16 %v2372
        %v2558 = vunpack.c.h.b16 %v2372
        %v2559 = vunpack.c.l.b16 %v2373
        %v2560 = vunpack.c.h.b16 %v2373
        %v2561 = vunpack.c.l.b16 %v2374
        %v2562 = vunpack.c.h.b16 %v2374
        %v2563 = vunpack.c.l.b16 %v2375
        %v2564 = vunpack.c.h.b16 %v2375
        %v2565 = vunpack.c.l.b16 %v2376
        %v2566 = vunpack.c.h.b16 %v2376
        %v2567 = vunpack.c.l.b16 %v2377
        %v2568 = vunpack.c.h.b16 %v2377
        %v2569 = vunpack.c.l.b16 %v2378
        %v2570 = vunpack.c.h.b16 %v2378
        %v2571 = vpack.c.b16 %v2447, %v2443
        %v2572 = vpack.c.b16 %v2448, %v2444
        %v2573 = vpack.c.b16 %v2449, %v2445
        %v2574 = vpack.c.b16 %v2450, %v2446
        %v2575 = vpack.c.b16 %v2455, %v2451
        %v2576 = vpack.c.b16 %v2456, %v2452
        %v2577 = vpack.c.b16 %v2457, %v2453
        %v2578 = vpack.c.b16 %v2458, %v2454
        %v2579 = vpack.c.b16 %v2463, %v2459
        %v2580 = vpack.c.b16 %v2464, %v2460
        %v2581 = vpack.c.b16 %v2465, %v2461
        %v2582 = vpack.c.b16 %v2466, %v2462
        %v2583 = vpack.c.b16 %v2471, %v2467
        %v2584 = vpack.c.b16 %v2472, %v2468
        %v2585 = vpack.c.b16 %v2473, %v2469
        %v2586 = vpack.c.b16 %v2474, %v2470
        %v2587 = vpack.c.b16 %v2479, %v2475
        %v2588 = vpack.c.b16 %v2480, %v2476
        %v2589 = vpack.c.b16 %v2481, %v2477
        %v2590 = vpack.c.b16 %v2482, %v2478
        %v2591 = vpack.c.b16 %v2487, %v2483
        %v2592 = vpack.c.b16 %v2488, %v2484
        %v2593 = vpack.c.b16 %v2489, %v2485
        %v2594 = vpack.c.b16 %v2490, %v2486
        %v2595 = vpack.c.b16 %v2495, %v2491
        %v2596 = vpack.c.b16 %v2496, %v2492
        %v2597 = vpack.c.b16 %v2497, %v2493
        %v2598 = vpack.c.b16 %v2498, %v2494
        %v2599 = vpack.c.b16 %v2503, %v2499
        %v2600 = vpack.c.b16 %v2504, %v2500
        %v2601 = vpack.c.b16 %v2505, %v2501
        %v2602 = vpack.c.b16 %v2506, %v2502
        %v2603 = vpack.c.b16 %v2511, %v2507
        %v2604 = vpack.c.b16 %v2512, %v2508
        %v2605 = vpack.c.b16 %v2513, %v2509
        %v2606 = vpack.c.b16 %v2514, %v2510
        %v2607 = vpack.c.b16 %v2519, %v2515
        %v2608 = vpack.c.b16 %v2520, %v2516
        %v2609 = vpack.c.b16 %v2521, %v2517
        %v2610 = vpack.c.b16 %v2522, %v2518
        %v2611 = vpack.c.b16 %v2527, %v2523
        %v2612 = vpack.c.b16 %v2528, %v2524
        %v2613 = vpack.c.b16 %v2529, %v2525
        %v2614 = vpack.c.b16 %v2530, %v2526
        %v2615 = vpack.c.b16 %v2535, %v2531
        %v2616 = vpack.c.b16 %v2536, %v2532
        %v2617 = vpack.c.b16 %v2537, %v2533
        %v2618 = vpack.c.b16 %v2538, %v2534
        %v2619 = vpack.c.b16 %v2543, %v2539
        %v2620 = vpack.c.b16 %v2544, %v2540
        %v2621 = vpack.c.b16 %v2545, %v2541
        %v2622 = vpack.c.b16 %v2546, %v2542
        %v2623 = vpack.c.b16 %v2551, %v2547
        %v2624 = vpack.c.b16 %v2552, %v2548
        %v2625 = vpack.c.b16 %v2553, %v2549
        %v2626 = vpack.c.b16 %v2554, %v2550
        %v2627 = vpack.c.b16 %v2559, %v2555
        %v2628 = vpack.c.b16 %v2560, %v2556
        %v2629 = vpack.c.b16 %v2561, %v2557
        %v2630 = vpack.c.b16 %v2562, %v2558
        %v2631 = vpack.c.b16 %v2567, %v2563
        %v2632 = vpack.c.b16 %v2568, %v2564
        %v2633 = vpack.c.b16 %v2569, %v2565
        %v2634 = vpack.c.b16 %v2570, %v2566
        %2699 = vmatprep.subr.bf16.mxu0 %v2572
        %2700 = vmatpush1.bf16.msra.mxu0 %v2571
        %2701 = vmatprep.subr.bf16.mxu0 %v2576
        %2702 = vmatpush1.bf16.msra.mxu0 %v2575
        %2703 = vmatprep.subr.bf16.mxu0 %v2580
        %2704 = vmatpush1.bf16.msra.mxu0 %v2579
        %2705 = vmatprep.subr.bf16.mxu0 %v2584
        %2706 = vmatpush1.bf16.msra.mxu0 %v2583
        %2707 = vmatprep.subr.bf16.mxu0 %v2588
        %2708 = vmatpush1.bf16.msra.mxu0 %v2587
        %2709 = vmatprep.subr.bf16.mxu0 %v2592
        %2710 = vmatpush1.bf16.msra.mxu0 %v2591
        %2711 = vmatprep.subr.bf16.mxu0 %v2596
        %2712 = vmatpush1.bf16.msra.mxu0 %v2595
        %2713 = vmatprep.subr.bf16.mxu0 %v2600
        %2714 = vmatpush1.bf16.msra.mxu0 %v2599
        %2715 = vmatprep.subr.bf16.mxu0 %v2604
        %2716 = vmatpush1.bf16.msra.mxu0 %v2603
        %2717 = vmatprep.subr.bf16.mxu0 %v2608
        %2718 = vmatpush1.bf16.msra.mxu0 %v2607
        %2719 = vmatprep.subr.bf16.mxu0 %v2612
        %2720 = vmatpush1.bf16.msra.mxu0 %v2611
        %2721 = vmatprep.subr.bf16.mxu0 %v2616
        %2722 = vmatpush1.bf16.msra.mxu0 %v2615
        %2723 = vmatprep.subr.bf16.mxu0 %v2620
        %2724 = vmatpush1.bf16.msra.mxu0 %v2619
        %2725 = vmatprep.subr.bf16.mxu0 %v2624
        %2726 = vmatpush1.bf16.msra.mxu0 %v2623
        %2727 = vmatprep.subr.bf16.mxu0 %v2628
        %2728 = vmatpush1.bf16.msra.mxu0 %v2627
        %2729 = vmatprep.subr.bf16.mxu0 %v2632
        %2730 = vmatpush1.bf16.msra.mxu0 %v2631
        %2731 = vmatprep.mubr.bf16.mxu0 %v2314
        %2732 = vmatmul.mubr.bf16.gmra.mrb[0].mxu0 %v2313
        %v2733 = vpop.f32.mrb[0].mxu0
        %v2734 = vadd.f32 0.0, %v2733
        %v2735 = vpop.f32.mrb[0].mxu0
        %v2736 = vadd.f32 0.0, %v2735
        %v2737 = vpop.f32.mrb[0].mxu0
        %v2738 = vpop.f32.mrb[0].mxu0
        %2739 = vdwg.mxu0
        %2740 = vmatprep.subr.bf16.mxu0 %v2574
        %2741 = vmatpush1.bf16.msra.mxu0 %v2573
        %2742 = vmatprep.subr.bf16.mxu0 %v2578
        %2743 = vmatpush1.bf16.msra.mxu0 %v2577
        %2744 = vmatprep.subr.bf16.mxu0 %v2582
        %2745 = vmatpush1.bf16.msra.mxu0 %v2581
        %2746 = vmatprep.subr.bf16.mxu0 %v2586
        %2747 = vmatpush1.bf16.msra.mxu0 %v2585
        %2748 = vmatprep.subr.bf16.mxu0 %v2590
        %2749 = vmatpush1.bf16.msra.mxu0 %v2589
        %2750 = vmatprep.subr.bf16.mxu0 %v2594
        %2751 = vmatpush1.bf16.msra.mxu0 %v2593
        %2752 = vmatprep.subr.bf16.mxu0 %v2598
        %2753 = vmatpush1.bf16.msra.mxu0 %v2597
        %2754 = vmatprep.subr.bf16.mxu0 %v2602
        %2755 = vmatpush1.bf16.msra.mxu0 %v2601
        %2756 = vmatprep.subr.bf16.mxu0 %v2606
        %2757 = vmatpush1.bf16.msra.mxu0 %v2605
        %2758 = vmatprep.subr.bf16.mxu0 %v2610
        %2759 = vmatpush1.bf16.msra.mxu0 %v2609
        %2760 = vmatprep.subr.bf16.mxu0 %v2614
        %2761 = vmatpush1.bf16.msra.mxu0 %v2613
        %2762 = vmatprep.subr.bf16.mxu0 %v2618
        %2763 = vmatpush1.bf16.msra.mxu0 %v2617
        %2764 = vmatprep.subr.bf16.mxu0 %v2622
        %2765 = vmatpush1.bf16.msra.mxu0 %v2621
        %2766 = vmatprep.subr.bf16.mxu0 %v2626
        %2767 = vmatpush1.bf16.msra.mxu0 %v2625
        %2768 = vmatprep.subr.bf16.mxu0 %v2630
        %2769 = vmatpush1.bf16.msra.mxu0 %v2629
        %2770 = vmatprep.subr.bf16.mxu0 %v2634
        %2771 = vmatpush1.bf16.msra.mxu0 %v2633
        %2772 = vmatprep.mubr.bf16.mxu0 %v2314
        %2773 = vmatmul.mubr.bf16.gmra.mrb[0].mxu0 %v2313
        %v2774 = vpop.f32.mrb[0].mxu0
        %v2775 = vadd.f32 0.0, %v2774
        %v2776 = vpop.f32.mrb[0].mxu0
        %v2777 = vadd.f32 0.0, %v2776
        %v2778 = vpop.f32.mrb[0].mxu0
        %v2779 = vpop.f32.mrb[0].mxu0
        %2780 = vdwg.mxu0
        %v3037 = vunpack.c.l.b16 %v2055
        %v3038 = vunpack.c.h.b16 %v2055
        %v3039 = vunpack.c.l.b16 %v2056
        %v3040 = vunpack.c.h.b16 %v2056
        %v3041 = vunpack.c.l.b16 %v2057
        %v3042 = vunpack.c.h.b16 %v2057
        %v3043 = vunpack.c.l.b16 %v2058
        %v3044 = vunpack.c.h.b16 %v2058
        %v3045 = vunpack.c.l.b16 %v2059
        %v3046 = vunpack.c.h.b16 %v2059
        %v3047 = vunpack.c.l.b16 %v2060
        %v3048 = vunpack.c.h.b16 %v2060
        %v3049 = vunpack.c.l.b16 %v2061
        %v3050 = vunpack.c.h.b16 %v2061
        %v3051 = vunpack.c.l.b16 %v2062
        %v3052 = vunpack.c.h.b16 %v2062
        %v3053 = vunpack.c.l.b16 %v2063
        %v3054 = vunpack.c.h.b16 %v2063
        %v3055 = vunpack.c.l.b16 %v2064
        %v3056 = vunpack.c.h.b16 %v2064
        %v3057 = vunpack.c.l.b16 %v2065
        %v3058 = vunpack.c.h.b16 %v2065
        %v3059 = vunpack.c.l.b16 %v2066
        %v3060 = vunpack.c.h.b16 %v2066
        %v3061 = vunpack.c.l.b16 %v2067
        %v3062 = vunpack.c.h.b16 %v2067
        %v3063 = vunpack.c.l.b16 %v2068
        %v3064 = vunpack.c.h.b16 %v2068
        %v3065 = vunpack.c.l.b16 %v2069
        %v3066 = vunpack.c.h.b16 %v2069
        %v3067 = vunpack.c.l.b16 %v2070
        %v3068 = vunpack.c.h.b16 %v2070
        %v3069 = vunpack.c.l.b16 %v2071
        %v3070 = vunpack.c.h.b16 %v2071
        %v3071 = vunpack.c.l.b16 %v2072
        %v3072 = vunpack.c.h.b16 %v2072
        %v3073 = vunpack.c.l.b16 %v2073
        %v3074 = vunpack.c.h.b16 %v2073
        %v3075 = vunpack.c.l.b16 %v2074
        %v3076 = vunpack.c.h.b16 %v2074
        %v3077 = vunpack.c.l.b16 %v2075
        %v3078 = vunpack.c.h.b16 %v2075
        %v3079 = vunpack.c.l.b16 %v2076
        %v3080 = vunpack.c.h.b16 %v2076
        %v3081 = vunpack.c.l.b16 %v2077
        %v3082 = vunpack.c.h.b16 %v2077
        %v3083 = vunpack.c.l.b16 %v2078
        %v3084 = vunpack.c.h.b16 %v2078
        %v3085 = vunpack.c.l.b16 %v2079
        %v3086 = vunpack.c.h.b16 %v2079
        %v3087 = vunpack.c.l.b16 %v2080
        %v3088 = vunpack.c.h.b16 %v2080
        %v3089 = vunpack.c.l.b16 %v2081
        %v3090 = vunpack.c.h.b16 %v2081
        %v3091 = vunpack.c.l.b16 %v2082
        %v3092 = vunpack.c.h.b16 %v2082
        %v3093 = vunpack.c.l.b16 %v2083
        %v3094 = vunpack.c.h.b16 %v2083
        %v3095 = vunpack.c.l.b16 %v2084
        %v3096 = vunpack.c.h.b16 %v2084
        %v3097 = vunpack.c.l.b16 %v2085
        %v3098 = vunpack.c.h.b16 %v2085
        %v3099 = vunpack.c.l.b16 %v2086
        %v3100 = vunpack.c.h.b16 %v2086
        %v3101 = vunpack.c.l.b16 %v2087
        %v3102 = vunpack.c.h.b16 %v2087
        %v3103 = vunpack.c.l.b16 %v2088
        %v3104 = vunpack.c.h.b16 %v2088
        %v3105 = vunpack.c.l.b16 %v2089
        %v3106 = vunpack.c.h.b16 %v2089
        %v3107 = vunpack.c.l.b16 %v2090
        %v3108 = vunpack.c.h.b16 %v2090
        %v3109 = vunpack.c.l.b16 %v2091
        %v3110 = vunpack.c.h.b16 %v2091
        %v3111 = vunpack.c.l.b16 %v2092
        %v3112 = vunpack.c.h.b16 %v2092
        %v3113 = vunpack.c.l.b16 %v2093
        %v3114 = vunpack.c.h.b16 %v2093
        %v3115 = vunpack.c.l.b16 %v2094
        %v3116 = vunpack.c.h.b16 %v2094
        %v3117 = vunpack.c.l.b16 %v2095
        %v3118 = vunpack.c.h.b16 %v2095
        %v3119 = vunpack.c.l.b16 %v2096
        %v3120 = vunpack.c.h.b16 %v2096
        %v3121 = vunpack.c.l.b16 %v2097
        %v3122 = vunpack.c.h.b16 %v2097
        %v3123 = vunpack.c.l.b16 %v2098
        %v3124 = vunpack.c.h.b16 %v2098
        %v3125 = vunpack.c.l.b16 %v2099
        %v3126 = vunpack.c.h.b16 %v2099
        %v3127 = vunpack.c.l.b16 %v2100
        %v3128 = vunpack.c.h.b16 %v2100
        %v3129 = vunpack.c.l.b16 %v2101
        %v3130 = vunpack.c.h.b16 %v2101
        %v3131 = vunpack.c.l.b16 %v2102
        %v3132 = vunpack.c.h.b16 %v2102
        %v3133 = vunpack.c.l.b16 %v2103
        %v3134 = vunpack.c.h.b16 %v2103
        %v3135 = vunpack.c.l.b16 %v2104
        %v3136 = vunpack.c.h.b16 %v2104
        %v3137 = vunpack.c.l.b16 %v2105
        %v3138 = vunpack.c.h.b16 %v2105
        %v3139 = vunpack.c.l.b16 %v2106
        %v3140 = vunpack.c.h.b16 %v2106
        %v3141 = vunpack.c.l.b16 %v2107
        %v3142 = vunpack.c.h.b16 %v2107
        %v3143 = vunpack.c.l.b16 %v2108
        %v3144 = vunpack.c.h.b16 %v2108
        %v3145 = vunpack.c.l.b16 %v2109
        %v3146 = vunpack.c.h.b16 %v2109
        %v3147 = vunpack.c.l.b16 %v2110
        %v3148 = vunpack.c.h.b16 %v2110
        %v3149 = vunpack.c.l.b16 %v2111
        %v3150 = vunpack.c.h.b16 %v2111
        %v3151 = vunpack.c.l.b16 %v2112
        %v3152 = vunpack.c.h.b16 %v2112
        %v3153 = vunpack.c.l.b16 %v2113
        %v3154 = vunpack.c.h.b16 %v2113
        %v3155 = vunpack.c.l.b16 %v2114
        %v3156 = vunpack.c.h.b16 %v2114
        %v3157 = vunpack.c.l.b16 %v2115
        %v3158 = vunpack.c.h.b16 %v2115
        %v3159 = vunpack.c.l.b16 %v2116
        %v3160 = vunpack.c.h.b16 %v2116
        %v3161 = vunpack.c.l.b16 %v2117
        %v3162 = vunpack.c.h.b16 %v2117
        %v3163 = vunpack.c.l.b16 %v2118
        %v3164 = vunpack.c.h.b16 %v2118
        %v3165 = vunpack.c.l.b16 %v2119
        %v3166 = vunpack.c.h.b16 %v2119
        %v3167 = vunpack.c.l.b16 %v2120
        %v3168 = vunpack.c.h.b16 %v2120
        %v3169 = vunpack.c.l.b16 %v2121
        %v3170 = vunpack.c.h.b16 %v2121
        %v3171 = vunpack.c.l.b16 %v2122
        %v3172 = vunpack.c.h.b16 %v2122
        %v3173 = vunpack.c.l.b16 %v2123
        %v3174 = vunpack.c.h.b16 %v2123
        %v3175 = vunpack.c.l.b16 %v2124
        %v3176 = vunpack.c.h.b16 %v2124
        %v3177 = vunpack.c.l.b16 %v2125
        %v3178 = vunpack.c.h.b16 %v2125
        %v3179 = vunpack.c.l.b16 %v2126
        %v3180 = vunpack.c.h.b16 %v2126
        %v3181 = vunpack.c.l.b16 %v2127
        %v3182 = vunpack.c.h.b16 %v2127
        %v3183 = vunpack.c.l.b16 %v2128
        %v3184 = vunpack.c.h.b16 %v2128
        %v3185 = vunpack.c.l.b16 %v2129
        %v3186 = vunpack.c.h.b16 %v2129
        %v3187 = vunpack.c.l.b16 %v2130
        %v3188 = vunpack.c.h.b16 %v2130
        %v3189 = vunpack.c.l.b16 %v2131
        %v3190 = vunpack.c.h.b16 %v2131
        %v3191 = vunpack.c.l.b16 %v2132
        %v3192 = vunpack.c.h.b16 %v2132
        %v3193 = vunpack.c.l.b16 %v2133
        %v3194 = vunpack.c.h.b16 %v2133
        %v3195 = vunpack.c.l.b16 %v2134
        %v3196 = vunpack.c.h.b16 %v2134
        %v3197 = vunpack.c.l.b16 %v2135
        %v3198 = vunpack.c.h.b16 %v2135
        %v3199 = vunpack.c.l.b16 %v2136
        %v3200 = vunpack.c.h.b16 %v2136
        %v3201 = vunpack.c.l.b16 %v2137
        %v3202 = vunpack.c.h.b16 %v2137
        %v3203 = vunpack.c.l.b16 %v2138
        %v3204 = vunpack.c.h.b16 %v2138
        %v3205 = vunpack.c.l.b16 %v2139
        %v3206 = vunpack.c.h.b16 %v2139
        %v3207 = vunpack.c.l.b16 %v2140
        %v3208 = vunpack.c.h.b16 %v2140
        %v3209 = vunpack.c.l.b16 %v2141
        %v3210 = vunpack.c.h.b16 %v2141
        %v3211 = vunpack.c.l.b16 %v2142
        %v3212 = vunpack.c.h.b16 %v2142
        %v3213 = vunpack.c.l.b16 %v2143
        %v3214 = vunpack.c.h.b16 %v2143
        %v3215 = vunpack.c.l.b16 %v2144
        %v3216 = vunpack.c.h.b16 %v2144
        %v3217 = vunpack.c.l.b16 %v2145
        %v3218 = vunpack.c.h.b16 %v2145
        %v3219 = vunpack.c.l.b16 %v2146
        %v3220 = vunpack.c.h.b16 %v2146
        %v3221 = vunpack.c.l.b16 %v2147
        %v3222 = vunpack.c.h.b16 %v2147
        %v3223 = vunpack.c.l.b16 %v2148
        %v3224 = vunpack.c.h.b16 %v2148
        %v3225 = vunpack.c.l.b16 %v2149
        %v3226 = vunpack.c.h.b16 %v2149
        %v3227 = vunpack.c.l.b16 %v2150
        %v3228 = vunpack.c.h.b16 %v2150
        %v3229 = vunpack.c.l.b16 %v2151
        %v3230 = vunpack.c.h.b16 %v2151
        %v3231 = vunpack.c.l.b16 %v2152
        %v3232 = vunpack.c.h.b16 %v2152
        %v3233 = vunpack.c.l.b16 %v2153
        %v3234 = vunpack.c.h.b16 %v2153
        %v3235 = vunpack.c.l.b16 %v2154
        %v3236 = vunpack.c.h.b16 %v2154
        %v3237 = vunpack.c.l.b16 %v2155
        %v3238 = vunpack.c.h.b16 %v2155
        %v3239 = vunpack.c.l.b16 %v2156
        %v3240 = vunpack.c.h.b16 %v2156
        %v3241 = vunpack.c.l.b16 %v2157
        %v3242 = vunpack.c.h.b16 %v2157
        %v3243 = vunpack.c.l.b16 %v2158
        %v3244 = vunpack.c.h.b16 %v2158
        %v3245 = vunpack.c.l.b16 %v2159
        %v3246 = vunpack.c.h.b16 %v2159
        %v3247 = vunpack.c.l.b16 %v2160
        %v3248 = vunpack.c.h.b16 %v2160
        %v3249 = vunpack.c.l.b16 %v2161
        %v3250 = vunpack.c.h.b16 %v2161
        %v3251 = vunpack.c.l.b16 %v2162
        %v3252 = vunpack.c.h.b16 %v2162
        %v3253 = vunpack.c.l.b16 %v2163
        %v3254 = vunpack.c.h.b16 %v2163
        %v3255 = vunpack.c.l.b16 %v2164
        %v3256 = vunpack.c.h.b16 %v2164
        %v3257 = vunpack.c.l.b16 %v2165
        %v3258 = vunpack.c.h.b16 %v2165
        %v3259 = vunpack.c.l.b16 %v2166
        %v3260 = vunpack.c.h.b16 %v2166
        %v3261 = vunpack.c.l.b16 %v2167
        %v3262 = vunpack.c.h.b16 %v2167
        %v3263 = vunpack.c.l.b16 %v2168
        %v3264 = vunpack.c.h.b16 %v2168
        %v3265 = vunpack.c.l.b16 %v2169
        %v3266 = vunpack.c.h.b16 %v2169
        %v3267 = vunpack.c.l.b16 %v2170
        %v3268 = vunpack.c.h.b16 %v2170
        %v3269 = vunpack.c.l.b16 %v2171
        %v3270 = vunpack.c.h.b16 %v2171
        %v3271 = vunpack.c.l.b16 %v2172
        %v3272 = vunpack.c.h.b16 %v2172
        %v3273 = vunpack.c.l.b16 %v2173
        %v3274 = vunpack.c.h.b16 %v2173
        %v3275 = vunpack.c.l.b16 %v2174
        %v3276 = vunpack.c.h.b16 %v2174
        %v3277 = vunpack.c.l.b16 %v2175
        %v3278 = vunpack.c.h.b16 %v2175
        %v3279 = vunpack.c.l.b16 %v2176
        %v3280 = vunpack.c.h.b16 %v2176
        %v3281 = vunpack.c.l.b16 %v2177
        %v3282 = vunpack.c.h.b16 %v2177
        %v3283 = vunpack.c.l.b16 %v2178
        %v3284 = vunpack.c.h.b16 %v2178
        %v3285 = vunpack.c.l.b16 %v2179
        %v3286 = vunpack.c.h.b16 %v2179
        %v3287 = vunpack.c.l.b16 %v2180
        %v3288 = vunpack.c.h.b16 %v2180
        %v3289 = vunpack.c.l.b16 %v2181
        %v3290 = vunpack.c.h.b16 %v2181
        %v3291 = vunpack.c.l.b16 %v2182
        %v3292 = vunpack.c.h.b16 %v2182
        %v3293 = vunpack.c.l.b16 %v2183
        %v3294 = vunpack.c.h.b16 %v2183
        %v3295 = vunpack.c.l.b16 %v2184
        %v3296 = vunpack.c.h.b16 %v2184
        %v3297 = vunpack.c.l.b16 %v2185
        %v3298 = vunpack.c.h.b16 %v2185
        %v3299 = vunpack.c.l.b16 %v2186
        %v3300 = vunpack.c.h.b16 %v2186
        %v3301 = vunpack.c.l.b16 %v2187
        %v3302 = vunpack.c.h.b16 %v2187
        %v3303 = vunpack.c.l.b16 %v2188
        %v3304 = vunpack.c.h.b16 %v2188
        %v3305 = vunpack.c.l.b16 %v2189
        %v3306 = vunpack.c.h.b16 %v2189
        %v3307 = vunpack.c.l.b16 %v2190
        %v3308 = vunpack.c.h.b16 %v2190
        %v3309 = vunpack.c.l.b16 %v2191
        %v3310 = vunpack.c.h.b16 %v2191
        %v3311 = vunpack.c.l.b16 %v2192
        %v3312 = vunpack.c.h.b16 %v2192
        %v3313 = vunpack.c.l.b16 %v2193
        %v3314 = vunpack.c.h.b16 %v2193
        %v3315 = vunpack.c.l.b16 %v2194
        %v3316 = vunpack.c.h.b16 %v2194
        %v3317 = vunpack.c.l.b16 %v2195
        %v3318 = vunpack.c.h.b16 %v2195
        %v3319 = vunpack.c.l.b16 %v2196
        %v3320 = vunpack.c.h.b16 %v2196
        %v3321 = vunpack.c.l.b16 %v2197
        %v3322 = vunpack.c.h.b16 %v2197
        %v3323 = vunpack.c.l.b16 %v2198
        %v3324 = vunpack.c.h.b16 %v2198
        %v3325 = vunpack.c.l.b16 %v2199
        %v3326 = vunpack.c.h.b16 %v2199
        %v3327 = vunpack.c.l.b16 %v2200
        %v3328 = vunpack.c.h.b16 %v2200
        %v3329 = vunpack.c.l.b16 %v2201
        %v3330 = vunpack.c.h.b16 %v2201
        %v3331 = vunpack.c.l.b16 %v2202
        %v3332 = vunpack.c.h.b16 %v2202
        %v3333 = vunpack.c.l.b16 %v2203
        %v3334 = vunpack.c.h.b16 %v2203
        %v3335 = vunpack.c.l.b16 %v2204
        %v3336 = vunpack.c.h.b16 %v2204
        %v3337 = vunpack.c.l.b16 %v2205
        %v3338 = vunpack.c.h.b16 %v2205
        %v3339 = vunpack.c.l.b16 %v2206
        %v3340 = vunpack.c.h.b16 %v2206
        %v3341 = vunpack.c.l.b16 %v2207
        %v3342 = vunpack.c.h.b16 %v2207
        %v3343 = vunpack.c.l.b16 %v2208
        %v3344 = vunpack.c.h.b16 %v2208
        %v3345 = vunpack.c.l.b16 %v2209
        %v3346 = vunpack.c.h.b16 %v2209
        %v3347 = vunpack.c.l.b16 %v2210
        %v3348 = vunpack.c.h.b16 %v2210
        %v3349 = vunpack.c.l.b16 %v2211
        %v3350 = vunpack.c.h.b16 %v2211
        %v3351 = vunpack.c.l.b16 %v2212
        %v3352 = vunpack.c.h.b16 %v2212
        %v3353 = vunpack.c.l.b16 %v2213
        %v3354 = vunpack.c.h.b16 %v2213
        %v3355 = vunpack.c.l.b16 %v2214
        %v3356 = vunpack.c.h.b16 %v2214
        %v3357 = vunpack.c.l.b16 %v2215
        %v3358 = vunpack.c.h.b16 %v2215
        %v3359 = vunpack.c.l.b16 %v2216
        %v3360 = vunpack.c.h.b16 %v2216
        %v3361 = vunpack.c.l.b16 %v2217
        %v3362 = vunpack.c.h.b16 %v2217
        %v3363 = vunpack.c.l.b16 %v2218
        %v3364 = vunpack.c.h.b16 %v2218
        %v3365 = vunpack.c.l.b16 %v2219
        %v3366 = vunpack.c.h.b16 %v2219
        %v3367 = vunpack.c.l.b16 %v2220
        %v3368 = vunpack.c.h.b16 %v2220
        %v3369 = vunpack.c.l.b16 %v2221
        %v3370 = vunpack.c.h.b16 %v2221
        %v3371 = vunpack.c.l.b16 %v2222
        %v3372 = vunpack.c.h.b16 %v2222
        %v3373 = vunpack.c.l.b16 %v2223
        %v3374 = vunpack.c.h.b16 %v2223
        %v3375 = vunpack.c.l.b16 %v2224
        %v3376 = vunpack.c.h.b16 %v2224
        %v3377 = vunpack.c.l.b16 %v2225
        %v3378 = vunpack.c.h.b16 %v2225
        %v3379 = vunpack.c.l.b16 %v2226
        %v3380 = vunpack.c.h.b16 %v2226
        %v3381 = vunpack.c.l.b16 %v2227
        %v3382 = vunpack.c.h.b16 %v2227
        %v3383 = vunpack.c.l.b16 %v2228
        %v3384 = vunpack.c.h.b16 %v2228
        %v3385 = vunpack.c.l.b16 %v2229
        %v3386 = vunpack.c.h.b16 %v2229
        %v3387 = vunpack.c.l.b16 %v2230
        %v3388 = vunpack.c.h.b16 %v2230
        %v3389 = vunpack.c.l.b16 %v2231
        %v3390 = vunpack.c.h.b16 %v2231
        %v3391 = vunpack.c.l.b16 %v2232
        %v3392 = vunpack.c.h.b16 %v2232
        %v3393 = vunpack.c.l.b16 %v2233
        %v3394 = vunpack.c.h.b16 %v2233
        %v3395 = vunpack.c.l.b16 %v2234
        %v3396 = vunpack.c.h.b16 %v2234
        %v3397 = vunpack.c.l.b16 %v2235
        %v3398 = vunpack.c.h.b16 %v2235
        %v3399 = vunpack.c.l.b16 %v2236
        %v3400 = vunpack.c.h.b16 %v2236
        %v3401 = vunpack.c.l.b16 %v2237
        %v3402 = vunpack.c.h.b16 %v2237
        %v3403 = vunpack.c.l.b16 %v2238
        %v3404 = vunpack.c.h.b16 %v2238
        %v3405 = vunpack.c.l.b16 %v2239
        %v3406 = vunpack.c.h.b16 %v2239
        %v3407 = vunpack.c.l.b16 %v2240
        %v3408 = vunpack.c.h.b16 %v2240
        %v3409 = vunpack.c.l.b16 %v2241
        %v3410 = vunpack.c.h.b16 %v2241
        %v3411 = vunpack.c.l.b16 %v2242
        %v3412 = vunpack.c.h.b16 %v2242
        %v3413 = vunpack.c.l.b16 %v2243
        %v3414 = vunpack.c.h.b16 %v2243
        %v3415 = vunpack.c.l.b16 %v2244
        %v3416 = vunpack.c.h.b16 %v2244
        %v3417 = vunpack.c.l.b16 %v2245
        %v3418 = vunpack.c.h.b16 %v2245
        %v3419 = vunpack.c.l.b16 %v2246
        %v3420 = vunpack.c.h.b16 %v2246
        %v3421 = vunpack.c.l.b16 %v2247
        %v3422 = vunpack.c.h.b16 %v2247
        %v3423 = vunpack.c.l.b16 %v2248
        %v3424 = vunpack.c.h.b16 %v2248
        %v3425 = vunpack.c.l.b16 %v2249
        %v3426 = vunpack.c.h.b16 %v2249
        %v3427 = vunpack.c.l.b16 %v2250
        %v3428 = vunpack.c.h.b16 %v2250
        %v3429 = vunpack.c.l.b16 %v2251
        %v3430 = vunpack.c.h.b16 %v2251
        %v3431 = vunpack.c.l.b16 %v2252
        %v3432 = vunpack.c.h.b16 %v2252
        %v3433 = vunpack.c.l.b16 %v2253
        %v3434 = vunpack.c.h.b16 %v2253
        %v3435 = vunpack.c.l.b16 %v2254
        %v3436 = vunpack.c.h.b16 %v2254
        %v3437 = vunpack.c.l.b16 %v2255
        %v3438 = vunpack.c.h.b16 %v2255
        %v3439 = vunpack.c.l.b16 %v2256
        %v3440 = vunpack.c.h.b16 %v2256
        %v3441 = vunpack.c.l.b16 %v2257
        %v3442 = vunpack.c.h.b16 %v2257
        %v3443 = vunpack.c.l.b16 %v2258
        %v3444 = vunpack.c.h.b16 %v2258
        %v3445 = vunpack.c.l.b16 %v2259
        %v3446 = vunpack.c.h.b16 %v2259
        %v3447 = vunpack.c.l.b16 %v2260
        %v3448 = vunpack.c.h.b16 %v2260
        %v3449 = vunpack.c.l.b16 %v2261
        %v3450 = vunpack.c.h.b16 %v2261
        %v3451 = vunpack.c.l.b16 %v2262
        %v3452 = vunpack.c.h.b16 %v2262
        %v3453 = vunpack.c.l.b16 %v2263
        %v3454 = vunpack.c.h.b16 %v2263
        %v3455 = vunpack.c.l.b16 %v2264
        %v3456 = vunpack.c.h.b16 %v2264
        %v3457 = vunpack.c.l.b16 %v2265
        %v3458 = vunpack.c.h.b16 %v2265
        %v3459 = vunpack.c.l.b16 %v2266
        %v3460 = vunpack.c.h.b16 %v2266
        %v3461 = vunpack.c.l.b16 %v2267
        %v3462 = vunpack.c.h.b16 %v2267
        %v3463 = vunpack.c.l.b16 %v2268
        %v3464 = vunpack.c.h.b16 %v2268
        %v3465 = vunpack.c.l.b16 %v2269
        %v3466 = vunpack.c.h.b16 %v2269
        %v3467 = vunpack.c.l.b16 %v2270
        %v3468 = vunpack.c.h.b16 %v2270
        %v3469 = vunpack.c.l.b16 %v2271
        %v3470 = vunpack.c.h.b16 %v2271
        %v3471 = vunpack.c.l.b16 %v2272
        %v3472 = vunpack.c.h.b16 %v2272
        %v3473 = vunpack.c.l.b16 %v2273
        %v3474 = vunpack.c.h.b16 %v2273
        %v3475 = vunpack.c.l.b16 %v2274
        %v3476 = vunpack.c.h.b16 %v2274
        %v3477 = vunpack.c.l.b16 %v2275
        %v3478 = vunpack.c.h.b16 %v2275
        %v3479 = vunpack.c.l.b16 %v2276
        %v3480 = vunpack.c.h.b16 %v2276
        %v3481 = vunpack.c.l.b16 %v2277
        %v3482 = vunpack.c.h.b16 %v2277
        %v3483 = vunpack.c.l.b16 %v2278
        %v3484 = vunpack.c.h.b16 %v2278
        %v3485 = vunpack.c.l.b16 %v2279
        %v3486 = vunpack.c.h.b16 %v2279
        %v3487 = vunpack.c.l.b16 %v2280
        %v3488 = vunpack.c.h.b16 %v2280
        %v3489 = vunpack.c.l.b16 %v2281
        %v3490 = vunpack.c.h.b16 %v2281
        %v3491 = vunpack.c.l.b16 %v2282
        %v3492 = vunpack.c.h.b16 %v2282
        %v3493 = vunpack.c.l.b16 %v2283
        %v3494 = vunpack.c.h.b16 %v2283
        %v3495 = vunpack.c.l.b16 %v2284
        %v3496 = vunpack.c.h.b16 %v2284
        %v3497 = vunpack.c.l.b16 %v2285
        %v3498 = vunpack.c.h.b16 %v2285
        %v3499 = vunpack.c.l.b16 %v2286
        %v3500 = vunpack.c.h.b16 %v2286
        %v3501 = vunpack.c.l.b16 %v2287
        %v3502 = vunpack.c.h.b16 %v2287
        %v3503 = vunpack.c.l.b16 %v2288
        %v3504 = vunpack.c.h.b16 %v2288
        %v3505 = vunpack.c.l.b16 %v2289
        %v3506 = vunpack.c.h.b16 %v2289
        %v3507 = vunpack.c.l.b16 %v2290
        %v3508 = vunpack.c.h.b16 %v2290
        %v3509 = vunpack.c.l.b16 %v2291
        %v3510 = vunpack.c.h.b16 %v2291
        %v3511 = vunpack.c.l.b16 %v2292
        %v3512 = vunpack.c.h.b16 %v2292
        %v3513 = vunpack.c.l.b16 %v2293
        %v3514 = vunpack.c.h.b16 %v2293
        %v3515 = vunpack.c.l.b16 %v2294
        %v3516 = vunpack.c.h.b16 %v2294
        %v3517 = vunpack.c.l.b16 %v2295
        %v3518 = vunpack.c.h.b16 %v2295
        %v3519 = vunpack.c.l.b16 %v2296
        %v3520 = vunpack.c.h.b16 %v2296
        %v3521 = vunpack.c.l.b16 %v2297
        %v3522 = vunpack.c.h.b16 %v2297
        %v3523 = vunpack.c.l.b16 %v2298
        %v3524 = vunpack.c.h.b16 %v2298
        %v3525 = vunpack.c.l.b16 %v2299
        %v3526 = vunpack.c.h.b16 %v2299
        %v3527 = vunpack.c.l.b16 %v2300
        %v3528 = vunpack.c.h.b16 %v2300
        %v3529 = vunpack.c.l.b16 %v2301
        %v3530 = vunpack.c.h.b16 %v2301
        %v3531 = vunpack.c.l.b16 %v2302
        %v3532 = vunpack.c.h.b16 %v2302
        %v3533 = vunpack.c.l.b16 %v2303
        %v3534 = vunpack.c.h.b16 %v2303
        %v3535 = vunpack.c.l.b16 %v2304
        %v3536 = vunpack.c.h.b16 %v2304
        %v3537 = vunpack.c.l.b16 %v2305
        %v3538 = vunpack.c.h.b16 %v2305
        %v3539 = vunpack.c.l.b16 %v2306
        %v3540 = vunpack.c.h.b16 %v2306
        %v3541 = vunpack.c.l.b16 %v2307
        %v3542 = vunpack.c.h.b16 %v2307
        %v3543 = vunpack.c.l.b16 %v2308
        %v3544 = vunpack.c.h.b16 %v2308
        %v3545 = vunpack.c.l.b16 %v2309
        %v3546 = vunpack.c.h.b16 %v2309
        %v3547 = vunpack.c.l.b16 %v2310
        %v3548 = vunpack.c.h.b16 %v2310
        %v3549 = vpack.c.b16 %v3041, %v3037
        %v3550 = vpack.c.b16 %v3042, %v3038
        %v3551 = vpack.c.b16 %v3043, %v3039
        %v3552 = vpack.c.b16 %v3044, %v3040
        %v3553 = vpack.c.b16 %v3049, %v3045
        %v3554 = vpack.c.b16 %v3050, %v3046
        %v3555 = vpack.c.b16 %v3051, %v3047
        %v3556 = vpack.c.b16 %v3052, %v3048
        %v3557 = vpack.c.b16 %v3057, %v3053
        %v3558 = vpack.c.b16 %v3058, %v3054
        %v3559 = vpack.c.b16 %v3059, %v3055
        %v3560 = vpack.c.b16 %v3060, %v3056
        %v3561 = vpack.c.b16 %v3065, %v3061
        %v3562 = vpack.c.b16 %v3066, %v3062
        %v3563 = vpack.c.b16 %v3067, %v3063
        %v3564 = vpack.c.b16 %v3068, %v3064
        %v3565 = vpack.c.b16 %v3073, %v3069
        %v3566 = vpack.c.b16 %v3074, %v3070
        %v3567 = vpack.c.b16 %v3075, %v3071
        %v3568 = vpack.c.b16 %v3076, %v3072
        %v3569 = vpack.c.b16 %v3081, %v3077
        %v3570 = vpack.c.b16 %v3082, %v3078
        %v3571 = vpack.c.b16 %v3083, %v3079
        %v3572 = vpack.c.b16 %v3084, %v3080
        %v3573 = vpack.c.b16 %v3089, %v3085
        %v3574 = vpack.c.b16 %v3090, %v3086
        %v3575 = vpack.c.b16 %v3091, %v3087
        %v3576 = vpack.c.b16 %v3092, %v3088
        %v3577 = vpack.c.b16 %v3097, %v3093
        %v3578 = vpack.c.b16 %v3098, %v3094
        %v3579 = vpack.c.b16 %v3099, %v3095
        %v3580 = vpack.c.b16 %v3100, %v3096
        %v3581 = vpack.c.b16 %v3105, %v3101
        %v3582 = vpack.c.b16 %v3106, %v3102
        %v3583 = vpack.c.b16 %v3107, %v3103
        %v3584 = vpack.c.b16 %v3108, %v3104
        %v3585 = vpack.c.b16 %v3113, %v3109
        %v3586 = vpack.c.b16 %v3114, %v3110
        %v3587 = vpack.c.b16 %v3115, %v3111
        %v3588 = vpack.c.b16 %v3116, %v3112
        %v3589 = vpack.c.b16 %v3121, %v3117
        %v3590 = vpack.c.b16 %v3122, %v3118
        %v3591 = vpack.c.b16 %v3123, %v3119
        %v3592 = vpack.c.b16 %v3124, %v3120
        %v3593 = vpack.c.b16 %v3129, %v3125
        %v3594 = vpack.c.b16 %v3130, %v3126
        %v3595 = vpack.c.b16 %v3131, %v3127
        %v3596 = vpack.c.b16 %v3132, %v3128
        %v3597 = vpack.c.b16 %v3137, %v3133
        %v3598 = vpack.c.b16 %v3138, %v3134
        %v3599 = vpack.c.b16 %v3139, %v3135
        %v3600 = vpack.c.b16 %v3140, %v3136
        %v3601 = vpack.c.b16 %v3145, %v3141
        %v3602 = vpack.c.b16 %v3146, %v3142
        %v3603 = vpack.c.b16 %v3147, %v3143
        %v3604 = vpack.c.b16 %v3148, %v3144
        %v3605 = vpack.c.b16 %v3153, %v3149
        %v3606 = vpack.c.b16 %v3154, %v3150
        %v3607 = vpack.c.b16 %v3155, %v3151
        %v3608 = vpack.c.b16 %v3156, %v3152
        %v3609 = vpack.c.b16 %v3161, %v3157
        %v3610 = vpack.c.b16 %v3162, %v3158
        %v3611 = vpack.c.b16 %v3163, %v3159
        %v3612 = vpack.c.b16 %v3164, %v3160
        %v3613 = vpack.c.b16 %v3169, %v3165
        %v3614 = vpack.c.b16 %v3170, %v3166
        %v3615 = vpack.c.b16 %v3171, %v3167
        %v3616 = vpack.c.b16 %v3172, %v3168
        %v3617 = vpack.c.b16 %v3177, %v3173
        %v3618 = vpack.c.b16 %v3178, %v3174
        %v3619 = vpack.c.b16 %v3179, %v3175
        %v3620 = vpack.c.b16 %v3180, %v3176
        %v3621 = vpack.c.b16 %v3185, %v3181
        %v3622 = vpack.c.b16 %v3186, %v3182
        %v3623 = vpack.c.b16 %v3187, %v3183
        %v3624 = vpack.c.b16 %v3188, %v3184
        %v3625 = vpack.c.b16 %v3193, %v3189
        %v3626 = vpack.c.b16 %v3194, %v3190
        %v3627 = vpack.c.b16 %v3195, %v3191
        %v3628 = vpack.c.b16 %v3196, %v3192
        %v3629 = vpack.c.b16 %v3201, %v3197
        %v3630 = vpack.c.b16 %v3202, %v3198
        %v3631 = vpack.c.b16 %v3203, %v3199
        %v3632 = vpack.c.b16 %v3204, %v3200
        %v3633 = vpack.c.b16 %v3209, %v3205
        %v3634 = vpack.c.b16 %v3210, %v3206
        %v3635 = vpack.c.b16 %v3211, %v3207
        %v3636 = vpack.c.b16 %v3212, %v3208
        %v3637 = vpack.c.b16 %v3217, %v3213
        %v3638 = vpack.c.b16 %v3218, %v3214
        %v3639 = vpack.c.b16 %v3219, %v3215
        %v3640 = vpack.c.b16 %v3220, %v3216
        %v3641 = vpack.c.b16 %v3225, %v3221
        %v3642 = vpack.c.b16 %v3226, %v3222
        %v3643 = vpack.c.b16 %v3227, %v3223
        %v3644 = vpack.c.b16 %v3228, %v3224
        %v3645 = vpack.c.b16 %v3233, %v3229
        %v3646 = vpack.c.b16 %v3234, %v3230
        %v3647 = vpack.c.b16 %v3235, %v3231
        %v3648 = vpack.c.b16 %v3236, %v3232
        %v3649 = vpack.c.b16 %v3241, %v3237
        %v3650 = vpack.c.b16 %v3242, %v3238
        %v3651 = vpack.c.b16 %v3243, %v3239
        %v3652 = vpack.c.b16 %v3244, %v3240
        %v3653 = vpack.c.b16 %v3249, %v3245
        %v3654 = vpack.c.b16 %v3250, %v3246
        %v3655 = vpack.c.b16 %v3251, %v3247
        %v3656 = vpack.c.b16 %v3252, %v3248
        %v3657 = vpack.c.b16 %v3257, %v3253
        %v3658 = vpack.c.b16 %v3258, %v3254
        %v3659 = vpack.c.b16 %v3259, %v3255
        %v3660 = vpack.c.b16 %v3260, %v3256
        %v3661 = vpack.c.b16 %v3265, %v3261
        %v3662 = vpack.c.b16 %v3266, %v3262
        %v3663 = vpack.c.b16 %v3267, %v3263
        %v3664 = vpack.c.b16 %v3268, %v3264
        %v3665 = vpack.c.b16 %v3273, %v3269
        %v3666 = vpack.c.b16 %v3274, %v3270
        %v3667 = vpack.c.b16 %v3275, %v3271
        %v3668 = vpack.c.b16 %v3276, %v3272
        %v3669 = vpack.c.b16 %v3281, %v3277
        %v3670 = vpack.c.b16 %v3282, %v3278
        %v3671 = vpack.c.b16 %v3283, %v3279
        %v3672 = vpack.c.b16 %v3284, %v3280
        %v3673 = vpack.c.b16 %v3289, %v3285
        %v3674 = vpack.c.b16 %v3290, %v3286
        %v3675 = vpack.c.b16 %v3291, %v3287
        %v3676 = vpack.c.b16 %v3292, %v3288
        %v3677 = vpack.c.b16 %v3297, %v3293
        %v3678 = vpack.c.b16 %v3298, %v3294
        %v3679 = vpack.c.b16 %v3299, %v3295
        %v3680 = vpack.c.b16 %v3300, %v3296
        %v3681 = vpack.c.b16 %v3305, %v3301
        %v3682 = vpack.c.b16 %v3306, %v3302
        %v3683 = vpack.c.b16 %v3307, %v3303
        %v3684 = vpack.c.b16 %v3308, %v3304
        %v3685 = vpack.c.b16 %v3313, %v3309
        %v3686 = vpack.c.b16 %v3314, %v3310
        %v3687 = vpack.c.b16 %v3315, %v3311
        %v3688 = vpack.c.b16 %v3316, %v3312
        %v3689 = vpack.c.b16 %v3321, %v3317
        %v3690 = vpack.c.b16 %v3322, %v3318
        %v3691 = vpack.c.b16 %v3323, %v3319
        %v3692 = vpack.c.b16 %v3324, %v3320
        %v3693 = vpack.c.b16 %v3329, %v3325
        %v3694 = vpack.c.b16 %v3330, %v3326
        %v3695 = vpack.c.b16 %v3331, %v3327
        %v3696 = vpack.c.b16 %v3332, %v3328
        %v3697 = vpack.c.b16 %v3337, %v3333
        %v3698 = vpack.c.b16 %v3338, %v3334
        %v3699 = vpack.c.b16 %v3339, %v3335
        %v3700 = vpack.c.b16 %v3340, %v3336
        %v3701 = vpack.c.b16 %v3345, %v3341
        %v3702 = vpack.c.b16 %v3346, %v3342
        %v3703 = vpack.c.b16 %v3347, %v3343
        %v3704 = vpack.c.b16 %v3348, %v3344
        %v3705 = vpack.c.b16 %v3353, %v3349
        %v3706 = vpack.c.b16 %v3354, %v3350
        %v3707 = vpack.c.b16 %v3355, %v3351
        %v3708 = vpack.c.b16 %v3356, %v3352
        %v3709 = vpack.c.b16 %v3361, %v3357
        %v3710 = vpack.c.b16 %v3362, %v3358
        %v3711 = vpack.c.b16 %v3363, %v3359
        %v3712 = vpack.c.b16 %v3364, %v3360
        %v3713 = vpack.c.b16 %v3369, %v3365
        %v3714 = vpack.c.b16 %v3370, %v3366
        %v3715 = vpack.c.b16 %v3371, %v3367
        %v3716 = vpack.c.b16 %v3372, %v3368
        %v3717 = vpack.c.b16 %v3377, %v3373
        %v3718 = vpack.c.b16 %v3378, %v3374
        %v3719 = vpack.c.b16 %v3379, %v3375
        %v3720 = vpack.c.b16 %v3380, %v3376
        %v3721 = vpack.c.b16 %v3385, %v3381
        %v3722 = vpack.c.b16 %v3386, %v3382
        %v3723 = vpack.c.b16 %v3387, %v3383
        %v3724 = vpack.c.b16 %v3388, %v3384
        %v3725 = vpack.c.b16 %v3393, %v3389
        %v3726 = vpack.c.b16 %v3394, %v3390
        %v3727 = vpack.c.b16 %v3395, %v3391
        %v3728 = vpack.c.b16 %v3396, %v3392
        %v3729 = vpack.c.b16 %v3401, %v3397
        %v3730 = vpack.c.b16 %v3402, %v3398
        %v3731 = vpack.c.b16 %v3403, %v3399
        %v3732 = vpack.c.b16 %v3404, %v3400
        %v3733 = vpack.c.b16 %v3409, %v3405
        %v3734 = vpack.c.b16 %v3410, %v3406
        %v3735 = vpack.c.b16 %v3411, %v3407
        %v3736 = vpack.c.b16 %v3412, %v3408
        %v3737 = vpack.c.b16 %v3417, %v3413
        %v3738 = vpack.c.b16 %v3418, %v3414
        %v3739 = vpack.c.b16 %v3419, %v3415
        %v3740 = vpack.c.b16 %v3420, %v3416
        %v3741 = vpack.c.b16 %v3425, %v3421
        %v3742 = vpack.c.b16 %v3426, %v3422
        %v3743 = vpack.c.b16 %v3427, %v3423
        %v3744 = vpack.c.b16 %v3428, %v3424
        %v3745 = vpack.c.b16 %v3433, %v3429
        %v3746 = vpack.c.b16 %v3434, %v3430
        %v3747 = vpack.c.b16 %v3435, %v3431
        %v3748 = vpack.c.b16 %v3436, %v3432
        %v3749 = vpack.c.b16 %v3441, %v3437
        %v3750 = vpack.c.b16 %v3442, %v3438
        %v3751 = vpack.c.b16 %v3443, %v3439
        %v3752 = vpack.c.b16 %v3444, %v3440
        %v3753 = vpack.c.b16 %v3449, %v3445
        %v3754 = vpack.c.b16 %v3450, %v3446
        %v3755 = vpack.c.b16 %v3451, %v3447
        %v3756 = vpack.c.b16 %v3452, %v3448
        %v3757 = vpack.c.b16 %v3457, %v3453
        %v3758 = vpack.c.b16 %v3458, %v3454
        %v3759 = vpack.c.b16 %v3459, %v3455
        %v3760 = vpack.c.b16 %v3460, %v3456
        %v3761 = vpack.c.b16 %v3465, %v3461
        %v3762 = vpack.c.b16 %v3466, %v3462
        %v3763 = vpack.c.b16 %v3467, %v3463
        %v3764 = vpack.c.b16 %v3468, %v3464
        %v3765 = vpack.c.b16 %v3473, %v3469
        %v3766 = vpack.c.b16 %v3474, %v3470
        %v3767 = vpack.c.b16 %v3475, %v3471
        %v3768 = vpack.c.b16 %v3476, %v3472
        %v3769 = vpack.c.b16 %v3481, %v3477
        %v3770 = vpack.c.b16 %v3482, %v3478
        %v3771 = vpack.c.b16 %v3483, %v3479
        %v3772 = vpack.c.b16 %v3484, %v3480
        %v3773 = vpack.c.b16 %v3489, %v3485
        %v3774 = vpack.c.b16 %v3490, %v3486
        %v3775 = vpack.c.b16 %v3491, %v3487
        %v3776 = vpack.c.b16 %v3492, %v3488
        %v3777 = vpack.c.b16 %v3497, %v3493
        %v3778 = vpack.c.b16 %v3498, %v3494
        %v3779 = vpack.c.b16 %v3499, %v3495
        %v3780 = vpack.c.b16 %v3500, %v3496
        %v3781 = vpack.c.b16 %v3505, %v3501
        %v3782 = vpack.c.b16 %v3506, %v3502
        %v3783 = vpack.c.b16 %v3507, %v3503
        %v3784 = vpack.c.b16 %v3508, %v3504
        %v3785 = vpack.c.b16 %v3513, %v3509
        %v3786 = vpack.c.b16 %v3514, %v3510
        %v3787 = vpack.c.b16 %v3515, %v3511
        %v3788 = vpack.c.b16 %v3516, %v3512
        %v3789 = vpack.c.b16 %v3521, %v3517
        %v3790 = vpack.c.b16 %v3522, %v3518
        %v3791 = vpack.c.b16 %v3523, %v3519
        %v3792 = vpack.c.b16 %v3524, %v3520
        %v3793 = vpack.c.b16 %v3529, %v3525
        %v3794 = vpack.c.b16 %v3530, %v3526
        %v3795 = vpack.c.b16 %v3531, %v3527
        %v3796 = vpack.c.b16 %v3532, %v3528
        %v3797 = vpack.c.b16 %v3537, %v3533
        %v3798 = vpack.c.b16 %v3538, %v3534
        %v3799 = vpack.c.b16 %v3539, %v3535
        %v3800 = vpack.c.b16 %v3540, %v3536
        %v3801 = vpack.c.b16 %v3545, %v3541
        %v3802 = vpack.c.b16 %v3546, %v3542
        %v3803 = vpack.c.b16 %v3547, %v3543
        %v3804 = vpack.c.b16 %v3548, %v3544
        %4061 = vmatprep.subr.bf16.mxu0 %v3550
        %4062 = vmatpush1.bf16.msra.mxu0 %v3549
        %4063 = vmatprep.subr.bf16.mxu0 %v3554
        %4064 = vmatpush1.bf16.msra.mxu0 %v3553
        %4065 = vmatprep.subr.bf16.mxu0 %v3558
        %4066 = vmatpush1.bf16.msra.mxu0 %v3557
        %4067 = vmatprep.subr.bf16.mxu0 %v3562
        %4068 = vmatpush1.bf16.msra.mxu0 %v3561
        %4069 = vmatprep.subr.bf16.mxu0 %v3566
        %4070 = vmatpush1.bf16.msra.mxu0 %v3565
        %4071 = vmatprep.subr.bf16.mxu0 %v3570
        %4072 = vmatpush1.bf16.msra.mxu0 %v3569
        %4073 = vmatprep.subr.bf16.mxu0 %v3574
        %4074 = vmatpush1.bf16.msra.mxu0 %v3573
        %4075 = vmatprep.subr.bf16.mxu0 %v3578
        %4076 = vmatpush1.bf16.msra.mxu0 %v3577
        %4077 = vmatprep.subr.bf16.mxu0 %v3582
        %4078 = vmatpush1.bf16.msra.mxu0 %v3581
        %4079 = vmatprep.subr.bf16.mxu0 %v3586
        %4080 = vmatpush1.bf16.msra.mxu0 %v3585
        %4081 = vmatprep.subr.bf16.mxu0 %v3590
        %4082 = vmatpush1.bf16.msra.mxu0 %v3589
        %4083 = vmatprep.subr.bf16.mxu0 %v3594
        %4084 = vmatpush1.bf16.msra.mxu0 %v3593
        %4085 = vmatprep.subr.bf16.mxu0 %v3598
        %4086 = vmatpush1.bf16.msra.mxu0 %v3597
        %4087 = vmatprep.subr.bf16.mxu0 %v3602
        %4088 = vmatpush1.bf16.msra.mxu0 %v3601
        %4089 = vmatprep.subr.bf16.mxu0 %v3606
        %4090 = vmatpush1.bf16.msra.mxu0 %v3605
        %4091 = vmatprep.subr.bf16.mxu0 %v3610
        %4092 = vmatpush1.bf16.msra.mxu0 %v3609
        %4093 = vmatprep.mubr.bf16.mxu0 %v2048
        %4094 = vmatmul.mubr.bf16.gmra.mrb[0].mxu0 %v2047
        %v4095 = vpop.f32.mrb[0].mxu0
        %v4096 = vadd.f32 %v2734, %v4095
        %v4097 = vpop.f32.mrb[0].mxu0
        %v4098 = vadd.f32 %v2736, %v4097
        %v4099 = vpop.f32.mrb[0].mxu0
        %v4100 = vpop.f32.mrb[0].mxu0
        %4101 = vdwg.mxu0
        %4102 = vmatprep.subr.bf16.mxu0 %v3614
        %4103 = vmatpush1.bf16.msra.mxu0 %v3613
        %4104 = vmatprep.subr.bf16.mxu0 %v3618
        %4105 = vmatpush1.bf16.msra.mxu0 %v3617
        %4106 = vmatprep.subr.bf16.mxu0 %v3622
        %4107 = vmatpush1.bf16.msra.mxu0 %v3621
        %4108 = vmatprep.subr.bf16.mxu0 %v3626
        %4109 = vmatpush1.bf16.msra.mxu0 %v3625
        %4110 = vmatprep.subr.bf16.mxu0 %v3630
        %4111 = vmatpush1.bf16.msra.mxu0 %v3629
        %4112 = vmatprep.subr.bf16.mxu0 %v3634
        %4113 = vmatpush1.bf16.msra.mxu0 %v3633
        %4114 = vmatprep.subr.bf16.mxu0 %v3638
        %4115 = vmatpush1.bf16.msra.mxu0 %v3637
        %4116 = vmatprep.subr.bf16.mxu0 %v3642
        %4117 = vmatpush1.bf16.msra.mxu0 %v3641
        %4118 = vmatprep.subr.bf16.mxu0 %v3646
        %4119 = vmatpush1.bf16.msra.mxu0 %v3645
        %4120 = vmatprep.subr.bf16.mxu0 %v3650
        %4121 = vmatpush1.bf16.msra.mxu0 %v3649
        %4122 = vmatprep.subr.bf16.mxu0 %v3654
        %4123 = vmatpush1.bf16.msra.mxu0 %v3653
        %4124 = vmatprep.subr.bf16.mxu0 %v3658
        %4125 = vmatpush1.bf16.msra.mxu0 %v3657
        %4126 = vmatprep.subr.bf16.mxu0 %v3662
        %4127 = vmatpush1.bf16.msra.mxu0 %v3661
        %4128 = vmatprep.subr.bf16.mxu0 %v3666
        %4129 = vmatpush1.bf16.msra.mxu0 %v3665
        %4130 = vmatprep.subr.bf16.mxu0 %v3670
        %4131 = vmatpush1.bf16.msra.mxu0 %v3669
        %4132 = vmatprep.subr.bf16.mxu0 %v3674
        %4133 = vmatpush1.bf16.msra.mxu0 %v3673
        %4134 = vmatprep.mubr.bf16.mxu0 %v2050
        %4135 = vmatmul.mubr.bf16.gmra.mrb[0].mxu0 %v2049
        %v4136 = vpop.f32.mrb[0].mxu0
        %v4137 = vadd.f32 %v4096, %v4136
        %v4138 = vpop.f32.mrb[0].mxu0
        %v4139 = vadd.f32 %v4098, %v4138
        %v4140 = vpop.f32.mrb[0].mxu0
        %v4141 = vpop.f32.mrb[0].mxu0
        %4142 = vdwg.mxu0
        %4143 = vmatprep.subr.bf16.mxu0 %v3678
        %4144 = vmatpush1.bf16.msra.mxu0 %v3677
        %4145 = vmatprep.subr.bf16.mxu0 %v3682
        %4146 = vmatpush1.bf16.msra.mxu0 %v3681
        %4147 = vmatprep.subr.bf16.mxu0 %v3686
        %4148 = vmatpush1.bf16.msra.mxu0 %v3685
        %4149 = vmatprep.subr.bf16.mxu0 %v3690
        %4150 = vmatpush1.bf16.msra.mxu0 %v3689
        %4151 = vmatprep.subr.bf16.mxu0 %v3694
        %4152 = vmatpush1.bf16.msra.mxu0 %v3693
        %4153 = vmatprep.subr.bf16.mxu0 %v3698
        %4154 = vmatpush1.bf16.msra.mxu0 %v3697
        %4155 = vmatprep.subr.bf16.mxu0 %v3702
        %4156 = vmatpush1.bf16.msra.mxu0 %v3701
        %4157 = vmatprep.subr.bf16.mxu0 %v3706
        %4158 = vmatpush1.bf16.msra.mxu0 %v3705
        %4159 = vmatprep.subr.bf16.mxu0 %v3710
        %4160 = vmatpush1.bf16.msra.mxu0 %v3709
        %4161 = vmatprep.subr.bf16.mxu0 %v3714
        %4162 = vmatpush1.bf16.msra.mxu0 %v3713
        %4163 = vmatprep.subr.bf16.mxu0 %v3718
        %4164 = vmatpush1.bf16.msra.mxu0 %v3717
        %4165 = vmatprep.subr.bf16.mxu0 %v3722
        %4166 = vmatpush1.bf16.msra.mxu0 %v3721
        %4167 = vmatprep.subr.bf16.mxu0 %v3726
        %4168 = vmatpush1.bf16.msra.mxu0 %v3725
        %4169 = vmatprep.subr.bf16.mxu0 %v3730
        %4170 = vmatpush1.bf16.msra.mxu0 %v3729
        %4171 = vmatprep.subr.bf16.mxu0 %v3734
        %4172 = vmatpush1.bf16.msra.mxu0 %v3733
        %4173 = vmatprep.subr.bf16.mxu0 %v3738
        %4174 = vmatpush1.bf16.msra.mxu0 %v3737
        %4175 = vmatprep.mubr.bf16.mxu0 %v2052
        %4176 = vmatmul.mubr.bf16.gmra.mrb[0].mxu0 %v2051
        %v4177 = vpop.f32.mrb[0].mxu0
        %v4178 = vadd.f32 %v4137, %v4177
        %v4179 = vpop.f32.mrb[0].mxu0
        %v4180 = vadd.f32 %v4139, %v4179
        %v4181 = vpop.f32.mrb[0].mxu0
        %v4182 = vpop.f32.mrb[0].mxu0
        %4183 = vdwg.mxu0
        %4184 = vmatprep.subr.bf16.mxu0 %v3742
        %4185 = vmatpush1.bf16.msra.mxu0 %v3741
        %4186 = vmatprep.subr.bf16.mxu0 %v3746
        %4187 = vmatpush1.bf16.msra.mxu0 %v3745
        %4188 = vmatprep.subr.bf16.mxu0 %v3750
        %4189 = vmatpush1.bf16.msra.mxu0 %v3749
        %4190 = vmatprep.subr.bf16.mxu0 %v3754
        %4191 = vmatpush1.bf16.msra.mxu0 %v3753
        %4192 = vmatprep.subr.bf16.mxu0 %v3758
        %4193 = vmatpush1.bf16.msra.mxu0 %v3757
        %4194 = vmatprep.subr.bf16.mxu0 %v3762
        %4195 = vmatpush1.bf16.msra.mxu0 %v3761
        %4196 = vmatprep.subr.bf16.mxu0 %v3766
        %4197 = vmatpush1.bf16.msra.mxu0 %v3765
        %4198 = vmatprep.subr.bf16.mxu0 %v3770
        %4199 = vmatpush1.bf16.msra.mxu0 %v3769
        %4200 = vmatprep.subr.bf16.mxu0 %v3774
        %4201 = vmatpush1.bf16.msra.mxu0 %v3773
        %4202 = vmatprep.subr.bf16.mxu0 %v3778
        %4203 = vmatpush1.bf16.msra.mxu0 %v3777
        %4204 = vmatprep.subr.bf16.mxu0 %v3782
        %4205 = vmatpush1.bf16.msra.mxu0 %v3781
        %4206 = vmatprep.subr.bf16.mxu0 %v3786
        %4207 = vmatpush1.bf16.msra.mxu0 %v3785
        %4208 = vmatprep.subr.bf16.mxu0 %v3790
        %4209 = vmatpush1.bf16.msra.mxu0 %v3789
        %4210 = vmatprep.subr.bf16.mxu0 %v3794
        %4211 = vmatpush1.bf16.msra.mxu0 %v3793
        %4212 = vmatprep.subr.bf16.mxu0 %v3798
        %4213 = vmatpush1.bf16.msra.mxu0 %v3797
        %4214 = vmatprep.subr.bf16.mxu0 %v3802
        %4215 = vmatpush1.bf16.msra.mxu0 %v3801
        %4216 = vmatprep.mubr.bf16.mxu0 %v2054
        %4217 = vmatmul.mubr.bf16.gmra.mrb[0].mxu0 %v2053
        %v4218 = vpop.f32.mrb[0].mxu0
        %v4219 = vadd.f32 %v4178, %v4218
        %v4220 = vpop.f32.mrb[0].mxu0
        %v4221 = vadd.f32 %v4180, %v4220
        %v4222 = vpop.f32.mrb[0].mxu0
        %v4223 = vpop.f32.mrb[0].mxu0
        %4224 = vdwg.mxu0
        %4225 = vmatprep.subr.bf16.mxu0 %v3552
        %4226 = vmatpush1.bf16.msra.mxu0 %v3551
        %4227 = vmatprep.subr.bf16.mxu0 %v3556
        %4228 = vmatpush1.bf16.msra.mxu0 %v3555
        %4229 = vmatprep.subr.bf16.mxu0 %v3560
        %4230 = vmatpush1.bf16.msra.mxu0 %v3559
        %4231 = vmatprep.subr.bf16.mxu0 %v3564
        %4232 = vmatpush1.bf16.msra.mxu0 %v3563
        %4233 = vmatprep.subr.bf16.mxu0 %v3568
        %4234 = vmatpush1.bf16.msra.mxu0 %v3567
        %4235 = vmatprep.subr.bf16.mxu0 %v3572
        %4236 = vmatpush1.bf16.msra.mxu0 %v3571
        %4237 = vmatprep.subr.bf16.mxu0 %v3576
        %4238 = vmatpush1.bf16.msra.mxu0 %v3575
        %4239 = vmatprep.subr.bf16.mxu0 %v3580
        %4240 = vmatpush1.bf16.msra.mxu0 %v3579
        %4241 = vmatprep.subr.bf16.mxu0 %v3584
        %4242 = vmatpush1.bf16.msra.mxu0 %v3583
        %4243 = vmatprep.subr.bf16.mxu0 %v3588
        %4244 = vmatpush1.bf16.msra.mxu0 %v3587
        %4245 = vmatprep.subr.bf16.mxu0 %v3592
        %4246 = vmatpush1.bf16.msra.mxu0 %v3591
        %4247 = vmatprep.subr.bf16.mxu0 %v3596
        %4248 = vmatpush1.bf16.msra.mxu0 %v3595
        %4249 = vmatprep.subr.bf16.mxu0 %v3600
        %4250 = vmatpush1.bf16.msra.mxu0 %v3599
        %4251 = vmatprep.subr.bf16.mxu0 %v3604
        %4252 = vmatpush1.bf16.msra.mxu0 %v3603
        %4253 = vmatprep.subr.bf16.mxu0 %v3608
        %4254 = vmatpush1.bf16.msra.mxu0 %v3607
        %4255 = vmatprep.subr.bf16.mxu0 %v3612
        %4256 = vmatpush1.bf16.msra.mxu0 %v3611
        %4257 = vmatprep.mubr.bf16.mxu0 %v2048
        %4258 = vmatmul.mubr.bf16.gmra.mrb[0].mxu0 %v2047
        %v4259 = vpop.f32.mrb[0].mxu0
        %v4260 = vadd.f32 %v2775, %v4259
        %v4261 = vpop.f32.mrb[0].mxu0
        %v4262 = vadd.f32 %v2777, %v4261
        %v4263 = vpop.f32.mrb[0].mxu0
        %v4264 = vpop.f32.mrb[0].mxu0
        %4265 = vdwg.mxu0
        %4266 = vmatprep.subr.bf16.mxu0 %v3616
        %4267 = vmatpush1.bf16.msra.mxu0 %v3615
        %4268 = vmatprep.subr.bf16.mxu0 %v3620
        %4269 = vmatpush1.bf16.msra.mxu0 %v3619
        %4270 = vmatprep.subr.bf16.mxu0 %v3624
        %4271 = vmatpush1.bf16.msra.mxu0 %v3623
        %4272 = vmatprep.subr.bf16.mxu0 %v3628
        %4273 = vmatpush1.bf16.msra.mxu0 %v3627
        %4274 = vmatprep.subr.bf16.mxu0 %v3632
        %4275 = vmatpush1.bf16.msra.mxu0 %v3631
        %4276 = vmatprep.subr.bf16.mxu0 %v3636
        %4277 = vmatpush1.bf16.msra.mxu0 %v3635
        %4278 = vmatprep.subr.bf16.mxu0 %v3640
        %4279 = vmatpush1.bf16.msra.mxu0 %v3639
        %4280 = vmatprep.subr.bf16.mxu0 %v3644
        %4281 = vmatpush1.bf16.msra.mxu0 %v3643
        %4282 = vmatprep.subr.bf16.mxu0 %v3648
        %4283 = vmatpush1.bf16.msra.mxu0 %v3647
        %4284 = vmatprep.subr.bf16.mxu0 %v3652
        %4285 = vmatpush1.bf16.msra.mxu0 %v3651
        %4286 = vmatprep.subr.bf16.mxu0 %v3656
        %4287 = vmatpush1.bf16.msra.mxu0 %v3655
        %4288 = vmatprep.subr.bf16.mxu0 %v3660
        %4289 = vmatpush1.bf16.msra.mxu0 %v3659
        %4290 = vmatprep.subr.bf16.mxu0 %v3664
        %4291 = vmatpush1.bf16.msra.mxu0 %v3663
        %4292 = vmatprep.subr.bf16.mxu0 %v3668
        %4293 = vmatpush1.bf16.msra.mxu0 %v3667
        %4294 = vmatprep.subr.bf16.mxu0 %v3672
        %4295 = vmatpush1.bf16.msra.mxu0 %v3671
        %4296 = vmatprep.subr.bf16.mxu0 %v3676
        %4297 = vmatpush1.bf16.msra.mxu0 %v3675
        %4298 = vmatprep.mubr.bf16.mxu0 %v2050
        %4299 = vmatmul.mubr.bf16.gmra.mrb[0].mxu0 %v2049
        %v4300 = vpop.f32.mrb[0].mxu0
        %v4301 = vadd.f32 %v4260, %v4300
        %v4302 = vpop.f32.mrb[0].mxu0
        %v4303 = vadd.f32 %v4262, %v4302
        %v4304 = vpop.f32.mrb[0].mxu0
        %v4305 = vpop.f32.mrb[0].mxu0
        %4306 = vdwg.mxu0
        %4307 = vmatprep.subr.bf16.mxu0 %v3680
        %4308 = vmatpush1.bf16.msra.mxu0 %v3679
        %4309 = vmatprep.subr.bf16.mxu0 %v3684
        %4310 = vmatpush1.bf16.msra.mxu0 %v3683
        %4311 = vmatprep.subr.bf16.mxu0 %v3688
        %4312 = vmatpush1.bf16.msra.mxu0 %v3687
        %4313 = vmatprep.subr.bf16.mxu0 %v3692
        %4314 = vmatpush1.bf16.msra.mxu0 %v3691
        %4315 = vmatprep.subr.bf16.mxu0 %v3696
        %4316 = vmatpush1.bf16.msra.mxu0 %v3695
        %4317 = vmatprep.subr.bf16.mxu0 %v3700
        %4318 = vmatpush1.bf16.msra.mxu0 %v3699
        %4319 = vmatprep.subr.bf16.mxu0 %v3704
        %4320 = vmatpush1.bf16.msra.mxu0 %v3703
        %4321 = vmatprep.subr.bf16.mxu0 %v3708
        %4322 = vmatpush1.bf16.msra.mxu0 %v3707
        %4323 = vmatprep.subr.bf16.mxu0 %v3712
        %4324 = vmatpush1.bf16.msra.mxu0 %v3711
        %4325 = vmatprep.subr.bf16.mxu0 %v3716
        %4326 = vmatpush1.bf16.msra.mxu0 %v3715
        %4327 = vmatprep.subr.bf16.mxu0 %v3720
        %4328 = vmatpush1.bf16.msra.mxu0 %v3719
        %4329 = vmatprep.subr.bf16.mxu0 %v3724
        %4330 = vmatpush1.bf16.msra.mxu0 %v3723
        %4331 = vmatprep.subr.bf16.mxu0 %v3728
        %4332 = vmatpush1.bf16.msra.mxu0 %v3727
        %4333 = vmatprep.subr.bf16.mxu0 %v3732
        %4334 = vmatpush1.bf16.msra.mxu0 %v3731
        %4335 = vmatprep.subr.bf16.mxu0 %v3736
        %4336 = vmatpush1.bf16.msra.mxu0 %v3735
        %4337 = vmatprep.subr.bf16.mxu0 %v3740
        %4338 = vmatpush1.bf16.msra.mxu0 %v3739
        %4339 = vmatprep.mubr.bf16.mxu0 %v2052
        %4340 = vmatmul.mubr.bf16.gmra.mrb[0].mxu0 %v2051
        %v4341 = vpop.f32.mrb[0].mxu0
        %v4342 = vadd.f32 %v4301, %v4341
        %v4343 = vpop.f32.mrb[0].mxu0
        %v4344 = vadd.f32 %v4303, %v4343
        %v4345 = vpop.f32.mrb[0].mxu0
        %v4346 = vpop.f32.mrb[0].mxu0
        %4347 = vdwg.mxu0
        %4348 = vmatprep.subr.bf16.mxu0 %v3744
        %4349 = vmatpush1.bf16.msra.mxu0 %v3743
        %4350 = vmatprep.subr.bf16.mxu0 %v3748
        %4351 = vmatpush1.bf16.msra.mxu0 %v3747
        %4352 = vmatprep.subr.bf16.mxu0 %v3752
        %4353 = vmatpush1.bf16.msra.mxu0 %v3751
        %4354 = vmatprep.subr.bf16.mxu0 %v3756
        %4355 = vmatpush1.bf16.msra.mxu0 %v3755
        %4356 = vmatprep.subr.bf16.mxu0 %v3760
        %4357 = vmatpush1.bf16.msra.mxu0 %v3759
        %4358 = vmatprep.subr.bf16.mxu0 %v3764
        %4359 = vmatpush1.bf16.msra.mxu0 %v3763
        %4360 = vmatprep.subr.bf16.mxu0 %v3768
        %4361 = vmatpush1.bf16.msra.mxu0 %v3767
        %4362 = vmatprep.subr.bf16.mxu0 %v3772
        %4363 = vmatpush1.bf16.msra.mxu0 %v3771
        %4364 = vmatprep.subr.bf16.mxu0 %v3776
        %4365 = vmatpush1.bf16.msra.mxu0 %v3775
        %4366 = vmatprep.subr.bf16.mxu0 %v3780
        %4367 = vmatpush1.bf16.msra.mxu0 %v3779
        %4368 = vmatprep.subr.bf16.mxu0 %v3784
        %4369 = vmatpush1.bf16.msra.mxu0 %v3783
        %4370 = vmatprep.subr.bf16.mxu0 %v3788
        %4371 = vmatpush1.bf16.msra.mxu0 %v3787
        %4372 = vmatprep.subr.bf16.mxu0 %v3792
        %4373 = vmatpush1.bf16.msra.mxu0 %v3791
        %4374 = vmatprep.subr.bf16.mxu0 %v3796
        %4375 = vmatpush1.bf16.msra.mxu0 %v3795
        %4376 = vmatprep.subr.bf16.mxu0 %v3800
        %4377 = vmatpush1.bf16.msra.mxu0 %v3799
        %4378 = vmatprep.subr.bf16.mxu0 %v3804
        %4379 = vmatpush1.bf16.msra.mxu0 %v3803
        %4380 = vmatprep.mubr.bf16.mxu0 %v2054
        %4381 = vmatmul.mubr.bf16.gmra.mrb[0].mxu0 %v2053
        %v4382 = vpop.f32.mrb[0].mxu0
        %v4383 = vadd.f32 %v4342, %v4382
        %v4384 = vpop.f32.mrb[0].mxu0
        %v4385 = vadd.f32 %v4344, %v4384
        %v4386 = vpop.f32.mrb[0].mxu0
        %v4387 = vpop.f32.mrb[0].mxu0
        %4388 = vdwg.mxu0
        %v4389 = vld [vmem:[%s6] sm:$0xf]
        %v4391 = vlaneseq
        %v4392 = vshrl.u32 %v4391, 7
        %v4393 = vsub.s32 0, %v4392
        %v4394 = vrot.slane %v4389, %v4393
        %v4395 = vlaneseq
        %v4396 = vshrl.u32 %v4395, 7
        %v4397 = vsub.s32 1, %v4396
        %v4398 = vrot.slane %v4389, %v4397
        %v4399 = vlaneseq
        %v4400 = vshrl.u32 %v4399, 7
        %v4401 = vsub.s32 2, %v4400
        %v4402 = vrot.slane %v4389, %v4401
        %v4403 = vlaneseq
        %v4404 = vshrl.u32 %v4403, 7
        %v4405 = vsub.s32 3, %v4404
        %v4406 = vrot.slane %v4389, %v4405
        %v4411 = vadd.f32 %v4219, %v4394
        %v4412 = vadd.f32 %v4221, %v4398
        %v4413 = vadd.f32 %v4383, %v4402
        %v4414 = vadd.f32 %v4385, %v4406
        %v4415 = vmax.f32 %v4411, 0.0
        %v4416 = vmax.f32 %v4412, 0.0
        %v4417 = vmax.f32 %v4413, 0.0
        %v4418 = vmax.f32 %v4414, 0.0
        %4419 = vst.msk [vmem:[#allocation3] ss:$8 sm:$0x3] %vm2034, 0.0
        %4420 = vst.msk [vmem:[#allocation3] ss:$8 sm:$0x0] %vm2034, 0.0
        %v4423 = vrot.slane %v4417, 7
        %v4424 = vrot.slane %v4418, 7
        %4427 = vst [vmem:[#allocation3] sm:$0xfe] %v4423
        %4428 = vst [vmem:[#allocation3 + $0x8] sm:$0xfe] %v4424
        %4429 = vst [vmem:[#allocation3 + $0x10] sm:$0x1] %v4423
        %4430 = vst [vmem:[#allocation3 + $0x18] sm:$0x1] %v4424
        %v4431 = vpack.c.bf16 %v4415, %v4415
        %v4432 = vpack.c.bf16 %v4416, %v4416
        %v4433 = vpack.c.bf16 %v4417, %v4417
        %v4434 = vpack.c.bf16 %v4418, %v4418
        %v4435 = vld [vmem:[#allocation10] sm:$0xff]
        %v4436 = vld [vmem:[#allocation10 + $0x8] sm:$0xff]
        %v4437 = vld [vmem:[#allocation10 + $0x10] sm:$0xff]
        %v4438 = vld [vmem:[#allocation10 + $0x18] sm:$0xff]
        %v4439 = vld [vmem:[#allocation10 + $0x20] sm:$0xff]
        %v4440 = vld [vmem:[#allocation10 + $0x28] sm:$0xff]
        %v4441 = vld [vmem:[#allocation10 + $0x30] sm:$0xff]
        %v4442 = vld [vmem:[#allocation10 + $0x38] sm:$0xff]
        %v4443 = vld [vmem:[#allocation10 + $0x40] sm:$0xff]
        %v4444 = vld [vmem:[#allocation10 + $0x48] sm:$0xff]
        %v4445 = vld [vmem:[#allocation10 + $0x50] sm:$0xff]
        %v4446 = vld [vmem:[#allocation10 + $0x58] sm:$0xff]
        %v4447 = vld [vmem:[#allocation10 + $0x60] sm:$0xff]
        %v4448 = vld [vmem:[#allocation10 + $0x68] sm:$0xff]
        %v4449 = vld [vmem:[#allocation10 + $0x70] sm:$0xff]
        %v4450 = vld [vmem:[#allocation10 + $0x78] sm:$0xff]
        %v4451 = vld [vmem:[#allocation10 + $0x80] sm:$0xff]
        %v4452 = vld [vmem:[#allocation10 + $0x88] sm:$0xff]
        %v4453 = vld [vmem:[#allocation10 + $0x90] sm:$0xff]
        %v4454 = vld [vmem:[#allocation10 + $0x98] sm:$0xff]
        %v4455 = vld [vmem:[#allocation10 + $0xa0] sm:$0xff]
        %v4456 = vld [vmem:[#allocation10 + $0xa8] sm:$0xff]
        %v4457 = vld [vmem:[#allocation10 + $0xb0] sm:$0xff]
        %v4458 = vld [vmem:[#allocation10 + $0xb8] sm:$0xff]
        %v4459 = vld [vmem:[#allocation10 + $0xc0] sm:$0xff]
        %v4460 = vld [vmem:[#allocation10 + $0xc8] sm:$0xff]
        %v4461 = vld [vmem:[#allocation10 + $0xd0] sm:$0xff]
        %v4462 = vld [vmem:[#allocation10 + $0xd8] sm:$0xff]
        %v4463 = vld [vmem:[#allocation10 + $0xe0] sm:$0xff]
        %v4464 = vld [vmem:[#allocation10 + $0xe8] sm:$0xff]
        %v4465 = vld [vmem:[#allocation10 + $0xf0] sm:$0xff]
        %v4466 = vld [vmem:[#allocation10 + $0xf8] sm:$0xff]
        %v4467 = vld [vmem:[#allocation10 + $0x100] sm:$0xff]
        %v4468 = vld [vmem:[#allocation10 + $0x108] sm:$0xff]
        %v4469 = vld [vmem:[#allocation10 + $0x110] sm:$0xff]
        %v4470 = vld [vmem:[#allocation10 + $0x118] sm:$0xff]
        %v4471 = vld [vmem:[#allocation10 + $0x120] sm:$0xff]
        %v4472 = vld [vmem:[#allocation10 + $0x128] sm:$0xff]
        %v4473 = vld [vmem:[#allocation10 + $0x130] sm:$0xff]
        %v4474 = vld [vmem:[#allocation10 + $0x138] sm:$0xff]
        %v4475 = vld [vmem:[#allocation10 + $0x140] sm:$0xff]
        %v4476 = vld [vmem:[#allocation10 + $0x148] sm:$0xff]
        %v4477 = vld [vmem:[#allocation10 + $0x150] sm:$0xff]
        %v4478 = vld [vmem:[#allocation10 + $0x158] sm:$0xff]
        %v4479 = vld [vmem:[#allocation10 + $0x160] sm:$0xff]
        %v4480 = vld [vmem:[#allocation10 + $0x168] sm:$0xff]
        %v4481 = vld [vmem:[#allocation10 + $0x170] sm:$0xff]
        %v4482 = vld [vmem:[#allocation10 + $0x178] sm:$0xff]
        %v4483 = vld [vmem:[#allocation10 + $0x180] sm:$0xff]
        %v4484 = vld [vmem:[#allocation10 + $0x188] sm:$0xff]
        %v4485 = vld [vmem:[#allocation10 + $0x190] sm:$0xff]
        %v4486 = vld [vmem:[#allocation10 + $0x198] sm:$0xff]
        %v4487 = vld [vmem:[#allocation10 + $0x1a0] sm:$0xff]
        %v4488 = vld [vmem:[#allocation10 + $0x1a8] sm:$0xff]
        %v4489 = vld [vmem:[#allocation10 + $0x1b0] sm:$0xff]
        %v4490 = vld [vmem:[#allocation10 + $0x1b8] sm:$0xff]
        %v4491 = vld [vmem:[#allocation10 + $0x1c0] sm:$0xff]
        %v4492 = vld [vmem:[#allocation10 + $0x1c8] sm:$0xff]
        %v4493 = vld [vmem:[#allocation10 + $0x1d0] sm:$0xff]
        %v4494 = vld [vmem:[#allocation10 + $0x1d8] sm:$0xff]
        %v4495 = vld [vmem:[#allocation10 + $0x1e0] sm:$0xff]
        %v4496 = vld [vmem:[#allocation10 + $0x1e8] sm:$0xff]
        %v4497 = vld [vmem:[#allocation10 + $0x1f0] sm:$0xff]
        %v4498 = vld [vmem:[#allocation10 + $0x1f8] sm:$0xff]
        %v4499 = vld [vmem:[#allocation3] sm:$0xff]
        %v4500 = vld [vmem:[#allocation3 + $0x8] sm:$0xff]
        %v4501 = vpack.c.bf16 %v4499, %v4499
        %v4502 = vpack.c.bf16 %v4500, %v4500
        %v4503 = vld [vmem:[#allocation9] sm:$0xff]
        %v4504 = vld [vmem:[#allocation9 + $0x8] sm:$0xff]
        %v4505 = vld [vmem:[#allocation9 + $0x10] sm:$0xff]
        %v4506 = vld [vmem:[#allocation9 + $0x18] sm:$0xff]
        %v4507 = vld [vmem:[#allocation9 + $0x20] sm:$0xff]
        %v4508 = vld [vmem:[#allocation9 + $0x28] sm:$0xff]
        %v4509 = vld [vmem:[#allocation9 + $0x30] sm:$0xff]
        %v4510 = vld [vmem:[#allocation9 + $0x38] sm:$0xff]
        %v4511 = vld [vmem:[#allocation9 + $0x40] sm:$0xff]
        %v4512 = vld [vmem:[#allocation9 + $0x48] sm:$0xff]
        %v4513 = vld [vmem:[#allocation9 + $0x50] sm:$0xff]
        %v4514 = vld [vmem:[#allocation9 + $0x58] sm:$0xff]
        %v4515 = vld [vmem:[#allocation9 + $0x60] sm:$0xff]
        %v4516 = vld [vmem:[#allocation9 + $0x68] sm:$0xff]
        %v4517 = vld [vmem:[#allocation9 + $0x70] sm:$0xff]
        %v4518 = vld [vmem:[#allocation9 + $0x78] sm:$0xff]
        %v4519 = vld [vmem:[#allocation9 + $0x80] sm:$0xff]
        %v4520 = vld [vmem:[#allocation9 + $0x88] sm:$0xff]
        %v4521 = vld [vmem:[#allocation9 + $0x90] sm:$0xff]
        %v4522 = vld [vmem:[#allocation9 + $0x98] sm:$0xff]
        %v4523 = vld [vmem:[#allocation9 + $0xa0] sm:$0xff]
        %v4524 = vld [vmem:[#allocation9 + $0xa8] sm:$0xff]
        %v4525 = vld [vmem:[#allocation9 + $0xb0] sm:$0xff]
        %v4526 = vld [vmem:[#allocation9 + $0xb8] sm:$0xff]
        %v4527 = vld [vmem:[#allocation9 + $0xc0] sm:$0xff]
        %v4528 = vld [vmem:[#allocation9 + $0xc8] sm:$0xff]
        %v4529 = vld [vmem:[#allocation9 + $0xd0] sm:$0xff]
        %v4530 = vld [vmem:[#allocation9 + $0xd8] sm:$0xff]
        %v4531 = vld [vmem:[#allocation9 + $0xe0] sm:$0xff]
        %v4532 = vld [vmem:[#allocation9 + $0xe8] sm:$0xff]
        %v4533 = vld [vmem:[#allocation9 + $0xf0] sm:$0xff]
        %v4534 = vld [vmem:[#allocation9 + $0xf8] sm:$0xff]
        %v4567 = vunpack.c.l.b16 %v4503
        %v4568 = vunpack.c.h.b16 %v4503
        %v4569 = vunpack.c.l.b16 %v4504
        %v4570 = vunpack.c.h.b16 %v4504
        %v4571 = vunpack.c.l.b16 %v4505
        %v4572 = vunpack.c.h.b16 %v4505
        %v4573 = vunpack.c.l.b16 %v4506
        %v4574 = vunpack.c.h.b16 %v4506
        %v4575 = vunpack.c.l.b16 %v4507
        %v4576 = vunpack.c.h.b16 %v4507
        %v4577 = vunpack.c.l.b16 %v4508
        %v4578 = vunpack.c.h.b16 %v4508
        %v4579 = vunpack.c.l.b16 %v4509
        %v4580 = vunpack.c.h.b16 %v4509
        %v4581 = vunpack.c.l.b16 %v4510
        %v4582 = vunpack.c.h.b16 %v4510
        %v4583 = vunpack.c.l.b16 %v4511
        %v4584 = vunpack.c.h.b16 %v4511
        %v4585 = vunpack.c.l.b16 %v4512
        %v4586 = vunpack.c.h.b16 %v4512
        %v4587 = vunpack.c.l.b16 %v4513
        %v4588 = vunpack.c.h.b16 %v4513
        %v4589 = vunpack.c.l.b16 %v4514
        %v4590 = vunpack.c.h.b16 %v4514
        %v4591 = vunpack.c.l.b16 %v4515
        %v4592 = vunpack.c.h.b16 %v4515
        %v4593 = vunpack.c.l.b16 %v4516
        %v4594 = vunpack.c.h.b16 %v4516
        %v4595 = vunpack.c.l.b16 %v4517
        %v4596 = vunpack.c.h.b16 %v4517
        %v4597 = vunpack.c.l.b16 %v4518
        %v4598 = vunpack.c.h.b16 %v4518
        %v4599 = vunpack.c.l.b16 %v4519
        %v4600 = vunpack.c.h.b16 %v4519
        %v4601 = vunpack.c.l.b16 %v4520
        %v4602 = vunpack.c.h.b16 %v4520
        %v4603 = vunpack.c.l.b16 %v4521
        %v4604 = vunpack.c.h.b16 %v4521
        %v4605 = vunpack.c.l.b16 %v4522
        %v4606 = vunpack.c.h.b16 %v4522
        %v4607 = vunpack.c.l.b16 %v4523
        %v4608 = vunpack.c.h.b16 %v4523
        %v4609 = vunpack.c.l.b16 %v4524
        %v4610 = vunpack.c.h.b16 %v4524
        %v4611 = vunpack.c.l.b16 %v4525
        %v4612 = vunpack.c.h.b16 %v4525
        %v4613 = vunpack.c.l.b16 %v4526
        %v4614 = vunpack.c.h.b16 %v4526
        %v4615 = vunpack.c.l.b16 %v4527
        %v4616 = vunpack.c.h.b16 %v4527
        %v4617 = vunpack.c.l.b16 %v4528
        %v4618 = vunpack.c.h.b16 %v4528
        %v4619 = vunpack.c.l.b16 %v4529
        %v4620 = vunpack.c.h.b16 %v4529
        %v4621 = vunpack.c.l.b16 %v4530
        %v4622 = vunpack.c.h.b16 %v4530
        %v4623 = vunpack.c.l.b16 %v4531
        %v4624 = vunpack.c.h.b16 %v4531
        %v4625 = vunpack.c.l.b16 %v4532
        %v4626 = vunpack.c.h.b16 %v4532
        %v4627 = vunpack.c.l.b16 %v4533
        %v4628 = vunpack.c.h.b16 %v4533
        %v4629 = vunpack.c.l.b16 %v4534
        %v4630 = vunpack.c.h.b16 %v4534
        %v4631 = vpack.c.b16 %v4569, %v4567
        %v4632 = vpack.c.b16 %v4570, %v4568
        %v4633 = vpack.c.b16 %v4573, %v4571
        %v4634 = vpack.c.b16 %v4574, %v4572
        %v4635 = vpack.c.b16 %v4577, %v4575
        %v4636 = vpack.c.b16 %v4578, %v4576
        %v4637 = vpack.c.b16 %v4581, %v4579
        %v4638 = vpack.c.b16 %v4582, %v4580
        %v4639 = vpack.c.b16 %v4585, %v4583
        %v4640 = vpack.c.b16 %v4586, %v4584
        %v4641 = vpack.c.b16 %v4589, %v4587
        %v4642 = vpack.c.b16 %v4590, %v4588
        %v4643 = vpack.c.b16 %v4593, %v4591
        %v4644 = vpack.c.b16 %v4594, %v4592
        %v4645 = vpack.c.b16 %v4597, %v4595
        %v4646 = vpack.c.b16 %v4598, %v4596
        %v4647 = vpack.c.b16 %v4601, %v4599
        %v4648 = vpack.c.b16 %v4602, %v4600
        %v4649 = vpack.c.b16 %v4605, %v4603
        %v4650 = vpack.c.b16 %v4606, %v4604
        %v4651 = vpack.c.b16 %v4609, %v4607
        %v4652 = vpack.c.b16 %v4610, %v4608
        %v4653 = vpack.c.b16 %v4613, %v4611
        %v4654 = vpack.c.b16 %v4614, %v4612
        %v4655 = vpack.c.b16 %v4617, %v4615
        %v4656 = vpack.c.b16 %v4618, %v4616
        %v4657 = vpack.c.b16 %v4621, %v4619
        %v4658 = vpack.c.b16 %v4622, %v4620
        %v4659 = vpack.c.b16 %v4625, %v4623
        %v4660 = vpack.c.b16 %v4626, %v4624
        %v4661 = vpack.c.b16 %v4629, %v4627
        %v4662 = vpack.c.b16 %v4630, %v4628
        %4695 = vmatprep.subr.bf16.mxu0 %v4632
        %4696 = vmatpush1.bf16.msra.mxu0 %v4631
        %4697 = vmatprep.subr.bf16.mxu0 %v4634
        %4698 = vmatpush1.bf16.msra.mxu0 %v4633
        %4699 = vmatprep.subr.bf16.mxu0 %v4636
        %4700 = vmatpush1.bf16.msra.mxu0 %v4635
        %4701 = vmatprep.subr.bf16.mxu0 %v4638
        %4702 = vmatpush1.bf16.msra.mxu0 %v4637
        %4703 = vmatprep.subr.bf16.mxu0 %v4640
        %4704 = vmatpush1.bf16.msra.mxu0 %v4639
        %4705 = vmatprep.subr.bf16.mxu0 %v4642
        %4706 = vmatpush1.bf16.msra.mxu0 %v4641
        %4707 = vmatprep.subr.bf16.mxu0 %v4644
        %4708 = vmatpush1.bf16.msra.mxu0 %v4643
        %4709 = vmatprep.subr.bf16.mxu0 %v4646
        %4710 = vmatpush1.bf16.msra.mxu0 %v4645
        %4711 = vmatprep.subr.bf16.mxu0 %v4648
        %4712 = vmatpush1.bf16.msra.mxu0 %v4647
        %4713 = vmatprep.subr.bf16.mxu0 %v4650
        %4714 = vmatpush1.bf16.msra.mxu0 %v4649
        %4715 = vmatprep.subr.bf16.mxu0 %v4652
        %4716 = vmatpush1.bf16.msra.mxu0 %v4651
        %4717 = vmatprep.subr.bf16.mxu0 %v4654
        %4718 = vmatpush1.bf16.msra.mxu0 %v4653
        %4719 = vmatprep.subr.bf16.mxu0 %v4656
        %4720 = vmatpush1.bf16.msra.mxu0 %v4655
        %4721 = vmatprep.subr.bf16.mxu0 %v4658
        %4722 = vmatpush1.bf16.msra.mxu0 %v4657
        %4723 = vmatprep.subr.bf16.mxu0 %v4660
        %4724 = vmatpush1.bf16.msra.mxu0 %v4659
        %4725 = vmatprep.subr.bf16.mxu0 %v4662
        %4726 = vmatpush1.bf16.msra.mxu0 %v4661
        %4727 = vmatprep.mubr.bf16.mxu0 %v4502
        %4728 = vmatmul.mubr.bf16.gmra.mrb[0].mxu0 %v4501
        %v4729 = vpop.f32.mrb[0].mxu0
        %v4730 = vadd.f32 0.0, %v4729
        %v4731 = vpop.f32.mrb[0].mxu0
        %v4732 = vadd.f32 0.0, %v4731
        %v4733 = vpop.f32.mrb[0].mxu0
        %v4734 = vpop.f32.mrb[0].mxu0
        %4735 = vdwg.mxu0
        %v4800 = vunpack.c.l.b16 %v4435
        %v4801 = vunpack.c.h.b16 %v4435
        %v4802 = vunpack.c.l.b16 %v4436
        %v4803 = vunpack.c.h.b16 %v4436
        %v4804 = vunpack.c.l.b16 %v4437
        %v4805 = vunpack.c.h.b16 %v4437
        %v4806 = vunpack.c.l.b16 %v4438
        %v4807 = vunpack.c.h.b16 %v4438
        %v4808 = vunpack.c.l.b16 %v4439
        %v4809 = vunpack.c.h.b16 %v4439
        %v4810 = vunpack.c.l.b16 %v4440
        %v4811 = vunpack.c.h.b16 %v4440
        %v4812 = vunpack.c.l.b16 %v4441
        %v4813 = vunpack.c.h.b16 %v4441
        %v4814 = vunpack.c.l.b16 %v4442
        %v4815 = vunpack.c.h.b16 %v4442
        %v4816 = vunpack.c.l.b16 %v4443
        %v4817 = vunpack.c.h.b16 %v4443
        %v4818 = vunpack.c.l.b16 %v4444
        %v4819 = vunpack.c.h.b16 %v4444
        %v4820 = vunpack.c.l.b16 %v4445
        %v4821 = vunpack.c.h.b16 %v4445
        %v4822 = vunpack.c.l.b16 %v4446
        %v4823 = vunpack.c.h.b16 %v4446
        %v4824 = vunpack.c.l.b16 %v4447
        %v4825 = vunpack.c.h.b16 %v4447
        %v4826 = vunpack.c.l.b16 %v4448
        %v4827 = vunpack.c.h.b16 %v4448
        %v4828 = vunpack.c.l.b16 %v4449
        %v4829 = vunpack.c.h.b16 %v4449
        %v4830 = vunpack.c.l.b16 %v4450
        %v4831 = vunpack.c.h.b16 %v4450
        %v4832 = vunpack.c.l.b16 %v4451
        %v4833 = vunpack.c.h.b16 %v4451
        %v4834 = vunpack.c.l.b16 %v4452
        %v4835 = vunpack.c.h.b16 %v4452
        %v4836 = vunpack.c.l.b16 %v4453
        %v4837 = vunpack.c.h.b16 %v4453
        %v4838 = vunpack.c.l.b16 %v4454
        %v4839 = vunpack.c.h.b16 %v4454
        %v4840 = vunpack.c.l.b16 %v4455
        %v4841 = vunpack.c.h.b16 %v4455
        %v4842 = vunpack.c.l.b16 %v4456
        %v4843 = vunpack.c.h.b16 %v4456
        %v4844 = vunpack.c.l.b16 %v4457
        %v4845 = vunpack.c.h.b16 %v4457
        %v4846 = vunpack.c.l.b16 %v4458
        %v4847 = vunpack.c.h.b16 %v4458
        %v4848 = vunpack.c.l.b16 %v4459
        %v4849 = vunpack.c.h.b16 %v4459
        %v4850 = vunpack.c.l.b16 %v4460
        %v4851 = vunpack.c.h.b16 %v4460
        %v4852 = vunpack.c.l.b16 %v4461
        %v4853 = vunpack.c.h.b16 %v4461
        %v4854 = vunpack.c.l.b16 %v4462
        %v4855 = vunpack.c.h.b16 %v4462
        %v4856 = vunpack.c.l.b16 %v4463
        %v4857 = vunpack.c.h.b16 %v4463
        %v4858 = vunpack.c.l.b16 %v4464
        %v4859 = vunpack.c.h.b16 %v4464
        %v4860 = vunpack.c.l.b16 %v4465
        %v4861 = vunpack.c.h.b16 %v4465
        %v4862 = vunpack.c.l.b16 %v4466
        %v4863 = vunpack.c.h.b16 %v4466
        %v4864 = vunpack.c.l.b16 %v4467
        %v4865 = vunpack.c.h.b16 %v4467
        %v4866 = vunpack.c.l.b16 %v4468
        %v4867 = vunpack.c.h.b16 %v4468
        %v4868 = vunpack.c.l.b16 %v4469
        %v4869 = vunpack.c.h.b16 %v4469
        %v4870 = vunpack.c.l.b16 %v4470
        %v4871 = vunpack.c.h.b16 %v4470
        %v4872 = vunpack.c.l.b16 %v4471
        %v4873 = vunpack.c.h.b16 %v4471
        %v4874 = vunpack.c.l.b16 %v4472
        %v4875 = vunpack.c.h.b16 %v4472
        %v4876 = vunpack.c.l.b16 %v4473
        %v4877 = vunpack.c.h.b16 %v4473
        %v4878 = vunpack.c.l.b16 %v4474
        %v4879 = vunpack.c.h.b16 %v4474
        %v4880 = vunpack.c.l.b16 %v4475
        %v4881 = vunpack.c.h.b16 %v4475
        %v4882 = vunpack.c.l.b16 %v4476
        %v4883 = vunpack.c.h.b16 %v4476
        %v4884 = vunpack.c.l.b16 %v4477
        %v4885 = vunpack.c.h.b16 %v4477
        %v4886 = vunpack.c.l.b16 %v4478
        %v4887 = vunpack.c.h.b16 %v4478
        %v4888 = vunpack.c.l.b16 %v4479
        %v4889 = vunpack.c.h.b16 %v4479
        %v4890 = vunpack.c.l.b16 %v4480
        %v4891 = vunpack.c.h.b16 %v4480
        %v4892 = vunpack.c.l.b16 %v4481
        %v4893 = vunpack.c.h.b16 %v4481
        %v4894 = vunpack.c.l.b16 %v4482
        %v4895 = vunpack.c.h.b16 %v4482
        %v4896 = vunpack.c.l.b16 %v4483
        %v4897 = vunpack.c.h.b16 %v4483
        %v4898 = vunpack.c.l.b16 %v4484
        %v4899 = vunpack.c.h.b16 %v4484
        %v4900 = vunpack.c.l.b16 %v4485
        %v4901 = vunpack.c.h.b16 %v4485
        %v4902 = vunpack.c.l.b16 %v4486
        %v4903 = vunpack.c.h.b16 %v4486
        %v4904 = vunpack.c.l.b16 %v4487
        %v4905 = vunpack.c.h.b16 %v4487
        %v4906 = vunpack.c.l.b16 %v4488
        %v4907 = vunpack.c.h.b16 %v4488
        %v4908 = vunpack.c.l.b16 %v4489
        %v4909 = vunpack.c.h.b16 %v4489
        %v4910 = vunpack.c.l.b16 %v4490
        %v4911 = vunpack.c.h.b16 %v4490
        %v4912 = vunpack.c.l.b16 %v4491
        %v4913 = vunpack.c.h.b16 %v4491
        %v4914 = vunpack.c.l.b16 %v4492
        %v4915 = vunpack.c.h.b16 %v4492
        %v4916 = vunpack.c.l.b16 %v4493
        %v4917 = vunpack.c.h.b16 %v4493
        %v4918 = vunpack.c.l.b16 %v4494
        %v4919 = vunpack.c.h.b16 %v4494
        %v4920 = vunpack.c.l.b16 %v4495
        %v4921 = vunpack.c.h.b16 %v4495
        %v4922 = vunpack.c.l.b16 %v4496
        %v4923 = vunpack.c.h.b16 %v4496
        %v4924 = vunpack.c.l.b16 %v4497
        %v4925 = vunpack.c.h.b16 %v4497
        %v4926 = vunpack.c.l.b16 %v4498
        %v4927 = vunpack.c.h.b16 %v4498
        %v4928 = vpack.c.b16 %v4802, %v4800
        %v4929 = vpack.c.b16 %v4803, %v4801
        %v4930 = vpack.c.b16 %v4806, %v4804
        %v4931 = vpack.c.b16 %v4807, %v4805
        %v4932 = vpack.c.b16 %v4810, %v4808
        %v4933 = vpack.c.b16 %v4811, %v4809
        %v4934 = vpack.c.b16 %v4814, %v4812
        %v4935 = vpack.c.b16 %v4815, %v4813
        %v4936 = vpack.c.b16 %v4818, %v4816
        %v4937 = vpack.c.b16 %v4819, %v4817
        %v4938 = vpack.c.b16 %v4822, %v4820
        %v4939 = vpack.c.b16 %v4823, %v4821
        %v4940 = vpack.c.b16 %v4826, %v4824
        %v4941 = vpack.c.b16 %v4827, %v4825
        %v4942 = vpack.c.b16 %v4830, %v4828
        %v4943 = vpack.c.b16 %v4831, %v4829
        %v4944 = vpack.c.b16 %v4834, %v4832
        %v4945 = vpack.c.b16 %v4835, %v4833
        %v4946 = vpack.c.b16 %v4838, %v4836
        %v4947 = vpack.c.b16 %v4839, %v4837
        %v4948 = vpack.c.b16 %v4842, %v4840
        %v4949 = vpack.c.b16 %v4843, %v4841
        %v4950 = vpack.c.b16 %v4846, %v4844
        %v4951 = vpack.c.b16 %v4847, %v4845
        %v4952 = vpack.c.b16 %v4850, %v4848
        %v4953 = vpack.c.b16 %v4851, %v4849
        %v4954 = vpack.c.b16 %v4854, %v4852
        %v4955 = vpack.c.b16 %v4855, %v4853
        %v4956 = vpack.c.b16 %v4858, %v4856
        %v4957 = vpack.c.b16 %v4859, %v4857
        %v4958 = vpack.c.b16 %v4862, %v4860
        %v4959 = vpack.c.b16 %v4863, %v4861
        %v4960 = vpack.c.b16 %v4866, %v4864
        %v4961 = vpack.c.b16 %v4867, %v4865
        %v4962 = vpack.c.b16 %v4870, %v4868
        %v4963 = vpack.c.b16 %v4871, %v4869
        %v4964 = vpack.c.b16 %v4874, %v4872
        %v4965 = vpack.c.b16 %v4875, %v4873
        %v4966 = vpack.c.b16 %v4878, %v4876
        %v4967 = vpack.c.b16 %v4879, %v4877
        %v4968 = vpack.c.b16 %v4882, %v4880
        %v4969 = vpack.c.b16 %v4883, %v4881
        %v4970 = vpack.c.b16 %v4886, %v4884
        %v4971 = vpack.c.b16 %v4887, %v4885
        %v4972 = vpack.c.b16 %v4890, %v4888
        %v4973 = vpack.c.b16 %v4891, %v4889
        %v4974 = vpack.c.b16 %v4894, %v4892
        %v4975 = vpack.c.b16 %v4895, %v4893
        %v4976 = vpack.c.b16 %v4898, %v4896
        %v4977 = vpack.c.b16 %v4899, %v4897
        %v4978 = vpack.c.b16 %v4902, %v4900
        %v4979 = vpack.c.b16 %v4903, %v4901
        %v4980 = vpack.c.b16 %v4906, %v4904
        %v4981 = vpack.c.b16 %v4907, %v4905
        %v4982 = vpack.c.b16 %v4910, %v4908
        %v4983 = vpack.c.b16 %v4911, %v4909
        %v4984 = vpack.c.b16 %v4914, %v4912
        %v4985 = vpack.c.b16 %v4915, %v4913
        %v4986 = vpack.c.b16 %v4918, %v4916
        %v4987 = vpack.c.b16 %v4919, %v4917
        %v4988 = vpack.c.b16 %v4922, %v4920
        %v4989 = vpack.c.b16 %v4923, %v4921
        %v4990 = vpack.c.b16 %v4926, %v4924
        %v4991 = vpack.c.b16 %v4927, %v4925
        %5056 = vmatprep.subr.bf16.mxu0 %v4929
        %5057 = vmatpush1.bf16.msra.mxu0 %v4928
        %5058 = vmatprep.subr.bf16.mxu0 %v4931
        %5059 = vmatpush1.bf16.msra.mxu0 %v4930
        %5060 = vmatprep.subr.bf16.mxu0 %v4933
        %5061 = vmatpush1.bf16.msra.mxu0 %v4932
        %5062 = vmatprep.subr.bf16.mxu0 %v4935
        %5063 = vmatpush1.bf16.msra.mxu0 %v4934
        %5064 = vmatprep.subr.bf16.mxu0 %v4937
        %5065 = vmatpush1.bf16.msra.mxu0 %v4936
        %5066 = vmatprep.subr.bf16.mxu0 %v4939
        %5067 = vmatpush1.bf16.msra.mxu0 %v4938
        %5068 = vmatprep.subr.bf16.mxu0 %v4941
        %5069 = vmatpush1.bf16.msra.mxu0 %v4940
        %5070 = vmatprep.subr.bf16.mxu0 %v4943
        %5071 = vmatpush1.bf16.msra.mxu0 %v4942
        %5072 = vmatprep.subr.bf16.mxu0 %v4945
        %5073 = vmatpush1.bf16.msra.mxu0 %v4944
        %5074 = vmatprep.subr.bf16.mxu0 %v4947
        %5075 = vmatpush1.bf16.msra.mxu0 %v4946
        %5076 = vmatprep.subr.bf16.mxu0 %v4949
        %5077 = vmatpush1.bf16.msra.mxu0 %v4948
        %5078 = vmatprep.subr.bf16.mxu0 %v4951
        %5079 = vmatpush1.bf16.msra.mxu0 %v4950
        %5080 = vmatprep.subr.bf16.mxu0 %v4953
        %5081 = vmatpush1.bf16.msra.mxu0 %v4952
        %5082 = vmatprep.subr.bf16.mxu0 %v4955
        %5083 = vmatpush1.bf16.msra.mxu0 %v4954
        %5084 = vmatprep.subr.bf16.mxu0 %v4957
        %5085 = vmatpush1.bf16.msra.mxu0 %v4956
        %5086 = vmatprep.subr.bf16.mxu0 %v4959
        %5087 = vmatpush1.bf16.msra.mxu0 %v4958
        %5088 = vmatprep.mubr.bf16.mxu0 %v4432
        %5089 = vmatmul.mubr.bf16.gmra.mrb[0].mxu0 %v4431
        %v5090 = vpop.f32.mrb[0].mxu0
        %v5091 = vadd.f32 %v4730, %v5090
        %v5092 = vpop.f32.mrb[0].mxu0
        %v5093 = vadd.f32 %v4732, %v5092
        %v5094 = vpop.f32.mrb[0].mxu0
        %v5095 = vpop.f32.mrb[0].mxu0
        %5096 = vdwg.mxu0
        %5097 = vmatprep.subr.bf16.mxu0 %v4961
        %5098 = vmatpush1.bf16.msra.mxu0 %v4960
        %5099 = vmatprep.subr.bf16.mxu0 %v4963
        %5100 = vmatpush1.bf16.msra.mxu0 %v4962
        %5101 = vmatprep.subr.bf16.mxu0 %v4965
        %5102 = vmatpush1.bf16.msra.mxu0 %v4964
        %5103 = vmatprep.subr.bf16.mxu0 %v4967
        %5104 = vmatpush1.bf16.msra.mxu0 %v4966
        %5105 = vmatprep.subr.bf16.mxu0 %v4969
        %5106 = vmatpush1.bf16.msra.mxu0 %v4968
        %5107 = vmatprep.subr.bf16.mxu0 %v4971
        %5108 = vmatpush1.bf16.msra.mxu0 %v4970
        %5109 = vmatprep.subr.bf16.mxu0 %v4973
        %5110 = vmatpush1.bf16.msra.mxu0 %v4972
        %5111 = vmatprep.subr.bf16.mxu0 %v4975
        %5112 = vmatpush1.bf16.msra.mxu0 %v4974
        %5113 = vmatprep.subr.bf16.mxu0 %v4977
        %5114 = vmatpush1.bf16.msra.mxu0 %v4976
        %5115 = vmatprep.subr.bf16.mxu0 %v4979
        %5116 = vmatpush1.bf16.msra.mxu0 %v4978
        %5117 = vmatprep.subr.bf16.mxu0 %v4981
        %5118 = vmatpush1.bf16.msra.mxu0 %v4980
        %5119 = vmatprep.subr.bf16.mxu0 %v4983
        %5120 = vmatpush1.bf16.msra.mxu0 %v4982
        %5121 = vmatprep.subr.bf16.mxu0 %v4985
        %5122 = vmatpush1.bf16.msra.mxu0 %v4984
        %5123 = vmatprep.subr.bf16.mxu0 %v4987
        %5124 = vmatpush1.bf16.msra.mxu0 %v4986
        %5125 = vmatprep.subr.bf16.mxu0 %v4989
        %5126 = vmatpush1.bf16.msra.mxu0 %v4988
        %5127 = vmatprep.subr.bf16.mxu0 %v4991
        %5128 = vmatpush1.bf16.msra.mxu0 %v4990
        %5129 = vmatprep.mubr.bf16.mxu0 %v4434
        %5130 = vmatmul.mubr.bf16.gmra.mrb[0].mxu0 %v4433
        %v5131 = vpop.f32.mrb[0].mxu0
        %v5132 = vadd.f32 %v5091, %v5131
        %v5133 = vpop.f32.mrb[0].mxu0
        %v5134 = vadd.f32 %v5093, %v5133
        %v5135 = vpop.f32.mrb[0].mxu0
        %v5136 = vpop.f32.mrb[0].mxu0
        %5137 = vdwg.mxu0
        %v5138 = vld [vmem:[%s9] sm:$0x3]
        %v5140 = vlaneseq
        %v5141 = vshrl.u32 %v5140, 7
        %v5142 = vsub.s32 0, %v5141
        %v5143 = vrot.slane %v5138, %v5142
        %v5144 = vlaneseq
        %v5145 = vshrl.u32 %v5144, 7
        %v5146 = vsub.s32 1, %v5145
        %v5147 = vrot.slane %v5138, %v5146
        %v5150 = vadd.f32 %v5132, %v5143
        %v5151 = vadd.f32 %v5134, %v5147
        %v5152 = vmax.f32 %v5150, 0.0
        %v5153 = vmax.f32 %v5151, 0.0
        %v5154 = vld [vmem:[%s11] sm:$0x1]
        %v5155 = vld [vmem:[%s10] sm:$0xff]
        %v5156 = vld [vmem:[%s10 + $0x8] sm:$0xff]
        %v5157 = vld [vmem:[%s10 + $0x10] sm:$0xff]
        %v5158 = vld [vmem:[%s10 + $0x18] sm:$0xff]
        %v5159 = vld [vmem:[%s10 + $0x20] sm:$0xff]
        %v5160 = vld [vmem:[%s10 + $0x28] sm:$0xff]
        %v5161 = vld [vmem:[%s10 + $0x30] sm:$0xff]
        %v5162 = vld [vmem:[%s10 + $0x38] sm:$0xff]
        %v5163 = vld [vmem:[%s10 + $0x40] sm:$0xff]
        %v5164 = vld [vmem:[%s10 + $0x48] sm:$0xff]
        %v5165 = vld [vmem:[%s10 + $0x50] sm:$0xff]
        %v5166 = vld [vmem:[%s10 + $0x58] sm:$0xff]
        %v5167 = vld [vmem:[%s10 + $0x60] sm:$0xff]
        %v5168 = vld [vmem:[%s10 + $0x68] sm:$0xff]
        %v5169 = vld [vmem:[%s10 + $0x70] sm:$0xff]
        %v5170 = vld [vmem:[%s10 + $0x78] sm:$0xff]
        %v5171 = vld [vmem:[%s10 + $0x80] sm:$0xff]
        %v5172 = vld [vmem:[%s10 + $0x88] sm:$0xff]
        %v5173 = vld [vmem:[%s10 + $0x90] sm:$0xff]
        %v5174 = vld [vmem:[%s10 + $0x98] sm:$0xff]
        %v5175 = vld [vmem:[%s10 + $0xa0] sm:$0xff]
        %v5176 = vld [vmem:[%s10 + $0xa8] sm:$0xff]
        %v5177 = vld [vmem:[%s10 + $0xb0] sm:$0xff]
        %v5178 = vld [vmem:[%s10 + $0xb8] sm:$0xff]
        %v5179 = vld [vmem:[%s10 + $0xc0] sm:$0xff]
        %v5180 = vld [vmem:[%s10 + $0xc8] sm:$0xff]
        %v5181 = vld [vmem:[%s10 + $0xd0] sm:$0xff]
        %v5182 = vld [vmem:[%s10 + $0xd8] sm:$0xff]
        %v5183 = vld [vmem:[%s10 + $0xe0] sm:$0xff]
        %v5184 = vld [vmem:[%s10 + $0xe8] sm:$0xff]
        %v5185 = vld [vmem:[%s10 + $0xf0] sm:$0xff]
        %v5186 = vld [vmem:[%s10 + $0xf8] sm:$0xff]
        %5187 = vmatprep.subr.mxu0 0.0
        %5188 = vmatpush1.msra.mxu0 %v5155
        %5189 = vmatprep.subr.mxu0 0.0
        %5190 = vmatpush1.msra.mxu0 %v5156
        %5191 = vmatprep.subr.mxu0 0.0
        %5192 = vmatpush1.msra.mxu0 %v5157
        %5193 = vmatprep.subr.mxu0 0.0
        %5194 = vmatpush1.msra.mxu0 %v5158
        %5195 = vmatprep.subr.mxu0 0.0
        %5196 = vmatpush1.msra.mxu0 %v5159
        %5197 = vmatprep.subr.mxu0 0.0
        %5198 = vmatpush1.msra.mxu0 %v5160
        %5199 = vmatprep.subr.mxu0 0.0
        %5200 = vmatpush1.msra.mxu0 %v5161
        %5201 = vmatprep.subr.mxu0 0.0
        %5202 = vmatpush1.msra.mxu0 %v5162
        %5203 = vmatprep.subr.mxu0 0.0
        %5204 = vmatpush1.msra.mxu0 %v5163
        %5205 = vmatprep.subr.mxu0 0.0
        %5206 = vmatpush1.msra.mxu0 %v5164
        %5207 = vmatprep.subr.mxu0 0.0
        %5208 = vmatpush1.msra.mxu0 %v5165
        %5209 = vmatprep.subr.mxu0 0.0
        %5210 = vmatpush1.msra.mxu0 %v5166
        %5211 = vmatprep.subr.mxu0 0.0
        %5212 = vmatpush1.msra.mxu0 %v5167
        %5213 = vmatprep.subr.mxu0 0.0
        %5214 = vmatpush1.msra.mxu0 %v5168
        %5215 = vmatprep.subr.mxu0 0.0
        %5216 = vmatpush1.msra.mxu0 %v5169
        %5217 = vmatprep.subr.mxu0 0.0
        %5218 = vmatpush1.msra.mxu0 %v5170
        %5219 = vmatprep.subr.mxu0 0.0
        %5220 = vmatpush1.msra.mxu0 %v5171
        %5221 = vmatprep.subr.mxu0 0.0
        %5222 = vmatpush1.msra.mxu0 %v5172
        %5223 = vmatprep.subr.mxu0 0.0
        %5224 = vmatpush1.msra.mxu0 %v5173
        %5225 = vmatprep.subr.mxu0 0.0
        %5226 = vmatpush1.msra.mxu0 %v5174
        %5227 = vmatprep.subr.mxu0 0.0
        %5228 = vmatpush1.msra.mxu0 %v5175
        %5229 = vmatprep.subr.mxu0 0.0
        %5230 = vmatpush1.msra.mxu0 %v5176
        %5231 = vmatprep.subr.mxu0 0.0
        %5232 = vmatpush1.msra.mxu0 %v5177
        %5233 = vmatprep.subr.mxu0 0.0
        %5234 = vmatpush1.msra.mxu0 %v5178
        %5235 = vmatprep.subr.mxu0 0.0
        %5236 = vmatpush1.msra.mxu0 %v5179
        %5237 = vmatprep.subr.mxu0 0.0
        %5238 = vmatpush1.msra.mxu0 %v5180
        %5239 = vmatprep.subr.mxu0 0.0
        %5240 = vmatpush1.msra.mxu0 %v5181
        %5241 = vmatprep.subr.mxu0 0.0
        %5242 = vmatpush1.msra.mxu0 %v5182
        %5243 = vmatprep.subr.mxu0 0.0
        %5244 = vmatpush1.msra.mxu0 %v5183
        %5245 = vmatprep.subr.mxu0 0.0
        %5246 = vmatpush1.msra.mxu0 %v5184
        %5247 = vmatprep.subr.mxu0 0.0
        %5248 = vmatpush1.msra.mxu0 %v5185
        %5249 = vmatprep.subr.mxu0 0.0
        %5250 = vmatpush1.msra.mxu0 %v5186
        %5251 = vmatprep.mubr.f32.mxu0 %v5153
        %5252 = vmatmul.mubr.f32.gmra.mrb[0].mxu0 %v5152
        %v5253 = vpop.f32.mrb[0].mxu0
        %v5254 = vadd.f32 0.0, %v5253
        %v5255 = vpop.f32.mrb[0].mxu0
        %5256 = vdwg.mxu0
        %v5257 = vadd.f32 %v5154, %v5254
        %s5258 = scalar_lea.vmem %s10, 256
        %v5259 = vld [vmem:[%s5258] sm:$0xff]
        %v5260 = vld [vmem:[%s5258 + $0x8] sm:$0xff]
        %v5261 = vld [vmem:[%s5258 + $0x10] sm:$0xff]
        %v5262 = vld [vmem:[%s5258 + $0x18] sm:$0xff]
        %v5263 = vld [vmem:[%s5258 + $0x20] sm:$0xff]
        %v5264 = vld [vmem:[%s5258 + $0x28] sm:$0xff]
        %v5265 = vld [vmem:[%s5258 + $0x30] sm:$0xff]
        %v5266 = vld [vmem:[%s5258 + $0x38] sm:$0xff]
        %v5267 = vld [vmem:[%s5258 + $0x40] sm:$0xff]
        %v5268 = vld [vmem:[%s5258 + $0x48] sm:$0xff]
        %v5269 = vld [vmem:[%s5258 + $0x50] sm:$0xff]
        %v5270 = vld [vmem:[%s5258 + $0x58] sm:$0xff]
        %v5271 = vld [vmem:[%s5258 + $0x60] sm:$0xff]
        %v5272 = vld [vmem:[%s5258 + $0x68] sm:$0xff]
        %v5273 = vld [vmem:[%s5258 + $0x70] sm:$0xff]
        %v5274 = vld [vmem:[%s5258 + $0x78] sm:$0xff]
        %v5275 = vld [vmem:[%s5258 + $0x80] sm:$0xff]
        %v5276 = vld [vmem:[%s5258 + $0x88] sm:$0xff]
        %v5277 = vld [vmem:[%s5258 + $0x90] sm:$0xff]
        %v5278 = vld [vmem:[%s5258 + $0x98] sm:$0xff]
        %v5279 = vld [vmem:[%s5258 + $0xa0] sm:$0xff]
        %v5280 = vld [vmem:[%s5258 + $0xa8] sm:$0xff]
        %v5281 = vld [vmem:[%s5258 + $0xb0] sm:$0xff]
        %v5282 = vld [vmem:[%s5258 + $0xb8] sm:$0xff]
        %v5283 = vld [vmem:[%s5258 + $0xc0] sm:$0xff]
        %v5284 = vld [vmem:[%s5258 + $0xc8] sm:$0xff]
        %v5285 = vld [vmem:[%s5258 + $0xd0] sm:$0xff]
        %v5286 = vld [vmem:[%s5258 + $0xd8] sm:$0xff]
        %v5287 = vld [vmem:[%s5258 + $0xe0] sm:$0xff]
        %v5288 = vld [vmem:[%s5258 + $0xe8] sm:$0xff]
        %v5289 = vld [vmem:[%s5258 + $0xf0] sm:$0xff]
        %v5290 = vld [vmem:[%s5258 + $0xf8] sm:$0xff]
        %v5293 = vrot.slane %v5152, 1
        %v5294 = vrot.slane %v5153, 1
        %5297 = vmatprep.subr.mxu0 0.0
        %5298 = vmatpush1.msra.mxu0 %v5259
        %5299 = vmatprep.subr.mxu0 0.0
        %5300 = vmatpush1.msra.mxu0 %v5260
        %5301 = vmatprep.subr.mxu0 0.0
        %5302 = vmatpush1.msra.mxu0 %v5261
        %5303 = vmatprep.subr.mxu0 0.0
        %5304 = vmatpush1.msra.mxu0 %v5262
        %5305 = vmatprep.subr.mxu0 0.0
        %5306 = vmatpush1.msra.mxu0 %v5263
        %5307 = vmatprep.subr.mxu0 0.0
        %5308 = vmatpush1.msra.mxu0 %v5264
        %5309 = vmatprep.subr.mxu0 0.0
        %5310 = vmatpush1.msra.mxu0 %v5265
        %5311 = vmatprep.subr.mxu0 0.0
        %5312 = vmatpush1.msra.mxu0 %v5266
        %5313 = vmatprep.subr.mxu0 0.0
        %5314 = vmatpush1.msra.mxu0 %v5267
        %5315 = vmatprep.subr.mxu0 0.0
        %5316 = vmatpush1.msra.mxu0 %v5268
        %5317 = vmatprep.subr.mxu0 0.0
        %5318 = vmatpush1.msra.mxu0 %v5269
        %5319 = vmatprep.subr.mxu0 0.0
        %5320 = vmatpush1.msra.mxu0 %v5270
        %5321 = vmatprep.subr.mxu0 0.0
        %5322 = vmatpush1.msra.mxu0 %v5271
        %5323 = vmatprep.subr.mxu0 0.0
        %5324 = vmatpush1.msra.mxu0 %v5272
        %5325 = vmatprep.subr.mxu0 0.0
        %5326 = vmatpush1.msra.mxu0 %v5273
        %5327 = vmatprep.subr.mxu0 0.0
        %5328 = vmatpush1.msra.mxu0 %v5274
        %5329 = vmatprep.subr.mxu0 0.0
        %5330 = vmatpush1.msra.mxu0 %v5275
        %5331 = vmatprep.subr.mxu0 0.0
        %5332 = vmatpush1.msra.mxu0 %v5276
        %5333 = vmatprep.subr.mxu0 0.0
        %5334 = vmatpush1.msra.mxu0 %v5277
        %5335 = vmatprep.subr.mxu0 0.0
        %5336 = vmatpush1.msra.mxu0 %v5278
        %5337 = vmatprep.subr.mxu0 0.0
        %5338 = vmatpush1.msra.mxu0 %v5279
        %5339 = vmatprep.subr.mxu0 0.0
        %5340 = vmatpush1.msra.mxu0 %v5280
        %5341 = vmatprep.subr.mxu0 0.0
        %5342 = vmatpush1.msra.mxu0 %v5281
        %5343 = vmatprep.subr.mxu0 0.0
        %5344 = vmatpush1.msra.mxu0 %v5282
        %5345 = vmatprep.subr.mxu0 0.0
        %5346 = vmatpush1.msra.mxu0 %v5283
        %5347 = vmatprep.subr.mxu0 0.0
        %5348 = vmatpush1.msra.mxu0 %v5284
        %5349 = vmatprep.subr.mxu0 0.0
        %5350 = vmatpush1.msra.mxu0 %v5285
        %5351 = vmatprep.subr.mxu0 0.0
        %5352 = vmatpush1.msra.mxu0 %v5286
        %5353 = vmatprep.subr.mxu0 0.0
        %5354 = vmatpush1.msra.mxu0 %v5287
        %5355 = vmatprep.subr.mxu0 0.0
        %5356 = vmatpush1.msra.mxu0 %v5288
        %5357 = vmatprep.subr.mxu0 0.0
        %5358 = vmatpush1.msra.mxu0 %v5289
        %5359 = vmatprep.subr.mxu0 0.0
        %5360 = vmatpush1.msra.mxu0 %v5290
        %5361 = vmatprep.mubr.f32.mxu0 %v5294
        %5362 = vmatmul.mubr.f32.gmra.mrb[0].mxu0 %v5293
        %v5363 = vpop.f32.mrb[0].mxu0
        %v5364 = vadd.f32 0.0, %v5363
        %v5365 = vpop.f32.mrb[0].mxu0
        %5366 = vdwg.mxu0
        %v5367 = vadd.f32 %v5257, %v5364
        %s5368 = scalar_lea.vmem %s10, 512
        %v5369 = vld [vmem:[%s5368] sm:$0xff]
        %v5370 = vld [vmem:[%s5368 + $0x8] sm:$0xff]
        %v5371 = vld [vmem:[%s5368 + $0x10] sm:$0xff]
        %v5372 = vld [vmem:[%s5368 + $0x18] sm:$0xff]
        %v5373 = vld [vmem:[%s5368 + $0x20] sm:$0xff]
        %v5374 = vld [vmem:[%s5368 + $0x28] sm:$0xff]
        %v5375 = vld [vmem:[%s5368 + $0x30] sm:$0xff]
        %v5376 = vld [vmem:[%s5368 + $0x38] sm:$0xff]
        %v5377 = vld [vmem:[%s5368 + $0x40] sm:$0xff]
        %v5378 = vld [vmem:[%s5368 + $0x48] sm:$0xff]
        %v5379 = vld [vmem:[%s5368 + $0x50] sm:$0xff]
        %v5380 = vld [vmem:[%s5368 + $0x58] sm:$0xff]
        %v5381 = vld [vmem:[%s5368 + $0x60] sm:$0xff]
        %v5382 = vld [vmem:[%s5368 + $0x68] sm:$0xff]
        %v5383 = vld [vmem:[%s5368 + $0x70] sm:$0xff]
        %v5384 = vld [vmem:[%s5368 + $0x78] sm:$0xff]
        %v5385 = vld [vmem:[%s5368 + $0x80] sm:$0xff]
        %v5386 = vld [vmem:[%s5368 + $0x88] sm:$0xff]
        %v5387 = vld [vmem:[%s5368 + $0x90] sm:$0xff]
        %v5388 = vld [vmem:[%s5368 + $0x98] sm:$0xff]
        %v5389 = vld [vmem:[%s5368 + $0xa0] sm:$0xff]
        %v5390 = vld [vmem:[%s5368 + $0xa8] sm:$0xff]
        %v5391 = vld [vmem:[%s5368 + $0xb0] sm:$0xff]
        %v5392 = vld [vmem:[%s5368 + $0xb8] sm:$0xff]
        %v5393 = vld [vmem:[%s5368 + $0xc0] sm:$0xff]
        %v5394 = vld [vmem:[%s5368 + $0xc8] sm:$0xff]
        %v5395 = vld [vmem:[%s5368 + $0xd0] sm:$0xff]
        %v5396 = vld [vmem:[%s5368 + $0xd8] sm:$0xff]
        %v5397 = vld [vmem:[%s5368 + $0xe0] sm:$0xff]
        %v5398 = vld [vmem:[%s5368 + $0xe8] sm:$0xff]
        %v5399 = vld [vmem:[%s5368 + $0xf0] sm:$0xff]
        %v5400 = vld [vmem:[%s5368 + $0xf8] sm:$0xff]
        %v5401 = vrot.slane %v5152, 2
        %v5402 = vrot.slane %v5153, 2
        %5405 = vmatprep.subr.mxu0 0.0
        %5406 = vmatpush1.msra.mxu0 %v5369
        %5407 = vmatprep.subr.mxu0 0.0
        %5408 = vmatpush1.msra.mxu0 %v5370
        %5409 = vmatprep.subr.mxu0 0.0
        %5410 = vmatpush1.msra.mxu0 %v5371
        %5411 = vmatprep.subr.mxu0 0.0
        %5412 = vmatpush1.msra.mxu0 %v5372
        %5413 = vmatprep.subr.mxu0 0.0
        %5414 = vmatpush1.msra.mxu0 %v5373
        %5415 = vmatprep.subr.mxu0 0.0
        %5416 = vmatpush1.msra.mxu0 %v5374
        %5417 = vmatprep.subr.mxu0 0.0
        %5418 = vmatpush1.msra.mxu0 %v5375
        %5419 = vmatprep.subr.mxu0 0.0
        %5420 = vmatpush1.msra.mxu0 %v5376
        %5421 = vmatprep.subr.mxu0 0.0
        %5422 = vmatpush1.msra.mxu0 %v5377
        %5423 = vmatprep.subr.mxu0 0.0
        %5424 = vmatpush1.msra.mxu0 %v5378
        %5425 = vmatprep.subr.mxu0 0.0
        %5426 = vmatpush1.msra.mxu0 %v5379
        %5427 = vmatprep.subr.mxu0 0.0
        %5428 = vmatpush1.msra.mxu0 %v5380
        %5429 = vmatprep.subr.mxu0 0.0
        %5430 = vmatpush1.msra.mxu0 %v5381
        %5431 = vmatprep.subr.mxu0 0.0
        %5432 = vmatpush1.msra.mxu0 %v5382
        %5433 = vmatprep.subr.mxu0 0.0
        %5434 = vmatpush1.msra.mxu0 %v5383
        %5435 = vmatprep.subr.mxu0 0.0
        %5436 = vmatpush1.msra.mxu0 %v5384
        %5437 = vmatprep.subr.mxu0 0.0
        %5438 = vmatpush1.msra.mxu0 %v5385
        %5439 = vmatprep.subr.mxu0 0.0
        %5440 = vmatpush1.msra.mxu0 %v5386
        %5441 = vmatprep.subr.mxu0 0.0
        %5442 = vmatpush1.msra.mxu0 %v5387
        %5443 = vmatprep.subr.mxu0 0.0
        %5444 = vmatpush1.msra.mxu0 %v5388
        %5445 = vmatprep.subr.mxu0 0.0
        %5446 = vmatpush1.msra.mxu0 %v5389
        %5447 = vmatprep.subr.mxu0 0.0
        %5448 = vmatpush1.msra.mxu0 %v5390
        %5449 = vmatprep.subr.mxu0 0.0
        %5450 = vmatpush1.msra.mxu0 %v5391
        %5451 = vmatprep.subr.mxu0 0.0
        %5452 = vmatpush1.msra.mxu0 %v5392
        %5453 = vmatprep.subr.mxu0 0.0
        %5454 = vmatpush1.msra.mxu0 %v5393
        %5455 = vmatprep.subr.mxu0 0.0
        %5456 = vmatpush1.msra.mxu0 %v5394
        %5457 = vmatprep.subr.mxu0 0.0
        %5458 = vmatpush1.msra.mxu0 %v5395
        %5459 = vmatprep.subr.mxu0 0.0
        %5460 = vmatpush1.msra.mxu0 %v5396
        %5461 = vmatprep.subr.mxu0 0.0
        %5462 = vmatpush1.msra.mxu0 %v5397
        %5463 = vmatprep.subr.mxu0 0.0
        %5464 = vmatpush1.msra.mxu0 %v5398
        %5465 = vmatprep.subr.mxu0 0.0
        %5466 = vmatpush1.msra.mxu0 %v5399
        %5467 = vmatprep.subr.mxu0 0.0
        %5468 = vmatpush1.msra.mxu0 %v5400
        %5469 = vmatprep.mubr.f32.mxu0 %v5402
        %5470 = vmatmul.mubr.f32.gmra.mrb[0].mxu0 %v5401
        %v5471 = vpop.f32.mrb[0].mxu0
        %v5472 = vadd.f32 0.0, %v5471
        %v5473 = vpop.f32.mrb[0].mxu0
        %5474 = vdwg.mxu0
        %v5475 = vadd.f32 %v5367, %v5472
        %s5476 = scalar_lea.vmem %s10, 768
        %v5477 = vld [vmem:[%s5476] sm:$0xff]
        %v5478 = vld [vmem:[%s5476 + $0x8] sm:$0xff]
        %v5479 = vld [vmem:[%s5476 + $0x10] sm:$0xff]
        %v5480 = vld [vmem:[%s5476 + $0x18] sm:$0xff]
        %v5481 = vld [vmem:[%s5476 + $0x20] sm:$0xff]
        %v5482 = vld [vmem:[%s5476 + $0x28] sm:$0xff]
        %v5483 = vld [vmem:[%s5476 + $0x30] sm:$0xff]
        %v5484 = vld [vmem:[%s5476 + $0x38] sm:$0xff]
        %v5485 = vld [vmem:[%s5476 + $0x40] sm:$0xff]
        %v5486 = vld [vmem:[%s5476 + $0x48] sm:$0xff]
        %v5487 = vld [vmem:[%s5476 + $0x50] sm:$0xff]
        %v5488 = vld [vmem:[%s5476 + $0x58] sm:$0xff]
        %v5489 = vld [vmem:[%s5476 + $0x60] sm:$0xff]
        %v5490 = vld [vmem:[%s5476 + $0x68] sm:$0xff]
        %v5491 = vld [vmem:[%s5476 + $0x70] sm:$0xff]
        %v5492 = vld [vmem:[%s5476 + $0x78] sm:$0xff]
        %v5493 = vld [vmem:[%s5476 + $0x80] sm:$0xff]
        %v5494 = vld [vmem:[%s5476 + $0x88] sm:$0xff]
        %v5495 = vld [vmem:[%s5476 + $0x90] sm:$0xff]
        %v5496 = vld [vmem:[%s5476 + $0x98] sm:$0xff]
        %v5497 = vld [vmem:[%s5476 + $0xa0] sm:$0xff]
        %v5498 = vld [vmem:[%s5476 + $0xa8] sm:$0xff]
        %v5499 = vld [vmem:[%s5476 + $0xb0] sm:$0xff]
        %v5500 = vld [vmem:[%s5476 + $0xb8] sm:$0xff]
        %v5501 = vld [vmem:[%s5476 + $0xc0] sm:$0xff]
        %v5502 = vld [vmem:[%s5476 + $0xc8] sm:$0xff]
        %v5503 = vld [vmem:[%s5476 + $0xd0] sm:$0xff]
        %v5504 = vld [vmem:[%s5476 + $0xd8] sm:$0xff]
        %v5505 = vld [vmem:[%s5476 + $0xe0] sm:$0xff]
        %v5506 = vld [vmem:[%s5476 + $0xe8] sm:$0xff]
        %v5507 = vld [vmem:[%s5476 + $0xf0] sm:$0xff]
        %v5508 = vld [vmem:[%s5476 + $0xf8] sm:$0xff]
        %v5509 = vrot.slane %v5152, 3
        %v5510 = vrot.slane %v5153, 3
        %5513 = vmatprep.subr.mxu0 0.0
        %5514 = vmatpush1.msra.mxu0 %v5477
        %5515 = vmatprep.subr.mxu0 0.0
        %5516 = vmatpush1.msra.mxu0 %v5478
        %5517 = vmatprep.subr.mxu0 0.0
        %5518 = vmatpush1.msra.mxu0 %v5479
        %5519 = vmatprep.subr.mxu0 0.0
        %5520 = vmatpush1.msra.mxu0 %v5480
        %5521 = vmatprep.subr.mxu0 0.0
        %5522 = vmatpush1.msra.mxu0 %v5481
        %5523 = vmatprep.subr.mxu0 0.0
        %5524 = vmatpush1.msra.mxu0 %v5482
        %5525 = vmatprep.subr.mxu0 0.0
        %5526 = vmatpush1.msra.mxu0 %v5483
        %5527 = vmatprep.subr.mxu0 0.0
        %5528 = vmatpush1.msra.mxu0 %v5484
        %5529 = vmatprep.subr.mxu0 0.0
        %5530 = vmatpush1.msra.mxu0 %v5485
        %5531 = vmatprep.subr.mxu0 0.0
        %5532 = vmatpush1.msra.mxu0 %v5486
        %5533 = vmatprep.subr.mxu0 0.0
        %5534 = vmatpush1.msra.mxu0 %v5487
        %5535 = vmatprep.subr.mxu0 0.0
        %5536 = vmatpush1.msra.mxu0 %v5488
        %5537 = vmatprep.subr.mxu0 0.0
        %5538 = vmatpush1.msra.mxu0 %v5489
        %5539 = vmatprep.subr.mxu0 0.0
        %5540 = vmatpush1.msra.mxu0 %v5490
        %5541 = vmatprep.subr.mxu0 0.0
        %5542 = vmatpush1.msra.mxu0 %v5491
        %5543 = vmatprep.subr.mxu0 0.0
        %5544 = vmatpush1.msra.mxu0 %v5492
        %5545 = vmatprep.subr.mxu0 0.0
        %5546 = vmatpush1.msra.mxu0 %v5493
        %5547 = vmatprep.subr.mxu0 0.0
        %5548 = vmatpush1.msra.mxu0 %v5494
        %5549 = vmatprep.subr.mxu0 0.0
        %5550 = vmatpush1.msra.mxu0 %v5495
        %5551 = vmatprep.subr.mxu0 0.0
        %5552 = vmatpush1.msra.mxu0 %v5496
        %5553 = vmatprep.subr.mxu0 0.0
        %5554 = vmatpush1.msra.mxu0 %v5497
        %5555 = vmatprep.subr.mxu0 0.0
        %5556 = vmatpush1.msra.mxu0 %v5498
        %5557 = vmatprep.subr.mxu0 0.0
        %5558 = vmatpush1.msra.mxu0 %v5499
        %5559 = vmatprep.subr.mxu0 0.0
        %5560 = vmatpush1.msra.mxu0 %v5500
        %5561 = vmatprep.subr.mxu0 0.0
        %5562 = vmatpush1.msra.mxu0 %v5501
        %5563 = vmatprep.subr.mxu0 0.0
        %5564 = vmatpush1.msra.mxu0 %v5502
        %5565 = vmatprep.subr.mxu0 0.0
        %5566 = vmatpush1.msra.mxu0 %v5503
        %5567 = vmatprep.subr.mxu0 0.0
        %5568 = vmatpush1.msra.mxu0 %v5504
        %5569 = vmatprep.subr.mxu0 0.0
        %5570 = vmatpush1.msra.mxu0 %v5505
        %5571 = vmatprep.subr.mxu0 0.0
        %5572 = vmatpush1.msra.mxu0 %v5506
        %5573 = vmatprep.subr.mxu0 0.0
        %5574 = vmatpush1.msra.mxu0 %v5507
        %5575 = vmatprep.subr.mxu0 0.0
        %5576 = vmatpush1.msra.mxu0 %v5508
        %5577 = vmatprep.mubr.f32.mxu0 %v5510
        %5578 = vmatmul.mubr.f32.gmra.mrb[0].mxu0 %v5509
        %v5579 = vpop.f32.mrb[0].mxu0
        %v5580 = vadd.f32 0.0, %v5579
        %v5581 = vpop.f32.mrb[0].mxu0
        %5582 = vdwg.mxu0
        %v5583 = vadd.f32 %v5475, %v5580
        %s5584 = scalar_lea.vmem %s10, 1024
        %v5585 = vld [vmem:[%s5584] sm:$0xff]
        %v5586 = vld [vmem:[%s5584 + $0x8] sm:$0xff]
        %v5587 = vld [vmem:[%s5584 + $0x10] sm:$0xff]
        %v5588 = vld [vmem:[%s5584 + $0x18] sm:$0xff]
        %v5589 = vld [vmem:[%s5584 + $0x20] sm:$0xff]
        %v5590 = vld [vmem:[%s5584 + $0x28] sm:$0xff]
        %v5591 = vld [vmem:[%s5584 + $0x30] sm:$0xff]
        %v5592 = vld [vmem:[%s5584 + $0x38] sm:$0xff]
        %v5593 = vld [vmem:[%s5584 + $0x40] sm:$0xff]
        %v5594 = vld [vmem:[%s5584 + $0x48] sm:$0xff]
        %v5595 = vld [vmem:[%s5584 + $0x50] sm:$0xff]
        %v5596 = vld [vmem:[%s5584 + $0x58] sm:$0xff]
        %v5597 = vld [vmem:[%s5584 + $0x60] sm:$0xff]
        %v5598 = vld [vmem:[%s5584 + $0x68] sm:$0xff]
        %v5599 = vld [vmem:[%s5584 + $0x70] sm:$0xff]
        %v5600 = vld [vmem:[%s5584 + $0x78] sm:$0xff]
        %v5601 = vld [vmem:[%s5584 + $0x80] sm:$0xff]
        %v5602 = vld [vmem:[%s5584 + $0x88] sm:$0xff]
        %v5603 = vld [vmem:[%s5584 + $0x90] sm:$0xff]
        %v5604 = vld [vmem:[%s5584 + $0x98] sm:$0xff]
        %v5605 = vld [vmem:[%s5584 + $0xa0] sm:$0xff]
        %v5606 = vld [vmem:[%s5584 + $0xa8] sm:$0xff]
        %v5607 = vld [vmem:[%s5584 + $0xb0] sm:$0xff]
        %v5608 = vld [vmem:[%s5584 + $0xb8] sm:$0xff]
        %v5609 = vld [vmem:[%s5584 + $0xc0] sm:$0xff]
        %v5610 = vld [vmem:[%s5584 + $0xc8] sm:$0xff]
        %v5611 = vld [vmem:[%s5584 + $0xd0] sm:$0xff]
        %v5612 = vld [vmem:[%s5584 + $0xd8] sm:$0xff]
        %v5613 = vld [vmem:[%s5584 + $0xe0] sm:$0xff]
        %v5614 = vld [vmem:[%s5584 + $0xe8] sm:$0xff]
        %v5615 = vld [vmem:[%s5584 + $0xf0] sm:$0xff]
        %v5616 = vld [vmem:[%s5584 + $0xf8] sm:$0xff]
        %v5617 = vrot.slane %v5152, 4
        %v5618 = vrot.slane %v5153, 4
        %5621 = vmatprep.subr.mxu0 0.0
        %5622 = vmatpush1.msra.mxu0 %v5585
        %5623 = vmatprep.subr.mxu0 0.0
        %5624 = vmatpush1.msra.mxu0 %v5586
        %5625 = vmatprep.subr.mxu0 0.0
        %5626 = vmatpush1.msra.mxu0 %v5587
        %5627 = vmatprep.subr.mxu0 0.0
        %5628 = vmatpush1.msra.mxu0 %v5588
        %5629 = vmatprep.subr.mxu0 0.0
        %5630 = vmatpush1.msra.mxu0 %v5589
        %5631 = vmatprep.subr.mxu0 0.0
        %5632 = vmatpush1.msra.mxu0 %v5590
        %5633 = vmatprep.subr.mxu0 0.0
        %5634 = vmatpush1.msra.mxu0 %v5591
        %5635 = vmatprep.subr.mxu0 0.0
        %5636 = vmatpush1.msra.mxu0 %v5592
        %5637 = vmatprep.subr.mxu0 0.0
        %5638 = vmatpush1.msra.mxu0 %v5593
        %5639 = vmatprep.subr.mxu0 0.0
        %5640 = vmatpush1.msra.mxu0 %v5594
        %5641 = vmatprep.subr.mxu0 0.0
        %5642 = vmatpush1.msra.mxu0 %v5595
        %5643 = vmatprep.subr.mxu0 0.0
        %5644 = vmatpush1.msra.mxu0 %v5596
        %5645 = vmatprep.subr.mxu0 0.0
        %5646 = vmatpush1.msra.mxu0 %v5597
        %5647 = vmatprep.subr.mxu0 0.0
        %5648 = vmatpush1.msra.mxu0 %v5598
        %5649 = vmatprep.subr.mxu0 0.0
        %5650 = vmatpush1.msra.mxu0 %v5599
        %5651 = vmatprep.subr.mxu0 0.0
        %5652 = vmatpush1.msra.mxu0 %v5600
        %5653 = vmatprep.subr.mxu0 0.0
        %5654 = vmatpush1.msra.mxu0 %v5601
        %5655 = vmatprep.subr.mxu0 0.0
        %5656 = vmatpush1.msra.mxu0 %v5602
        %5657 = vmatprep.subr.mxu0 0.0
        %5658 = vmatpush1.msra.mxu0 %v5603
        %5659 = vmatprep.subr.mxu0 0.0
        %5660 = vmatpush1.msra.mxu0 %v5604
        %5661 = vmatprep.subr.mxu0 0.0
        %5662 = vmatpush1.msra.mxu0 %v5605
        %5663 = vmatprep.subr.mxu0 0.0
        %5664 = vmatpush1.msra.mxu0 %v5606
        %5665 = vmatprep.subr.mxu0 0.0
        %5666 = vmatpush1.msra.mxu0 %v5607
        %5667 = vmatprep.subr.mxu0 0.0
        %5668 = vmatpush1.msra.mxu0 %v5608
        %5669 = vmatprep.subr.mxu0 0.0
        %5670 = vmatpush1.msra.mxu0 %v5609
        %5671 = vmatprep.subr.mxu0 0.0
        %5672 = vmatpush1.msra.mxu0 %v5610
        %5673 = vmatprep.subr.mxu0 0.0
        %5674 = vmatpush1.msra.mxu0 %v5611
        %5675 = vmatprep.subr.mxu0 0.0
        %5676 = vmatpush1.msra.mxu0 %v5612
        %5677 = vmatprep.subr.mxu0 0.0
        %5678 = vmatpush1.msra.mxu0 %v5613
        %5679 = vmatprep.subr.mxu0 0.0
        %5680 = vmatpush1.msra.mxu0 %v5614
        %5681 = vmatprep.subr.mxu0 0.0
        %5682 = vmatpush1.msra.mxu0 %v5615
        %5683 = vmatprep.subr.mxu0 0.0
        %5684 = vmatpush1.msra.mxu0 %v5616
        %5685 = vmatprep.mubr.f32.mxu0 %v5618
        %5686 = vmatmul.mubr.f32.gmra.mrb[0].mxu0 %v5617
        %v5687 = vpop.f32.mrb[0].mxu0
        %v5688 = vadd.f32 0.0, %v5687
        %v5689 = vpop.f32.mrb[0].mxu0
        %5690 = vdwg.mxu0
        %v5691 = vadd.f32 %v5583, %v5688
        %s5692 = scalar_lea.vmem %s10, 1280
        %v5693 = vld [vmem:[%s5692] sm:$0xff]
        %v5694 = vld [vmem:[%s5692 + $0x8] sm:$0xff]
        %v5695 = vld [vmem:[%s5692 + $0x10] sm:$0xff]
        %v5696 = vld [vmem:[%s5692 + $0x18] sm:$0xff]
        %v5697 = vld [vmem:[%s5692 + $0x20] sm:$0xff]
        %v5698 = vld [vmem:[%s5692 + $0x28] sm:$0xff]
        %v5699 = vld [vmem:[%s5692 + $0x30] sm:$0xff]
        %v5700 = vld [vmem:[%s5692 + $0x38] sm:$0xff]
        %v5701 = vld [vmem:[%s5692 + $0x40] sm:$0xff]
        %v5702 = vld [vmem:[%s5692 + $0x48] sm:$0xff]
        %v5703 = vld [vmem:[%s5692 + $0x50] sm:$0xff]
        %v5704 = vld [vmem:[%s5692 + $0x58] sm:$0xff]
        %v5705 = vld [vmem:[%s5692 + $0x60] sm:$0xff]
        %v5706 = vld [vmem:[%s5692 + $0x68] sm:$0xff]
        %v5707 = vld [vmem:[%s5692 + $0x70] sm:$0xff]
        %v5708 = vld [vmem:[%s5692 + $0x78] sm:$0xff]
        %v5709 = vld [vmem:[%s5692 + $0x80] sm:$0xff]
        %v5710 = vld [vmem:[%s5692 + $0x88] sm:$0xff]
        %v5711 = vld [vmem:[%s5692 + $0x90] sm:$0xff]
        %v5712 = vld [vmem:[%s5692 + $0x98] sm:$0xff]
        %v5713 = vld [vmem:[%s5692 + $0xa0] sm:$0xff]
        %v5714 = vld [vmem:[%s5692 + $0xa8] sm:$0xff]
        %v5715 = vld [vmem:[%s5692 + $0xb0] sm:$0xff]
        %v5716 = vld [vmem:[%s5692 + $0xb8] sm:$0xff]
        %v5717 = vld [vmem:[%s5692 + $0xc0] sm:$0xff]
        %v5718 = vld [vmem:[%s5692 + $0xc8] sm:$0xff]
        %v5719 = vld [vmem:[%s5692 + $0xd0] sm:$0xff]
        %v5720 = vld [vmem:[%s5692 + $0xd8] sm:$0xff]
        %v5721 = vld [vmem:[%s5692 + $0xe0] sm:$0xff]
        %v5722 = vld [vmem:[%s5692 + $0xe8] sm:$0xff]
        %v5723 = vld [vmem:[%s5692 + $0xf0] sm:$0xff]
        %v5724 = vld [vmem:[%s5692 + $0xf8] sm:$0xff]
        %v5725 = vrot.slane %v5152, 5
        %v5726 = vrot.slane %v5153, 5
        %5729 = vmatprep.subr.mxu0 0.0
        %5730 = vmatpush1.msra.mxu0 %v5693
        %5731 = vmatprep.subr.mxu0 0.0
        %5732 = vmatpush1.msra.mxu0 %v5694
        %5733 = vmatprep.subr.mxu0 0.0
        %5734 = vmatpush1.msra.mxu0 %v5695
        %5735 = vmatprep.subr.mxu0 0.0
        %5736 = vmatpush1.msra.mxu0 %v5696
        %5737 = vmatprep.subr.mxu0 0.0
        %5738 = vmatpush1.msra.mxu0 %v5697
        %5739 = vmatprep.subr.mxu0 0.0
        %5740 = vmatpush1.msra.mxu0 %v5698
        %5741 = vmatprep.subr.mxu0 0.0
        %5742 = vmatpush1.msra.mxu0 %v5699
        %5743 = vmatprep.subr.mxu0 0.0
        %5744 = vmatpush1.msra.mxu0 %v5700
        %5745 = vmatprep.subr.mxu0 0.0
        %5746 = vmatpush1.msra.mxu0 %v5701
        %5747 = vmatprep.subr.mxu0 0.0
        %5748 = vmatpush1.msra.mxu0 %v5702
        %5749 = vmatprep.subr.mxu0 0.0
        %5750 = vmatpush1.msra.mxu0 %v5703
        %5751 = vmatprep.subr.mxu0 0.0
        %5752 = vmatpush1.msra.mxu0 %v5704
        %5753 = vmatprep.subr.mxu0 0.0
        %5754 = vmatpush1.msra.mxu0 %v5705
        %5755 = vmatprep.subr.mxu0 0.0
        %5756 = vmatpush1.msra.mxu0 %v5706
        %5757 = vmatprep.subr.mxu0 0.0
        %5758 = vmatpush1.msra.mxu0 %v5707
        %5759 = vmatprep.subr.mxu0 0.0
        %5760 = vmatpush1.msra.mxu0 %v5708
        %5761 = vmatprep.subr.mxu0 0.0
        %5762 = vmatpush1.msra.mxu0 %v5709
        %5763 = vmatprep.subr.mxu0 0.0
        %5764 = vmatpush1.msra.mxu0 %v5710
        %5765 = vmatprep.subr.mxu0 0.0
        %5766 = vmatpush1.msra.mxu0 %v5711
        %5767 = vmatprep.subr.mxu0 0.0
        %5768 = vmatpush1.msra.mxu0 %v5712
        %5769 = vmatprep.subr.mxu0 0.0
        %5770 = vmatpush1.msra.mxu0 %v5713
        %5771 = vmatprep.subr.mxu0 0.0
        %5772 = vmatpush1.msra.mxu0 %v5714
        %5773 = vmatprep.subr.mxu0 0.0
        %5774 = vmatpush1.msra.mxu0 %v5715
        %5775 = vmatprep.subr.mxu0 0.0
        %5776 = vmatpush1.msra.mxu0 %v5716
        %5777 = vmatprep.subr.mxu0 0.0
        %5778 = vmatpush1.msra.mxu0 %v5717
        %5779 = vmatprep.subr.mxu0 0.0
        %5780 = vmatpush1.msra.mxu0 %v5718
        %5781 = vmatprep.subr.mxu0 0.0
        %5782 = vmatpush1.msra.mxu0 %v5719
        %5783 = vmatprep.subr.mxu0 0.0
        %5784 = vmatpush1.msra.mxu0 %v5720
        %5785 = vmatprep.subr.mxu0 0.0
        %5786 = vmatpush1.msra.mxu0 %v5721
        %5787 = vmatprep.subr.mxu0 0.0
        %5788 = vmatpush1.msra.mxu0 %v5722
        %5789 = vmatprep.subr.mxu0 0.0
        %5790 = vmatpush1.msra.mxu0 %v5723
        %5791 = vmatprep.subr.mxu0 0.0
        %5792 = vmatpush1.msra.mxu0 %v5724
        %5793 = vmatprep.mubr.f32.mxu0 %v5726
        %5794 = vmatmul.mubr.f32.gmra.mrb[0].mxu0 %v5725
        %v5795 = vpop.f32.mrb[0].mxu0
        %v5796 = vadd.f32 0.0, %v5795
        %v5797 = vpop.f32.mrb[0].mxu0
        %5798 = vdwg.mxu0
        %v5799 = vadd.f32 %v5691, %v5796
        %s5800 = scalar_lea.vmem %s10, 1536
        %v5801 = vld [vmem:[%s5800] sm:$0xff]
        %v5802 = vld [vmem:[%s5800 + $0x8] sm:$0xff]
        %v5803 = vld [vmem:[%s5800 + $0x10] sm:$0xff]
        %v5804 = vld [vmem:[%s5800 + $0x18] sm:$0xff]
        %v5805 = vld [vmem:[%s5800 + $0x20] sm:$0xff]
        %v5806 = vld [vmem:[%s5800 + $0x28] sm:$0xff]
        %v5807 = vld [vmem:[%s5800 + $0x30] sm:$0xff]
        %v5808 = vld [vmem:[%s5800 + $0x38] sm:$0xff]
        %v5809 = vld [vmem:[%s5800 + $0x40] sm:$0xff]
        %v5810 = vld [vmem:[%s5800 + $0x48] sm:$0xff]
        %v5811 = vld [vmem:[%s5800 + $0x50] sm:$0xff]
        %v5812 = vld [vmem:[%s5800 + $0x58] sm:$0xff]
        %v5813 = vld [vmem:[%s5800 + $0x60] sm:$0xff]
        %v5814 = vld [vmem:[%s5800 + $0x68] sm:$0xff]
        %v5815 = vld [vmem:[%s5800 + $0x70] sm:$0xff]
        %v5816 = vld [vmem:[%s5800 + $0x78] sm:$0xff]
        %v5817 = vld [vmem:[%s5800 + $0x80] sm:$0xff]
        %v5818 = vld [vmem:[%s5800 + $0x88] sm:$0xff]
        %v5819 = vld [vmem:[%s5800 + $0x90] sm:$0xff]
        %v5820 = vld [vmem:[%s5800 + $0x98] sm:$0xff]
        %v5821 = vld [vmem:[%s5800 + $0xa0] sm:$0xff]
        %v5822 = vld [vmem:[%s5800 + $0xa8] sm:$0xff]
        %v5823 = vld [vmem:[%s5800 + $0xb0] sm:$0xff]
        %v5824 = vld [vmem:[%s5800 + $0xb8] sm:$0xff]
        %v5825 = vld [vmem:[%s5800 + $0xc0] sm:$0xff]
        %v5826 = vld [vmem:[%s5800 + $0xc8] sm:$0xff]
        %v5827 = vld [vmem:[%s5800 + $0xd0] sm:$0xff]
        %v5828 = vld [vmem:[%s5800 + $0xd8] sm:$0xff]
        %v5829 = vld [vmem:[%s5800 + $0xe0] sm:$0xff]
        %v5830 = vld [vmem:[%s5800 + $0xe8] sm:$0xff]
        %v5831 = vld [vmem:[%s5800 + $0xf0] sm:$0xff]
        %v5832 = vld [vmem:[%s5800 + $0xf8] sm:$0xff]
        %v5833 = vrot.slane %v5152, 6
        %v5834 = vrot.slane %v5153, 6
        %5837 = vmatprep.subr.mxu0 0.0
        %5838 = vmatpush1.msra.mxu0 %v5801
        %5839 = vmatprep.subr.mxu0 0.0
        %5840 = vmatpush1.msra.mxu0 %v5802
        %5841 = vmatprep.subr.mxu0 0.0
        %5842 = vmatpush1.msra.mxu0 %v5803
        %5843 = vmatprep.subr.mxu0 0.0
        %5844 = vmatpush1.msra.mxu0 %v5804
        %5845 = vmatprep.subr.mxu0 0.0
        %5846 = vmatpush1.msra.mxu0 %v5805
        %5847 = vmatprep.subr.mxu0 0.0
        %5848 = vmatpush1.msra.mxu0 %v5806
        %5849 = vmatprep.subr.mxu0 0.0
        %5850 = vmatpush1.msra.mxu0 %v5807
        %5851 = vmatprep.subr.mxu0 0.0
        %5852 = vmatpush1.msra.mxu0 %v5808
        %5853 = vmatprep.subr.mxu0 0.0
        %5854 = vmatpush1.msra.mxu0 %v5809
        %5855 = vmatprep.subr.mxu0 0.0
        %5856 = vmatpush1.msra.mxu0 %v5810
        %5857 = vmatprep.subr.mxu0 0.0
        %5858 = vmatpush1.msra.mxu0 %v5811
        %5859 = vmatprep.subr.mxu0 0.0
        %5860 = vmatpush1.msra.mxu0 %v5812
        %5861 = vmatprep.subr.mxu0 0.0
        %5862 = vmatpush1.msra.mxu0 %v5813
        %5863 = vmatprep.subr.mxu0 0.0
        %5864 = vmatpush1.msra.mxu0 %v5814
        %5865 = vmatprep.subr.mxu0 0.0
        %5866 = vmatpush1.msra.mxu0 %v5815
        %5867 = vmatprep.subr.mxu0 0.0
        %5868 = vmatpush1.msra.mxu0 %v5816
        %5869 = vmatprep.subr.mxu0 0.0
        %5870 = vmatpush1.msra.mxu0 %v5817
        %5871 = vmatprep.subr.mxu0 0.0
        %5872 = vmatpush1.msra.mxu0 %v5818
        %5873 = vmatprep.subr.mxu0 0.0
        %5874 = vmatpush1.msra.mxu0 %v5819
        %5875 = vmatprep.subr.mxu0 0.0
        %5876 = vmatpush1.msra.mxu0 %v5820
        %5877 = vmatprep.subr.mxu0 0.0
        %5878 = vmatpush1.msra.mxu0 %v5821
        %5879 = vmatprep.subr.mxu0 0.0
        %5880 = vmatpush1.msra.mxu0 %v5822
        %5881 = vmatprep.subr.mxu0 0.0
        %5882 = vmatpush1.msra.mxu0 %v5823
        %5883 = vmatprep.subr.mxu0 0.0
        %5884 = vmatpush1.msra.mxu0 %v5824
        %5885 = vmatprep.subr.mxu0 0.0
        %5886 = vmatpush1.msra.mxu0 %v5825
        %5887 = vmatprep.subr.mxu0 0.0
        %5888 = vmatpush1.msra.mxu0 %v5826
        %5889 = vmatprep.subr.mxu0 0.0
        %5890 = vmatpush1.msra.mxu0 %v5827
        %5891 = vmatprep.subr.mxu0 0.0
        %5892 = vmatpush1.msra.mxu0 %v5828
        %5893 = vmatprep.subr.mxu0 0.0
        %5894 = vmatpush1.msra.mxu0 %v5829
        %5895 = vmatprep.subr.mxu0 0.0
        %5896 = vmatpush1.msra.mxu0 %v5830
        %5897 = vmatprep.subr.mxu0 0.0
        %5898 = vmatpush1.msra.mxu0 %v5831
        %5899 = vmatprep.subr.mxu0 0.0
        %5900 = vmatpush1.msra.mxu0 %v5832
        %5901 = vmatprep.mubr.f32.mxu0 %v5834
        %5902 = vmatmul.mubr.f32.gmra.mrb[0].mxu0 %v5833
        %v5903 = vpop.f32.mrb[0].mxu0
        %v5904 = vadd.f32 0.0, %v5903
        %v5905 = vpop.f32.mrb[0].mxu0
        %5906 = vdwg.mxu0
        %v5907 = vadd.f32 %v5799, %v5904
        %s5908 = scalar_lea.vmem %s10, 1792
        %v5909 = vld [vmem:[%s5908] sm:$0xff]
        %v5910 = vld [vmem:[%s5908 + $0x8] sm:$0xff]
        %v5911 = vld [vmem:[%s5908 + $0x10] sm:$0xff]
        %v5912 = vld [vmem:[%s5908 + $0x18] sm:$0xff]
        %v5913 = vld [vmem:[%s5908 + $0x20] sm:$0xff]
        %v5914 = vld [vmem:[%s5908 + $0x28] sm:$0xff]
        %v5915 = vld [vmem:[%s5908 + $0x30] sm:$0xff]
        %v5916 = vld [vmem:[%s5908 + $0x38] sm:$0xff]
        %v5917 = vld [vmem:[%s5908 + $0x40] sm:$0xff]
        %v5918 = vld [vmem:[%s5908 + $0x48] sm:$0xff]
        %v5919 = vld [vmem:[%s5908 + $0x50] sm:$0xff]
        %v5920 = vld [vmem:[%s5908 + $0x58] sm:$0xff]
        %v5921 = vld [vmem:[%s5908 + $0x60] sm:$0xff]
        %v5922 = vld [vmem:[%s5908 + $0x68] sm:$0xff]
        %v5923 = vld [vmem:[%s5908 + $0x70] sm:$0xff]
        %v5924 = vld [vmem:[%s5908 + $0x78] sm:$0xff]
        %v5925 = vld [vmem:[%s5908 + $0x80] sm:$0xff]
        %v5926 = vld [vmem:[%s5908 + $0x88] sm:$0xff]
        %v5927 = vld [vmem:[%s5908 + $0x90] sm:$0xff]
        %v5928 = vld [vmem:[%s5908 + $0x98] sm:$0xff]
        %v5929 = vld [vmem:[%s5908 + $0xa0] sm:$0xff]
        %v5930 = vld [vmem:[%s5908 + $0xa8] sm:$0xff]
        %v5931 = vld [vmem:[%s5908 + $0xb0] sm:$0xff]
        %v5932 = vld [vmem:[%s5908 + $0xb8] sm:$0xff]
        %v5933 = vld [vmem:[%s5908 + $0xc0] sm:$0xff]
        %v5934 = vld [vmem:[%s5908 + $0xc8] sm:$0xff]
        %v5935 = vld [vmem:[%s5908 + $0xd0] sm:$0xff]
        %v5936 = vld [vmem:[%s5908 + $0xd8] sm:$0xff]
        %v5937 = vld [vmem:[%s5908 + $0xe0] sm:$0xff]
        %v5938 = vld [vmem:[%s5908 + $0xe8] sm:$0xff]
        %v5939 = vld [vmem:[%s5908 + $0xf0] sm:$0xff]
        %v5940 = vld [vmem:[%s5908 + $0xf8] sm:$0xff]
        %v5941 = vrot.slane %v5152, 7
        %v5942 = vrot.slane %v5153, 7
        %5945 = vmatprep.subr.mxu0 0.0
        %5946 = vmatpush1.msra.mxu0 %v5909
        %5947 = vmatprep.subr.mxu0 0.0
        %5948 = vmatpush1.msra.mxu0 %v5910
        %5949 = vmatprep.subr.mxu0 0.0
        %5950 = vmatpush1.msra.mxu0 %v5911
        %5951 = vmatprep.subr.mxu0 0.0
        %5952 = vmatpush1.msra.mxu0 %v5912
        %5953 = vmatprep.subr.mxu0 0.0
        %5954 = vmatpush1.msra.mxu0 %v5913
        %5955 = vmatprep.subr.mxu0 0.0
        %5956 = vmatpush1.msra.mxu0 %v5914
        %5957 = vmatprep.subr.mxu0 0.0
        %5958 = vmatpush1.msra.mxu0 %v5915
        %5959 = vmatprep.subr.mxu0 0.0
        %5960 = vmatpush1.msra.mxu0 %v5916
        %5961 = vmatprep.subr.mxu0 0.0
        %5962 = vmatpush1.msra.mxu0 %v5917
        %5963 = vmatprep.subr.mxu0 0.0
        %5964 = vmatpush1.msra.mxu0 %v5918
        %5965 = vmatprep.subr.mxu0 0.0
        %5966 = vmatpush1.msra.mxu0 %v5919
        %5967 = vmatprep.subr.mxu0 0.0
        %5968 = vmatpush1.msra.mxu0 %v5920
        %5969 = vmatprep.subr.mxu0 0.0
        %5970 = vmatpush1.msra.mxu0 %v5921
        %5971 = vmatprep.subr.mxu0 0.0
        %5972 = vmatpush1.msra.mxu0 %v5922
        %5973 = vmatprep.subr.mxu0 0.0
        %5974 = vmatpush1.msra.mxu0 %v5923
        %5975 = vmatprep.subr.mxu0 0.0
        %5976 = vmatpush1.msra.mxu0 %v5924
        %5977 = vmatprep.subr.mxu0 0.0
        %5978 = vmatpush1.msra.mxu0 %v5925
        %5979 = vmatprep.subr.mxu0 0.0
        %5980 = vmatpush1.msra.mxu0 %v5926
        %5981 = vmatprep.subr.mxu0 0.0
        %5982 = vmatpush1.msra.mxu0 %v5927
        %5983 = vmatprep.subr.mxu0 0.0
        %5984 = vmatpush1.msra.mxu0 %v5928
        %5985 = vmatprep.subr.mxu0 0.0
        %5986 = vmatpush1.msra.mxu0 %v5929
        %5987 = vmatprep.subr.mxu0 0.0
        %5988 = vmatpush1.msra.mxu0 %v5930
        %5989 = vmatprep.subr.mxu0 0.0
        %5990 = vmatpush1.msra.mxu0 %v5931
        %5991 = vmatprep.subr.mxu0 0.0
        %5992 = vmatpush1.msra.mxu0 %v5932
        %5993 = vmatprep.subr.mxu0 0.0
        %5994 = vmatpush1.msra.mxu0 %v5933
        %5995 = vmatprep.subr.mxu0 0.0
        %5996 = vmatpush1.msra.mxu0 %v5934
        %5997 = vmatprep.subr.mxu0 0.0
        %5998 = vmatpush1.msra.mxu0 %v5935
        %5999 = vmatprep.subr.mxu0 0.0
        %6000 = vmatpush1.msra.mxu0 %v5936
        %6001 = vmatprep.subr.mxu0 0.0
        %6002 = vmatpush1.msra.mxu0 %v5937
        %6003 = vmatprep.subr.mxu0 0.0
        %6004 = vmatpush1.msra.mxu0 %v5938
        %6005 = vmatprep.subr.mxu0 0.0
        %6006 = vmatpush1.msra.mxu0 %v5939
        %6007 = vmatprep.subr.mxu0 0.0
        %6008 = vmatpush1.msra.mxu0 %v5940
        %6009 = vmatprep.mubr.f32.mxu0 %v5942
        %6010 = vmatmul.mubr.f32.gmra.mrb[0].mxu0 %v5941
        %v6011 = vpop.f32.mrb[0].mxu0
        %v6012 = vadd.f32 0.0, %v6011
        %v6013 = vpop.f32.mrb[0].mxu0
        %6014 = vdwg.mxu0
        %v6015 = vadd.f32 %v5907, %v6012
        %vm6016 = vcmask 24576
        %6017 = vst.msk [vmem:[%s464] sm:$0x1] %vm6016, %v6015
        %s6018 = sand.u32 %s294, 1
        %s6019 = scalar_lea.sflag [#allocation6], %s6018
        %s6020 = sand.u32 %s294, 1
        %s6021 = scalar_lea.vmem [#allocation12], %s6020
        // Predicated region
        $region85: #{simple_conv_net_forward.1} parent=67 // pred_check
          %p6022 = pneg %p304
        $region86: #{simple_conv_net_forward.1} parent=67 // pred_check_branch
          %6024 = sbr.rel (%p6022) target = $region88
        $region87: #{simple_conv_net_forward.1} parent=67 // pred_region
          %s6026 = ssub.s32 16, 16
          %6027 = vsyncadd %s6019, %s6026
          %s6028 = smul.addr %s29, 16
          %s6029 = scalar_lea.hbm %s12, %s6028
          %s6031 = sshll.u32 %s6021, 4
          %s6032 = int_to_ptr.vmem [resolvable:$true] %s6031
          %6034 = dma.vmem_to_hbm [thread:$0]  %s6032, 16, %s6029, %s6019
        $region88: #{simple_conv_net_forward.1} parent=67 // pred_fallthru
          _
      $region68: #{simple_conv_net_forward.1} parent=5 // pred_fallthru
        _
      %p6035 = scmp.le.s32.totalorder 2, %s24
      // Predicated region
      $region89: #{simple_conv_net_forward.1} parent=5 // pred_check
        %p6036 = pneg %p6035
      $region90: #{simple_conv_net_forward.1} parent=5 // pred_check_branch
        %6038 = sbr.rel (%p6036) target = $region92
      $region91: #{simple_conv_net_forward.1} parent=5 // pred_region
        %s6039 = ssub.s32 %s24, 2
        // Predicated region
        $region93: #{simple_conv_net_forward.1} parent=91 // pred_check
          %p6040 = pneg %p310
        $region94: #{simple_conv_net_forward.1} parent=91 // pred_check_branch
          %6042 = sbr.rel (%p6040) target = $region96
        $region95: #{simple_conv_net_forward.1} parent=91 // pred_region
          %s6043 = sand.u32 %s295, 1
          %s6044 = scalar_lea.sflag [#allocation6], %s6043
          %s6045 = sand.u32 %s295, 1
          %s6046 = scalar_lea.vmem [#allocation12], %s6045
          %6047 = dma.done %s6044, 16
        $region96: #{simple_conv_net_forward.1} parent=91 // pred_fallthru
          _
      $region92: #{simple_conv_net_forward.1} parent=5 // pred_fallthru
        _
    $region6: #{simple_conv_net_forward.1} parent=1 // loop_footer
      %s28 = sadd.s32 1, %s24
    $region7: #{simple_conv_net_forward.1} parent=1 // loop_footer_branch
      %23 = sbr.rel target = $region3
    $region8: #{simple_conv_net_forward.1} parent=1 // loop_exit
      _
    %6048 = vsyncpa [#allocation5], 1
    %s6049 = scalar_lea.sflag [#allocation5], 1
    %6050 = vsyncpa %s6049, 1
    %6051 = vsyncpa [#allocation8], 1
    %6052 = vsyncpa [#allocation11], 1
    %6053 = vsyncpa [#allocation6], 1
    %s6054 = scalar_lea.sflag [#allocation6], 1
    %6055 = vsyncpa %s6054, 1

</llo_original>
